<compile_context>
chip_gen: v6e
topology: v6e:2x2x1
jax: 0.10.0
libtpu: 0.0.40
codegen_flags: <defaults>
</compile_context>

<pallas_src>
import functools

import jax
import jax.numpy as jnp
from jax.experimental import pallas as pl
from jax.experimental.pallas import tpu as pltpu


def _relu6(t):
    return jnp.clip(t, 0.0, 6.0)


# ----------------------------------------------------------------------------
# Fused kernel: one grid step == one (image, row-band).
# The input block holds 4 parity-quadrant chunks of the band, flattened to
# (rows, 64):  [even-row/even-col (Bo*Wo) | even-row/odd-col (Bo*Wo) |
#               odd-row/even-col ((Bo+1)*Wo, incl. top halo) | odd-row/odd-col].
# ----------------------------------------------------------------------------
def _fused_forward_kernel(x_ref, w0_ref, b0_ref, w1_ref, b1_ref,
                          w2e0_ref, w2e1_ref, w2o0_ref, w2o1_ref, b2_ref,
                          w3_ref, b3_ref, o_ref, *, Bo, Wo):
    bf16 = jnp.bfloat16
    EV = Bo * Wo            # rows per even-row-parity chunk
    OD = (Bo + 1) * Wo      # rows per odd-row-parity chunk (includes 1-row halo)

    # ---- layers 1 & 2 (1x1 convs): two whole-band matmuls, bf16 x bf16 -> f32
    xb = _relu6(x_ref[...]).astype(bf16)                                   # (BROWS, 64)
    h1 = _relu6(jnp.dot(xb, w0_ref[...], preferred_element_type=jnp.float32)
                + b0_ref[...]).astype(bf16)                                # (BROWS, 256)
    h2 = _relu6(jnp.dot(h1, w1_ref[...], preferred_element_type=jnp.float32)
                + b1_ref[...]).astype(bf16)                                # (BROWS, 128)

    # ---- split the band into its 4 parity quadrants --------------------------
    ev0 = h2[0:EV, :].reshape(Bo, Wo, 128)                  # even rows, even cols
    ev1 = h2[EV:2 * EV, :].reshape(Bo, Wo, 128)             # even rows, odd cols
    od0 = h2[2 * EV:2 * EV + OD, :].reshape(Bo + 1, Wo, 128)        # odd rows, even cols
    od1 = h2[2 * EV + OD:2 * EV + 2 * OD, :].reshape(Bo + 1, Wo, 128)

    # conv2d_2 zero-pads ITS input, so the top halo row must be zero at the h2
    # level for the first band of each image (later bands carry real data there).
    row_ids = jax.lax.broadcasted_iota(jnp.int32, (Bo + 1, Wo, 128), 0)
    keep = jnp.logical_or(row_ids > 0, pl.program_id(1) > 0)
    od0 = jnp.where(keep, od0, jnp.zeros_like(od0))
    od1 = jnp.where(keep, od1, jnp.zeros_like(od1))

    # zero column on the left of the odd-col quadrants (pad=1 along W)
    ev1p = jnp.concatenate([jnp.zeros((Bo, 1, 128), bf16), ev1], axis=1)        # (Bo,   Wo+1, 128)
    od1p = jnp.concatenate([jnp.zeros((Bo + 1, 1, 128), bf16), od1], axis=1)    # (Bo+1, Wo+1, 128)

    # ---- layer 3: 3x3 / stride-2 / pad-1 conv as 4 K-grouped matmuls ----------
    # taps grouped by parity view; shifted patches concatenated along K.
    p_ev1 = jnp.concatenate([ev1p[:, 0:Wo], ev1p[:, 1:Wo + 1]], axis=-1)        # taps (1,0),(1,2)
    p_od0 = jnp.concatenate([od0[0:Bo], od0[1:Bo + 1]], axis=-1)                # taps (0,1),(2,1)
    p_od1 = jnp.concatenate([od1p[0:Bo, 0:Wo], od1p[0:Bo, 1:Wo + 1],
                             od1p[1:Bo + 1, 0:Wo], od1p[1:Bo + 1, 1:Wo + 1]],
                            axis=-1)                                            # 4 corner taps

    acc = jnp.dot(ev0.reshape(EV, 128), w2e0_ref[...],
                  preferred_element_type=jnp.float32)
    acc += jnp.dot(p_ev1.reshape(EV, 256), w2e1_ref[...],
                   preferred_element_type=jnp.float32)
    acc += jnp.dot(p_od0.reshape(EV, 256), w2o0_ref[...],
                   preferred_element_type=jnp.float32)
    acc += jnp.dot(p_od1.reshape(EV, 512), w2o1_ref[...],
                   preferred_element_type=jnp.float32)
    h3 = _relu6(acc + b2_ref[...]).astype(bf16)                                 # (EV, 128)

    # ---- layer 4, v11 = v10 + v10, layer 5 (reuses conv2d_1 weights) ----------
    h4 = _relu6(jnp.dot(h3, w3_ref[...], preferred_element_type=jnp.float32)
                + b3_ref[...])                                                  # (EV, 256) f32
    v11 = (h4 + h4).astype(bf16)
    out = _relu6(jnp.dot(v11, w1_ref[...], preferred_element_type=jnp.float32)
                 + b1_ref[...])                                                 # (EV, 128)
    o_ref[...] = out.astype(o_ref.dtype)


def _pick_band_rows(Ho, Wo, requested=None, target_pixels=1024):
    if requested is not None:
        assert Ho % requested == 0, "band_rows must divide H//2"
        return requested
    best = 1
    for d in range(1, Ho + 1):
        if Ho % d == 0 and d * Wo <= max(Wo, target_pixels):
            best = d
    return best


# ----------------------------------------------------------------------------
# Model forward (Pallas version of Model.forward): one pallas_call total.
# Takes / returns NCHW to mirror the PyTorch module.
# ----------------------------------------------------------------------------
def model_forward(x_nchw, p, band_rows=None):
    N, C, H, W = x_nchw.shape
    assert C == 64 and H % 2 == 0 and W % 16 == 0
    Ho, Wo = H // 2, W // 2
    Bo = _pick_band_rows(Ho, Wo, band_rows)
    nb = Ho // Bo
    BROWS = (4 * Bo + 2) * Wo          # pixels per band block (incl. halo rows)
    QSb = Bo * Wo                      # output pixels per band
    bf16 = jnp.bfloat16

    # ---- host-side layout: NCHW -> NHWC -> parity quadrants -> row-bands with a
    # 1-row halo on the odd-row quadrants (halo rows duplicated across bands).
    x_nhwc = jnp.transpose(x_nchw, (0, 2, 3, 1))
    xq = x_nhwc.reshape(N, Ho, 2, Wo, 2, C).transpose(0, 2, 4, 1, 3, 5)   # (N,rq,cq,Ho,Wo,C)
    ev = xq[:, 0].reshape(N, 2, nb, Bo, Wo, C).transpose(0, 2, 1, 3, 4, 5)      # (N,nb,2,Bo,Wo,C)
    od_pad = jnp.concatenate([jnp.zeros((N, 2, 1, Wo, C), x_nchw.dtype), xq[:, 1]], axis=2)
    row_idx = jnp.arange(nb)[:, None] * Bo + jnp.arange(Bo + 1)[None, :]
    od = od_pad[:, :, row_idx].transpose(0, 2, 1, 3, 4, 5)                      # (N,nb,2,Bo+1,Wo,C)
    x_bands = jnp.concatenate(
        [ev.reshape(N, nb, 2 * Bo * Wo, C), od.reshape(N, nb, 2 * (Bo + 1) * Wo, C)],
        axis=2)                                                                 # (N,nb,BROWS,C)

    # ---- kernel-layout weights (bf16 for the MXU; biases stay f32) -----------
    w0 = jnp.transpose(p["w0"][:, :, 0, 0]).astype(bf16)          # (64, 256)
    w1 = jnp.transpose(p["w1"][:, :, 0, 0]).astype(bf16)          # (256, 128)
    w3 = jnp.transpose(p["w3"][:, :, 0, 0]).astype(bf16)          # (128, 256)
    tap = lambda kh, kw: jnp.transpose(p["w2"][:, :, kh, kw])     # (Cin, Cout) = (128, 128)
    w2e0 = tap(1, 1).astype(bf16)                                                       # (128, 128)
    w2e1 = jnp.concatenate([tap(1, 0), tap(1, 2)], axis=0).astype(bf16)                 # (256, 128)
    w2o0 = jnp.concatenate([tap(0, 1), tap(2, 1)], axis=0).astype(bf16)                 # (256, 128)
    w2o1 = jnp.concatenate([tap(0, 0), tap(0, 2), tap(2, 0), tap(2, 2)],
                           axis=0).astype(bf16)                                         # (512, 128)
    b0 = p["b0"].reshape(1, -1).astype(jnp.float32)
    b1 = p["b1"].reshape(1, -1).astype(jnp.float32)
    b2 = p["b2"].reshape(1, -1).astype(jnp.float32)
    b3 = p["b3"].reshape(1, -1).astype(jnp.float32)

    HW, QS = H * W, Ho * Wo
    flops = 2 * N * (HW * 64 * 256 + HW * 256 * 128 + QS * 9 * 128 * 128
                     + QS * 128 * 256 + QS * 256 * 128)
    weight_bytes = 2 * (w0.size + w1.size + w3.size
                        + w2e0.size + w2e1.size + w2o0.size + w2o1.size)
    bytes_accessed = (4 * x_bands.size + 4 * N * QS * 128 + weight_bytes
                      + 4 * (b0.size + b1.size + b2.size + b3.size))

    vmem_limit = 96 * 1024 * 1024
    try:  # cap at 3/4 of physical VMEM (v7x has only 64 MiB per core)
        vmem_limit = min(vmem_limit,
                         int(pltpu.get_tpu_info().vmem_capacity_bytes * 3 // 4))
    except Exception:
        pass

    kernel = functools.partial(_fused_forward_kernel, Bo=Bo, Wo=Wo)
    const2 = lambda n, b: (0, 0)

    out_bands = pl.pallas_call(
        kernel,
        out_shape=jax.ShapeDtypeStruct((N, nb, QSb, 128), jnp.float32),
        grid=(N, nb),
        in_specs=[
            pl.BlockSpec((None, None, BROWS, C), lambda n, b: (n, b, 0, 0)),  # band pixels
            pl.BlockSpec((64, 256), const2),     # w0
            pl.BlockSpec((1, 256), const2),      # b0
            pl.BlockSpec((256, 128), const2),    # w1 (also used by layer 5)
            pl.BlockSpec((1, 128), const2),      # b1
            pl.BlockSpec((128, 128), const2),    # w2 group: tap (1,1)
            pl.BlockSpec((256, 128), const2),    # w2 group: taps (1,0),(1,2)
            pl.BlockSpec((256, 128), const2),    # w2 group: taps (0,1),(2,1)
            pl.BlockSpec((512, 128), const2),    # w2 group: 4 corner taps
            pl.BlockSpec((1, 128), const2),      # b2
            pl.BlockSpec((128, 256), const2),    # w3
            pl.BlockSpec((1, 256), const2),      # b3
        ],
        out_specs=pl.BlockSpec((None, None, QSb, 128), lambda n, b: (n, b, 0, 0)),
        compiler_params=pltpu.CompilerParams(
            dimension_semantics=("parallel", "parallel"),
            vmem_limit_bytes=int(vmem_limit)),
        cost_estimate=pl.CostEstimate(flops=int(flops), transcendentals=0,
                                      bytes_accessed=int(bytes_accessed)),
    )(x_bands, w0, b0, w1, b1, w2e0, w2e1, w2o0, w2o1, b2, w3, b3)

    out = out_bands.reshape(N, Ho, Wo, 128)
    return jnp.transpose(out, (0, 3, 1, 2))                      # back to NCHW


# ----------------------------------------------------------------------------
# Pure-JAX f32 reference (same math, lax convs) for the correctness check.
# ----------------------------------------------------------------------------
def ref_forward(x, p):
    r6 = lambda t: jnp.clip(t, 0.0, 6.0)

    def conv(x, w, b, stride=1, pad=0):
        y = jax.lax.conv_general_dilated(
            x, w, (stride, stride), ((pad, pad), (pad, pad)),
            dimension_numbers=("NCHW", "OIHW", "NCHW"))
        return y + b.reshape(1, -1, 1, 1)

    v3 = r6(conv(r6(x), p["w0"], p["b0"]))
    v5 = r6(conv(v3, p["w1"], p["b1"]))
    v8 = r6(conv(v5, p["w2"], p["b2"], stride=2, pad=1))
    v10 = r6(conv(v8, p["w3"], p["b3"]))
    v13 = r6(conv(v10 + v10, p["w1"], p["b1"]))
    return v13


def init_params(key):
    ks = jax.random.split(key, 8)

    def w_init(k, shape):
        fan_in = shape[1] * shape[2] * shape[3]
        return (jax.random.normal(k, shape, jnp.float32) / jnp.sqrt(fan_in)).astype(jnp.float32)

    def b_init(k, n, fan_in):
        bound = 1.0 / jnp.sqrt(fan_in)
        return jax.random.uniform(k, (n,), jnp.float32, -bound, bound)

    return {
        "w0": w_init(ks[0], (256, 64, 1, 1)),  "b0": b_init(ks[1], 256, 64.0),
        "w1": w_init(ks[2], (128, 256, 1, 1)), "b1": b_init(ks[3], 128, 256.0),
        "w2": w_init(ks[4], (128, 128, 3, 3)), "b2": b_init(ks[5], 128, 128.0 * 9),
        "w3": w_init(ks[6], (256, 128, 1, 1)), "b3": b_init(ks[7], 256, 128.0),
    }


if __name__ == "__main__":
    key = jax.random.PRNGKey(0)
    k_x, k_p = jax.random.split(key)
    x = jax.random.normal(k_x, (2, 64, 16, 16), jnp.float32)   # small NCHW input
    params = init_params(k_p)

    ref = jax.block_until_ready(ref_forward(x, params))

    # default band sizing (one band for this tiny input) ...
    out = jax.block_until_ready(jax.jit(model_forward)(x, params))
    # ... and an explicit multi-band run to exercise the halo / banding path.
    out_banded = jax.block_until_ready(
        jax.jit(functools.partial(model_forward, band_rows=4))(x, params))

    assert out.shape == (2, 128, 8, 8), out.shape
    assert out_banded.shape == (2, 128, 8, 8), out_banded.shape
    # bf16 MXU operands with f32 accumulation -> loosened tolerance vs f32 ref.
    for o in (out, out_banded):
        err = float(jnp.max(jnp.abs(o - ref)))
        assert jnp.allclose(o, ref, atol=1e-1, rtol=1e-1), err

    print("KERNEL_OK")
</pallas_src>

<mosaic_0001>
module attributes {stable_mosaic.version = 11 : i64} {
  func.func @_fused_forward_kernel(%arg0: i32, %arg1: i32, %arg2: memref<1x1x272x64xf32, #tpu.memory_space<vmem>>, %arg3: memref<64x256xbf16, #tpu.memory_space<vmem>>, %arg4: memref<1x256xf32, #tpu.memory_space<vmem>>, %arg5: memref<256x128xbf16, #tpu.memory_space<vmem>>, %arg6: memref<1x128xf32, #tpu.memory_space<vmem>>, %arg7: memref<128x128xbf16, #tpu.memory_space<vmem>>, %arg8: memref<256x128xbf16, #tpu.memory_space<vmem>>, %arg9: memref<256x128xbf16, #tpu.memory_space<vmem>>, %arg10: memref<512x128xbf16, #tpu.memory_space<vmem>>, %arg11: memref<1x128xf32, #tpu.memory_space<vmem>>, %arg12: memref<128x256xbf16, #tpu.memory_space<vmem>>, %arg13: memref<1x256xf32, #tpu.memory_space<vmem>>, %arg14: memref<1x1x64x128xf32, #tpu.memory_space<vmem>>) attributes {dimension_semantics = [#tpu.dimension_semantics<parallel>, #tpu.dimension_semantics<parallel>], iteration_bounds = array<i64: 2, 1>, scalar_prefetch = 0 : i64, scratch_operands = 0 : i64, tpu.core_type = #tpu.core_type<tc>, window_params = [{transform_indices = @transform_0, window_bounds = array<i64: 1, 1, 272, 64>}, {pipeline_mode = #tpu.pipeline_mode<synchronous>, transform_indices = @transform_1, window_bounds = array<i64: 64, 256>}, {pipeline_mode = #tpu.pipeline_mode<synchronous>, transform_indices = @transform_2, window_bounds = array<i64: 1, 256>}, {pipeline_mode = #tpu.pipeline_mode<synchronous>, transform_indices = @transform_3, window_bounds = array<i64: 256, 128>}, {pipeline_mode = #tpu.pipeline_mode<synchronous>, transform_indices = @transform_4, window_bounds = array<i64: 1, 128>}, {pipeline_mode = #tpu.pipeline_mode<synchronous>, transform_indices = @transform_5, window_bounds = array<i64: 128, 128>}, {pipeline_mode = #tpu.pipeline_mode<synchronous>, transform_indices = @transform_6, window_bounds = array<i64: 256, 128>}, {pipeline_mode = #tpu.pipeline_mode<synchronous>, transform_indices = @transform_7, window_bounds = array<i64: 256, 128>}, {pipeline_mode = #tpu.pipeline_mode<synchronous>, transform_indices = @transform_8, window_bounds = array<i64: 512, 128>}, {pipeline_mode = #tpu.pipeline_mode<synchronous>, transform_indices = @transform_9, window_bounds = array<i64: 1, 128>}, {pipeline_mode = #tpu.pipeline_mode<synchronous>, transform_indices = @transform_10, window_bounds = array<i64: 128, 256>}, {pipeline_mode = #tpu.pipeline_mode<synchronous>, transform_indices = @transform_11, window_bounds = array<i64: 1, 256>}, {transform_indices = @transform_12, window_bounds = array<i64: 1, 1, 64, 128>}]} {
    %c0 = arith.constant 0 : index
    %c0_0 = arith.constant 0 : index
    %c0_1 = arith.constant 0 : index
    %c0_2 = arith.constant 0 : index
    %0 = vector.load %arg2[%c0, %c0_0, %c0_1, %c0_2] : memref<1x1x272x64xf32, #tpu.memory_space<vmem>>, vector<1x1x272x64xf32>
    %1 = vector.shape_cast %0 : vector<1x1x272x64xf32> to vector<272x64xf32>
    %cst = arith.constant 0.000000e+00 : f32
    %cst_3 = arith.constant 6.000000e+00 : f32
    %2 = vector.broadcast %cst : f32 to vector<272x64xf32>
    %3 = arith.maximumf %2, %1 : vector<272x64xf32>
    %4 = vector.broadcast %cst_3 : f32 to vector<272x64xf32>
    %5 = arith.minimumf %4, %3 : vector<272x64xf32>
    %6 = arith.truncf %5 : vector<272x64xf32> to vector<272x64xbf16>
    %c0_4 = arith.constant 0 : index
    %c0_5 = arith.constant 0 : index
    %7 = vector.load %arg3[%c0_4, %c0_5] : memref<64x256xbf16, #tpu.memory_space<vmem>>, vector<64x256xbf16>
    %cst_6 = arith.constant dense<0.000000e+00> : vector<272x256xf32>
    %8 = tpu.matmul %6, %7, %cst_6 {dimension_numbers = #tpu.dot_dimension_numbers<[1], [0], [0], [1], [0, 0, 1, 1], [], []>} : vector<272x64xbf16>, vector<64x256xbf16>, vector<272x256xf32> -> vector<272x256xf32>
    %c0_7 = arith.constant 0 : index
    %c0_8 = arith.constant 0 : index
    %9 = vector.load %arg4[%c0_7, %c0_8] : memref<1x256xf32, #tpu.memory_space<vmem>>, vector<1x256xf32>
    %10 = vector.broadcast %9 : vector<1x256xf32> to vector<272x256xf32>
    %11 = arith.addf %8, %10 : vector<272x256xf32>
    %cst_9 = arith.constant 0.000000e+00 : f32
    %cst_10 = arith.constant 6.000000e+00 : f32
    %12 = vector.broadcast %cst_9 : f32 to vector<272x256xf32>
    %13 = arith.maximumf %12, %11 : vector<272x256xf32>
    %14 = vector.broadcast %cst_10 : f32 to vector<272x256xf32>
    %15 = arith.minimumf %14, %13 : vector<272x256xf32>
    %16 = arith.truncf %15 : vector<272x256xf32> to vector<272x256xbf16>
    %c0_11 = arith.constant 0 : index
    %c0_12 = arith.constant 0 : index
    %17 = vector.load %arg5[%c0_11, %c0_12] : memref<256x128xbf16, #tpu.memory_space<vmem>>, vector<256x128xbf16>
    %cst_13 = arith.constant dense<0.000000e+00> : vector<272x128xf32>
    %18 = tpu.matmul %16, %17, %cst_13 {dimension_numbers = #tpu.dot_dimension_numbers<[1], [0], [0], [1], [0, 0, 1, 1], [], []>} : vector<272x256xbf16>, vector<256x128xbf16>, vector<272x128xf32> -> vector<272x128xf32>
    %c0_14 = arith.constant 0 : index
    %c0_15 = arith.constant 0 : index
    %19 = vector.load %arg6[%c0_14, %c0_15] : memref<1x128xf32, #tpu.memory_space<vmem>>, vector<1x128xf32>
    %20 = vector.broadcast %19 : vector<1x128xf32> to vector<272x128xf32>
    %21 = arith.addf %18, %20 : vector<272x128xf32>
    %cst_16 = arith.constant 0.000000e+00 : f32
    %cst_17 = arith.constant 6.000000e+00 : f32
    %22 = vector.broadcast %cst_16 : f32 to vector<272x128xf32>
    %23 = arith.maximumf %22, %21 : vector<272x128xf32>
    %24 = vector.broadcast %cst_17 : f32 to vector<272x128xf32>
    %25 = arith.minimumf %24, %23 : vector<272x128xf32>
    %26 = arith.truncf %25 : vector<272x128xf32> to vector<272x128xbf16>
    %27 = vector.extract_strided_slice %26 {offsets = [0, 0], sizes = [64, 128], strides = [1, 1]} : vector<272x128xbf16> to vector<64x128xbf16>
    %28 = vector.shape_cast %27 : vector<64x128xbf16> to vector<8x8x128xbf16>
    %29 = vector.extract_strided_slice %26 {offsets = [64, 0], sizes = [64, 128], strides = [1, 1]} : vector<272x128xbf16> to vector<64x128xbf16>
    %30 = vector.shape_cast %29 : vector<64x128xbf16> to vector<8x8x128xbf16>
    %31 = vector.extract_strided_slice %26 {offsets = [128, 0], sizes = [72, 128], strides = [1, 1]} : vector<272x128xbf16> to vector<72x128xbf16>
    %32 = vector.shape_cast %31 : vector<72x128xbf16> to vector<9x8x128xbf16>
    %33 = vector.extract_strided_slice %26 {offsets = [200, 0], sizes = [72, 128], strides = [1, 1]} : vector<272x128xbf16> to vector<72x128xbf16>
    %34 = vector.shape_cast %33 : vector<72x128xbf16> to vector<9x8x128xbf16>
    %35 = tpu.iota {dimensions = array<i32: 0>} : vector<9x8x128xi32>
    %c0_i32 = arith.constant 0 : i32
    %36 = vector.broadcast %c0_i32 : i32 to vector<9x8x128xi32>
    %37 = arith.cmpi sgt, %35, %36 : vector<9x8x128xi32>
    %c0_i32_18 = arith.constant 0 : i32
    %38 = arith.cmpi sgt, %arg1, %c0_i32_18 : i32
    %39 = vector.broadcast %38 : i1 to vector<9x8x128xi1>
    %40 = arith.ori %37, %39 : vector<9x8x128xi1>
    %cst_19 = arith.constant 0.000000e+00 : bf16
    %41 = vector.broadcast %cst_19 : bf16 to vector<9x8x128xbf16>
    %42 = arith.select %40, %32, %41 : vector<9x8x128xi1>, vector<9x8x128xbf16>
    %cst_20 = arith.constant 0.000000e+00 : bf16
    %43 = vector.broadcast %cst_20 : bf16 to vector<9x8x128xbf16>
    %44 = arith.select %40, %34, %43 : vector<9x8x128xi1>, vector<9x8x128xbf16>
    %cst_21 = arith.constant 0.000000e+00 : bf16
    %45 = vector.broadcast %cst_21 : bf16 to vector<8x1x128xbf16>
    %46 = tpu.concatenate %45, %30 in 1 : vector<8x1x128xbf16>, vector<8x8x128xbf16> -> vector<8x9x128xbf16>
    %cst_22 = arith.constant 0.000000e+00 : bf16
    %47 = vector.broadcast %cst_22 : bf16 to vector<9x1x128xbf16>
    %48 = tpu.concatenate %47, %44 in 1 : vector<9x1x128xbf16>, vector<9x8x128xbf16> -> vector<9x9x128xbf16>
    %49 = vector.extract_strided_slice %46 {offsets = [0, 0, 0], sizes = [8, 8, 128], strides = [1, 1, 1]} : vector<8x9x128xbf16> to vector<8x8x128xbf16>
    %50 = vector.extract_strided_slice %46 {offsets = [0, 1, 0], sizes = [8, 8, 128], strides = [1, 1, 1]} : vector<8x9x128xbf16> to vector<8x8x128xbf16>
    %51 = tpu.concatenate %49, %50 in 2 : vector<8x8x128xbf16>, vector<8x8x128xbf16> -> vector<8x8x256xbf16>
    %52 = vector.extract_strided_slice %42 {offsets = [0, 0, 0], sizes = [8, 8, 128], strides = [1, 1, 1]} : vector<9x8x128xbf16> to vector<8x8x128xbf16>
    %53 = vector.extract_strided_slice %42 {offsets = [1, 0, 0], sizes = [8, 8, 128], strides = [1, 1, 1]} : vector<9x8x128xbf16> to vector<8x8x128xbf16>
    %54 = tpu.concatenate %52, %53 in 2 : vector<8x8x128xbf16>, vector<8x8x128xbf16> -> vector<8x8x256xbf16>
    %55 = vector.extract_strided_slice %48 {offsets = [0, 0, 0], sizes = [8, 8, 128], strides = [1, 1, 1]} : vector<9x9x128xbf16> to vector<8x8x128xbf16>
    %56 = vector.extract_strided_slice %48 {offsets = [0, 1, 0], sizes = [8, 8, 128], strides = [1, 1, 1]} : vector<9x9x128xbf16> to vector<8x8x128xbf16>
    %57 = vector.extract_strided_slice %48 {offsets = [1, 0, 0], sizes = [8, 8, 128], strides = [1, 1, 1]} : vector<9x9x128xbf16> to vector<8x8x128xbf16>
    %58 = vector.extract_strided_slice %48 {offsets = [1, 1, 0], sizes = [8, 8, 128], strides = [1, 1, 1]} : vector<9x9x128xbf16> to vector<8x8x128xbf16>
    %59 = tpu.concatenate %55, %56, %57, %58 in 2 : vector<8x8x128xbf16>, vector<8x8x128xbf16>, vector<8x8x128xbf16>, vector<8x8x128xbf16> -> vector<8x8x512xbf16>
    %60 = vector.shape_cast %28 : vector<8x8x128xbf16> to vector<64x128xbf16>
    %c0_23 = arith.constant 0 : index
    %c0_24 = arith.constant 0 : index
    %61 = vector.load %arg7[%c0_23, %c0_24] : memref<128x128xbf16, #tpu.memory_space<vmem>>, vector<128x128xbf16>
    %cst_25 = arith.constant dense<0.000000e+00> : vector<64x128xf32>
    %62 = tpu.matmul %60, %61, %cst_25 {dimension_numbers = #tpu.dot_dimension_numbers<[1], [0], [0], [1], [0, 0, 1, 1], [], []>} : vector<64x128xbf16>, vector<128x128xbf16>, vector<64x128xf32> -> vector<64x128xf32>
    %63 = vector.shape_cast %51 : vector<8x8x256xbf16> to vector<64x256xbf16>
    %c0_26 = arith.constant 0 : index
    %c0_27 = arith.constant 0 : index
    %64 = vector.load %arg8[%c0_26, %c0_27] : memref<256x128xbf16, #tpu.memory_space<vmem>>, vector<256x128xbf16>
    %cst_28 = arith.constant dense<0.000000e+00> : vector<64x128xf32>
    %65 = tpu.matmul %63, %64, %cst_28 {dimension_numbers = #tpu.dot_dimension_numbers<[1], [0], [0], [1], [0, 0, 1, 1], [], []>} : vector<64x256xbf16>, vector<256x128xbf16>, vector<64x128xf32> -> vector<64x128xf32>
    %66 = arith.addf %62, %65 : vector<64x128xf32>
    %67 = vector.shape_cast %54 : vector<8x8x256xbf16> to vector<64x256xbf16>
    %c0_29 = arith.constant 0 : index
    %c0_30 = arith.constant 0 : index
    %68 = vector.load %arg9[%c0_29, %c0_30] : memref<256x128xbf16, #tpu.memory_space<vmem>>, vector<256x128xbf16>
    %cst_31 = arith.constant dense<0.000000e+00> : vector<64x128xf32>
    %69 = tpu.matmul %67, %68, %cst_31 {dimension_numbers = #tpu.dot_dimension_numbers<[1], [0], [0], [1], [0, 0, 1, 1], [], []>} : vector<64x256xbf16>, vector<256x128xbf16>, vector<64x128xf32> -> vector<64x128xf32>
    %70 = arith.addf %66, %69 : vector<64x128xf32>
    %71 = vector.shape_cast %59 : vector<8x8x512xbf16> to vector<64x512xbf16>
    %c0_32 = arith.constant 0 : index
    %c0_33 = arith.constant 0 : index
    %72 = vector.load %arg10[%c0_32, %c0_33] : memref<512x128xbf16, #tpu.memory_space<vmem>>, vector<512x128xbf16>
    %cst_34 = arith.constant dense<0.000000e+00> : vector<64x128xf32>
    %73 = tpu.matmul %71, %72, %cst_34 {dimension_numbers = #tpu.dot_dimension_numbers<[1], [0], [0], [1], [0, 0, 1, 1], [], []>} : vector<64x512xbf16>, vector<512x128xbf16>, vector<64x128xf32> -> vector<64x128xf32>
    %74 = arith.addf %70, %73 : vector<64x128xf32>
    %c0_35 = arith.constant 0 : index
    %c0_36 = arith.constant 0 : index
    %75 = vector.load %arg11[%c0_35, %c0_36] : memref<1x128xf32, #tpu.memory_space<vmem>>, vector<1x128xf32>
    %76 = vector.broadcast %75 : vector<1x128xf32> to vector<64x128xf32>
    %77 = arith.addf %74, %76 : vector<64x128xf32>
    %cst_37 = arith.constant 0.000000e+00 : f32
    %cst_38 = arith.constant 6.000000e+00 : f32
    %78 = vector.broadcast %cst_37 : f32 to vector<64x128xf32>
    %79 = arith.maximumf %78, %77 : vector<64x128xf32>
    %80 = vector.broadcast %cst_38 : f32 to vector<64x128xf32>
    %81 = arith.minimumf %80, %79 : vector<64x128xf32>
    %82 = arith.truncf %81 : vector<64x128xf32> to vector<64x128xbf16>
    %c0_39 = arith.constant 0 : index
    %c0_40 = arith.constant 0 : index
    %83 = vector.load %arg12[%c0_39, %c0_40] : memref<128x256xbf16, #tpu.memory_space<vmem>>, vector<128x256xbf16>
    %cst_41 = arith.constant dense<0.000000e+00> : vector<64x256xf32>
    %84 = tpu.matmul %82, %83, %cst_41 {dimension_numbers = #tpu.dot_dimension_numbers<[1], [0], [0], [1], [0, 0, 1, 1], [], []>} : vector<64x128xbf16>, vector<128x256xbf16>, vector<64x256xf32> -> vector<64x256xf32>
    %c0_42 = arith.constant 0 : index
    %c0_43 = arith.constant 0 : index
    %85 = vector.load %arg13[%c0_42, %c0_43] : memref<1x256xf32, #tpu.memory_space<vmem>>, vector<1x256xf32>
    %86 = vector.broadcast %85 : vector<1x256xf32> to vector<64x256xf32>
    %87 = arith.addf %84, %86 : vector<64x256xf32>
    %cst_44 = arith.constant 0.000000e+00 : f32
    %cst_45 = arith.constant 6.000000e+00 : f32
    %88 = vector.broadcast %cst_44 : f32 to vector<64x256xf32>
    %89 = arith.maximumf %88, %87 : vector<64x256xf32>
    %90 = vector.broadcast %cst_45 : f32 to vector<64x256xf32>
    %91 = arith.minimumf %90, %89 : vector<64x256xf32>
    %92 = arith.addf %91, %91 : vector<64x256xf32>
    %93 = arith.truncf %92 : vector<64x256xf32> to vector<64x256xbf16>
    %c0_46 = arith.constant 0 : index
    %c0_47 = arith.constant 0 : index
    %94 = vector.load %arg5[%c0_46, %c0_47] : memref<256x128xbf16, #tpu.memory_space<vmem>>, vector<256x128xbf16>
    %cst_48 = arith.constant dense<0.000000e+00> : vector<64x128xf32>
    %95 = tpu.matmul %93, %94, %cst_48 {dimension_numbers = #tpu.dot_dimension_numbers<[1], [0], [0], [1], [0, 0, 1, 1], [], []>} : vector<64x256xbf16>, vector<256x128xbf16>, vector<64x128xf32> -> vector<64x128xf32>
    %c0_49 = arith.constant 0 : index
    %c0_50 = arith.constant 0 : index
    %96 = vector.load %arg6[%c0_49, %c0_50] : memref<1x128xf32, #tpu.memory_space<vmem>>, vector<1x128xf32>
    %97 = vector.broadcast %96 : vector<1x128xf32> to vector<64x128xf32>
    %98 = arith.addf %95, %97 : vector<64x128xf32>
    %cst_51 = arith.constant 0.000000e+00 : f32
    %cst_52 = arith.constant 6.000000e+00 : f32
    %99 = vector.broadcast %cst_51 : f32 to vector<64x128xf32>
    %100 = arith.maximumf %99, %98 : vector<64x128xf32>
    %101 = vector.broadcast %cst_52 : f32 to vector<64x128xf32>
    %102 = arith.minimumf %101, %100 : vector<64x128xf32>
    %c0_53 = arith.constant 0 : index
    %c0_54 = arith.constant 0 : index
    %c0_55 = arith.constant 0 : index
    %c0_56 = arith.constant 0 : index
    %103 = vector.load %arg14[%c0_53, %c0_54, %c0_55, %c0_56] : memref<1x1x64x128xf32, #tpu.memory_space<vmem>>, vector<1x1x64x128xf32>
    %104 = vector.shape_cast %103 : vector<1x1x64x128xf32> to vector<64x128xf32>
    %105 = vector.shape_cast %102 : vector<64x128xf32> to vector<1x1x64x128xf32>
    tpu.vector_store %arg14[%c0_53, %c0_54, %c0_55, %c0_56], %105 {strides = array<i32>} : memref<1x1x64x128xf32, #tpu.memory_space<vmem>>, vector<1x1x64x128xf32>,
    return
  }
  func.func @transform_0(%arg0: i32, %arg1: i32) -> (i32, i32, i32, i32) {
    %c0_i32 = arith.constant 0 : i32
    %c0_i32_0 = arith.constant 0 : i32
    %c0_i32_1 = arith.constant 0 : i32
    return %arg0, %arg1, %c0_i32, %c0_i32_0 : i32, i32, i32, i32
  }
  func.func @transform_1(%arg0: i32, %arg1: i32) -> (i32, i32) {
    %c0_i32 = arith.constant 0 : i32
    %c0_i32_0 = arith.constant 0 : i32
    %c0_i32_1 = arith.constant 0 : i32
    return %c0_i32, %c0_i32_0 : i32, i32
  }
  func.func @transform_2(%arg0: i32, %arg1: i32) -> (i32, i32) {
    %c0_i32 = arith.constant 0 : i32
    %c0_i32_0 = arith.constant 0 : i32
    %c0_i32_1 = arith.constant 0 : i32
    return %c0_i32, %c0_i32_0 : i32, i32
  }
  func.func @transform_3(%arg0: i32, %arg1: i32) -> (i32, i32) {
    %c0_i32 = arith.constant 0 : i32
    %c0_i32_0 = arith.constant 0 : i32
    %c0_i32_1 = arith.constant 0 : i32
    return %c0_i32, %c0_i32_0 : i32, i32
  }
  func.func @transform_4(%arg0: i32, %arg1: i32) -> (i32, i32) {
    %c0_i32 = arith.constant 0 : i32
    %c0_i32_0 = arith.constant 0 : i32
    %c0_i32_1 = arith.constant 0 : i32
    return %c0_i32, %c0_i32_0 : i32, i32
  }
  func.func @transform_5(%arg0: i32, %arg1: i32) -> (i32, i32) {
    %c0_i32 = arith.constant 0 : i32
    %c0_i32_0 = arith.constant 0 : i32
    %c0_i32_1 = arith.constant 0 : i32
    return %c0_i32, %c0_i32_0 : i32, i32
  }
  func.func @transform_6(%arg0: i32, %arg1: i32) -> (i32, i32) {
    %c0_i32 = arith.constant 0 : i32
    %c0_i32_0 = arith.constant 0 : i32
    %c0_i32_1 = arith.constant 0 : i32
    return %c0_i32, %c0_i32_0 : i32, i32
  }
  func.func @transform_7(%arg0: i32, %arg1: i32) -> (i32, i32) {
    %c0_i32 = arith.constant 0 : i32
    %c0_i32_0 = arith.constant 0 : i32
    %c0_i32_1 = arith.constant 0 : i32
    return %c0_i32, %c0_i32_0 : i32, i32
  }
  func.func @transform_8(%arg0: i32, %arg1: i32) -> (i32, i32) {
    %c0_i32 = arith.constant 0 : i32
    %c0_i32_0 = arith.constant 0 : i32
    %c0_i32_1 = arith.constant 0 : i32
    return %c0_i32, %c0_i32_0 : i32, i32
  }
  func.func @transform_9(%arg0: i32, %arg1: i32) -> (i32, i32) {
    %c0_i32 = arith.constant 0 : i32
    %c0_i32_0 = arith.constant 0 : i32
    %c0_i32_1 = arith.constant 0 : i32
    return %c0_i32, %c0_i32_0 : i32, i32
  }
  func.func @transform_10(%arg0: i32, %arg1: i32) -> (i32, i32) {
    %c0_i32 = arith.constant 0 : i32
    %c0_i32_0 = arith.constant 0 : i32
    %c0_i32_1 = arith.constant 0 : i32
    return %c0_i32, %c0_i32_0 : i32, i32
  }
  func.func @transform_11(%arg0: i32, %arg1: i32) -> (i32, i32) {
    %c0_i32 = arith.constant 0 : i32
    %c0_i32_0 = arith.constant 0 : i32
    %c0_i32_1 = arith.constant 0 : i32
    return %c0_i32, %c0_i32_0 : i32, i32
  }
  func.func @transform_12(%arg0: i32, %arg1: i32) -> (i32, i32, i32, i32) {
    %c0_i32 = arith.constant 0 : i32
    %c0_i32_0 = arith.constant 0 : i32
    %c0_i32_1 = arith.constant 0 : i32
    return %arg0, %arg1, %c0_i32, %c0_i32_0 : i32, i32, i32, i32
  }
}

</mosaic_0001>

<llo_original>
// kernel: model_forward.1
$region0: #{model_forward.1}
  #allocation0 [shape = 'u32[]', space=smem, size = 0x4, offset = 0x4, fixed_abs, tag = 'smem constant byte address 0x4 - core index']
  #allocation1 [shape = 'u32[144,128]{1,0:T(1,128)}', space=vmem, size = 0x12000, scoped, tag = 'internal scratch']
  %s0 = inlined_call_operand.vmem [shape: f32[2,1,272,64], index: 0, kind: input, shape index: {}]
  %s1 = inlined_call_operand.vmem [shape: bf16[64,256], index: 1, kind: input, shape index: {}]
  %s2 = inlined_call_operand.vmem [shape: f32[1,256], index: 2, kind: input, shape index: {}]
  %s3 = inlined_call_operand.vmem [shape: bf16[256,128], index: 3, kind: input, shape index: {}]
  %s4 = inlined_call_operand.vmem [shape: f32[1,128], index: 4, kind: input, shape index: {}]
  %s5 = inlined_call_operand.vmem [shape: bf16[128,128], index: 5, kind: input, shape index: {}]
  %s6 = inlined_call_operand.vmem [shape: bf16[256,128], index: 6, kind: input, shape index: {}]
  %s7 = inlined_call_operand.vmem [shape: bf16[256,128], index: 7, kind: input, shape index: {}]
  %s8 = inlined_call_operand.vmem [shape: bf16[512,128], index: 8, kind: input, shape index: {}]
  %s9 = inlined_call_operand.vmem [shape: f32[1,128], index: 9, kind: input, shape index: {}]
  %s10 = inlined_call_operand.vmem [shape: bf16[128,256], index: 10, kind: input, shape index: {}]
  %s11 = inlined_call_operand.vmem [shape: f32[1,256], index: 11, kind: input, shape index: {}]
  %s12 = inlined_call_operand.hbm [shape: f32[2,1,64,128], index: 12, kind: output, shape index: {}]
  %s13 = sld [smem:[#allocation0]]
  $region81: #{model_forward.1} parent=0
    _
  %s15 = ssub.s32 1, %s13
  %s16 = scalar_select 0, %s15, %s13
  $region1: #{model_forward.1} parent=0
    #allocation2 [shape = 'u8[65536]{0}', space=vmem, size = 0x10000, scoped, tag = 'output window, operand 0']
    #allocation3 [shape = 's32[2]{0}', space=sflag, size = 0x8, scoped, tag = 'scoped memory for model_forward.1']
    %17 = vsyncpa [#allocation3], 0
    %s18 = scalar_lea.sflag [#allocation3], 1
    %19 = vsyncpa %s18, 0
    loop: start=0, step=1, limit=4
    $region2: #{model_forward.1} parent=1 // loop_pre_header
      _
    $region3: #{model_forward.1} parent=1 // loop_header
      %s21 = sphi 0, %s25
      %p22 = scmp.ge.s32.totalorder %s21, 4
      %s28 = sphi 0, %s40
      %s29 = sphi 0, %s36
      %s30 = sphi 0, %s28
      %s31 = sphi 0, %s29
      %s32 = sphi 0, %s30
      %s33 = sphi 0, %s31
      %s45 = sphi 0, %s47
      %s48 = sphi 0, %s45
      %s49 = sphi 0, %s48
      %s65 = sphi 0, %s49
      %s69 = sphi 0, %s69
      %s71 = sphi 0, %s69
      %s72 = sphi 0, %s71
      %s86 = sphi 0, %s72
      %s90 = sphi 0, %s90
      %s92 = sphi 0, %s90
      %s93 = sphi 0, %s92
      %s107 = sphi 0, %s93
      %s111 = sphi 0, %s111
      %s113 = sphi 0, %s111
      %s114 = sphi 0, %s113
      %s128 = sphi 0, %s114
      %s132 = sphi 0, %s132
      %s134 = sphi 0, %s132
      %s135 = sphi 0, %s134
      %s149 = sphi 0, %s135
      %s153 = sphi 0, %s153
      %s155 = sphi 0, %s153
      %s156 = sphi 0, %s155
      %s170 = sphi 0, %s156
      %s174 = sphi 0, %s174
      %s176 = sphi 0, %s174
      %s177 = sphi 0, %s176
      %s191 = sphi 0, %s177
      %s195 = sphi 0, %s195
      %s197 = sphi 0, %s195
      %s198 = sphi 0, %s197
      %s212 = sphi 0, %s198
      %s216 = sphi 0, %s216
      %s218 = sphi 0, %s216
      %s219 = sphi 0, %s218
      %s233 = sphi 0, %s219
      %s237 = sphi 0, %s237
      %s239 = sphi 0, %s237
      %s240 = sphi 0, %s239
      %s254 = sphi 0, %s240
      %s258 = sphi 0, %s258
      %s260 = sphi 0, %s258
      %s261 = sphi 0, %s260
      %s275 = sphi 0, %s261
      %s279 = sphi 0, %s279
      %s281 = sphi 0, %s279
      %s282 = sphi 0, %s281
      %s296 = sphi 0, %s282
      %s304 = sphi 0, %s306
      %s307 = sphi 0, %s304
      %s308 = sphi 0, %s307
      %s324 = sphi 0, %s308
    $region4: #{model_forward.1} parent=1 // loop_header_branch
      %24 = sbr.rel (%p22) target = $region8
    $region5: #{model_forward.1} parent=1 // loop_body
      %s26 = ssub.s32 %s21, 1
      %s27 = ssub.s32 %s21, 2
      %s34 = sadd.s32 1, %s29
      %p35 = scmp.ge.s32.totalorder %s34, 1
      %s36 = scalar_select %p35, 0, %s34
      %s37 = sadd.s32 1, %s28
      %s38 = scalar_select %p35, %s37, %s28
      %p39 = scmp.ge.s32.totalorder %s38, 2
      %s40 = scalar_select %p39, 0, %s38
      %s41 = ssub.s32 %s28, %s40
      %s42 = ssub.s32 %s29, %s36
      %s43 = sor.u32 %s41, %s42
      %p44 = scmp.eq.s32.totalorder %s43, 0
      %s46 = sadd.s32 %s45, 1
      %s47 = scalar_select %p44, %s45, %s46
      %p50 = pneg %p44
      %p51 = scmp.eq.s32.totalorder %s21, 1
      %p52 = por %p50, %p51
      %p53 = scmp.ne.s32.totalorder %s45, %s48
      %p54 = scmp.eq.s32.totalorder %s21, 0
      %p55 = por %p53, %p54
      %p56 = scmp.ne.s32.totalorder %s45, %s48
      %p57 = scmp.eq.s32.totalorder %s26, 1
      %p58 = por %p56, %p57
      %p59 = scmp.ne.s32.totalorder %s48, %s49
      %p60 = scmp.eq.s32.totalorder %s26, 0
      %p61 = por %p59, %p60
      %p62 = scmp.ne.s32.totalorder %s48, %s49
      %p63 = scmp.eq.s32.totalorder %s27, 1
      %p64 = por %p62, %p63
      %p66 = scmp.ne.s32.totalorder %s49, %s65
      %p67 = scmp.eq.s32.totalorder %s27, 0
      %p68 = por %p66, %p67
      %s70 = sadd.s32 %s69, 1
      %p73 = scmp.eq.s32.totalorder %s21, 1
      %p74 = scmp.ne.s32.totalorder %s69, %s71
      %p75 = scmp.eq.s32.totalorder %s21, 0
      %p76 = por %p74, %p75
      %p77 = scmp.ne.s32.totalorder %s69, %s71
      %p78 = scmp.eq.s32.totalorder %s26, 1
      %p79 = por %p77, %p78
      %p80 = scmp.ne.s32.totalorder %s71, %s72
      %p81 = scmp.eq.s32.totalorder %s26, 0
      %p82 = por %p80, %p81
      %p83 = scmp.ne.s32.totalorder %s71, %s72
      %p84 = scmp.eq.s32.totalorder %s27, 1
      %p85 = por %p83, %p84
      %p87 = scmp.ne.s32.totalorder %s72, %s86
      %p88 = scmp.eq.s32.totalorder %s27, 0
      %p89 = por %p87, %p88
      %s91 = sadd.s32 %s90, 1
      %p94 = scmp.eq.s32.totalorder %s21, 1
      %p95 = scmp.ne.s32.totalorder %s90, %s92
      %p96 = scmp.eq.s32.totalorder %s21, 0
      %p97 = por %p95, %p96
      %p98 = scmp.ne.s32.totalorder %s90, %s92
      %p99 = scmp.eq.s32.totalorder %s26, 1
      %p100 = por %p98, %p99
      %p101 = scmp.ne.s32.totalorder %s92, %s93
      %p102 = scmp.eq.s32.totalorder %s26, 0
      %p103 = por %p101, %p102
      %p104 = scmp.ne.s32.totalorder %s92, %s93
      %p105 = scmp.eq.s32.totalorder %s27, 1
      %p106 = por %p104, %p105
      %p108 = scmp.ne.s32.totalorder %s93, %s107
      %p109 = scmp.eq.s32.totalorder %s27, 0
      %p110 = por %p108, %p109
      %s112 = sadd.s32 %s111, 1
      %p115 = scmp.eq.s32.totalorder %s21, 1
      %p116 = scmp.ne.s32.totalorder %s111, %s113
      %p117 = scmp.eq.s32.totalorder %s21, 0
      %p118 = por %p116, %p117
      %p119 = scmp.ne.s32.totalorder %s111, %s113
      %p120 = scmp.eq.s32.totalorder %s26, 1
      %p121 = por %p119, %p120
      %p122 = scmp.ne.s32.totalorder %s113, %s114
      %p123 = scmp.eq.s32.totalorder %s26, 0
      %p124 = por %p122, %p123
      %p125 = scmp.ne.s32.totalorder %s113, %s114
      %p126 = scmp.eq.s32.totalorder %s27, 1
      %p127 = por %p125, %p126
      %p129 = scmp.ne.s32.totalorder %s114, %s128
      %p130 = scmp.eq.s32.totalorder %s27, 0
      %p131 = por %p129, %p130
      %s133 = sadd.s32 %s132, 1
      %p136 = scmp.eq.s32.totalorder %s21, 1
      %p137 = scmp.ne.s32.totalorder %s132, %s134
      %p138 = scmp.eq.s32.totalorder %s21, 0
      %p139 = por %p137, %p138
      %p140 = scmp.ne.s32.totalorder %s132, %s134
      %p141 = scmp.eq.s32.totalorder %s26, 1
      %p142 = por %p140, %p141
      %p143 = scmp.ne.s32.totalorder %s134, %s135
      %p144 = scmp.eq.s32.totalorder %s26, 0
      %p145 = por %p143, %p144
      %p146 = scmp.ne.s32.totalorder %s134, %s135
      %p147 = scmp.eq.s32.totalorder %s27, 1
      %p148 = por %p146, %p147
      %p150 = scmp.ne.s32.totalorder %s135, %s149
      %p151 = scmp.eq.s32.totalorder %s27, 0
      %p152 = por %p150, %p151
      %s154 = sadd.s32 %s153, 1
      %p157 = scmp.eq.s32.totalorder %s21, 1
      %p158 = scmp.ne.s32.totalorder %s153, %s155
      %p159 = scmp.eq.s32.totalorder %s21, 0
      %p160 = por %p158, %p159
      %p161 = scmp.ne.s32.totalorder %s153, %s155
      %p162 = scmp.eq.s32.totalorder %s26, 1
      %p163 = por %p161, %p162
      %p164 = scmp.ne.s32.totalorder %s155, %s156
      %p165 = scmp.eq.s32.totalorder %s26, 0
      %p166 = por %p164, %p165
      %p167 = scmp.ne.s32.totalorder %s155, %s156
      %p168 = scmp.eq.s32.totalorder %s27, 1
      %p169 = por %p167, %p168
      %p171 = scmp.ne.s32.totalorder %s156, %s170
      %p172 = scmp.eq.s32.totalorder %s27, 0
      %p173 = por %p171, %p172
      %s175 = sadd.s32 %s174, 1
      %p178 = scmp.eq.s32.totalorder %s21, 1
      %p179 = scmp.ne.s32.totalorder %s174, %s176
      %p180 = scmp.eq.s32.totalorder %s21, 0
      %p181 = por %p179, %p180
      %p182 = scmp.ne.s32.totalorder %s174, %s176
      %p183 = scmp.eq.s32.totalorder %s26, 1
      %p184 = por %p182, %p183
      %p185 = scmp.ne.s32.totalorder %s176, %s177
      %p186 = scmp.eq.s32.totalorder %s26, 0
      %p187 = por %p185, %p186
      %p188 = scmp.ne.s32.totalorder %s176, %s177
      %p189 = scmp.eq.s32.totalorder %s27, 1
      %p190 = por %p188, %p189
      %p192 = scmp.ne.s32.totalorder %s177, %s191
      %p193 = scmp.eq.s32.totalorder %s27, 0
      %p194 = por %p192, %p193
      %s196 = sadd.s32 %s195, 1
      %p199 = scmp.eq.s32.totalorder %s21, 1
      %p200 = scmp.ne.s32.totalorder %s195, %s197
      %p201 = scmp.eq.s32.totalorder %s21, 0
      %p202 = por %p200, %p201
      %p203 = scmp.ne.s32.totalorder %s195, %s197
      %p204 = scmp.eq.s32.totalorder %s26, 1
      %p205 = por %p203, %p204
      %p206 = scmp.ne.s32.totalorder %s197, %s198
      %p207 = scmp.eq.s32.totalorder %s26, 0
      %p208 = por %p206, %p207
      %p209 = scmp.ne.s32.totalorder %s197, %s198
      %p210 = scmp.eq.s32.totalorder %s27, 1
      %p211 = por %p209, %p210
      %p213 = scmp.ne.s32.totalorder %s198, %s212
      %p214 = scmp.eq.s32.totalorder %s27, 0
      %p215 = por %p213, %p214
      %s217 = sadd.s32 %s216, 1
      %p220 = scmp.eq.s32.totalorder %s21, 1
      %p221 = scmp.ne.s32.totalorder %s216, %s218
      %p222 = scmp.eq.s32.totalorder %s21, 0
      %p223 = por %p221, %p222
      %p224 = scmp.ne.s32.totalorder %s216, %s218
      %p225 = scmp.eq.s32.totalorder %s26, 1
      %p226 = por %p224, %p225
      %p227 = scmp.ne.s32.totalorder %s218, %s219
      %p228 = scmp.eq.s32.totalorder %s26, 0
      %p229 = por %p227, %p228
      %p230 = scmp.ne.s32.totalorder %s218, %s219
      %p231 = scmp.eq.s32.totalorder %s27, 1
      %p232 = por %p230, %p231
      %p234 = scmp.ne.s32.totalorder %s219, %s233
      %p235 = scmp.eq.s32.totalorder %s27, 0
      %p236 = por %p234, %p235
      %s238 = sadd.s32 %s237, 1
      %p241 = scmp.eq.s32.totalorder %s21, 1
      %p242 = scmp.ne.s32.totalorder %s237, %s239
      %p243 = scmp.eq.s32.totalorder %s21, 0
      %p244 = por %p242, %p243
      %p245 = scmp.ne.s32.totalorder %s237, %s239
      %p246 = scmp.eq.s32.totalorder %s26, 1
      %p247 = por %p245, %p246
      %p248 = scmp.ne.s32.totalorder %s239, %s240
      %p249 = scmp.eq.s32.totalorder %s26, 0
      %p250 = por %p248, %p249
      %p251 = scmp.ne.s32.totalorder %s239, %s240
      %p252 = scmp.eq.s32.totalorder %s27, 1
      %p253 = por %p251, %p252
      %p255 = scmp.ne.s32.totalorder %s240, %s254
      %p256 = scmp.eq.s32.totalorder %s27, 0
      %p257 = por %p255, %p256
      %s259 = sadd.s32 %s258, 1
      %p262 = scmp.eq.s32.totalorder %s21, 1
      %p263 = scmp.ne.s32.totalorder %s258, %s260
      %p264 = scmp.eq.s32.totalorder %s21, 0
      %p265 = por %p263, %p264
      %p266 = scmp.ne.s32.totalorder %s258, %s260
      %p267 = scmp.eq.s32.totalorder %s26, 1
      %p268 = por %p266, %p267
      %p269 = scmp.ne.s32.totalorder %s260, %s261
      %p270 = scmp.eq.s32.totalorder %s26, 0
      %p271 = por %p269, %p270
      %p272 = scmp.ne.s32.totalorder %s260, %s261
      %p273 = scmp.eq.s32.totalorder %s27, 1
      %p274 = por %p272, %p273
      %p276 = scmp.ne.s32.totalorder %s261, %s275
      %p277 = scmp.eq.s32.totalorder %s27, 0
      %p278 = por %p276, %p277
      %s280 = sadd.s32 %s279, 1
      %p283 = scmp.eq.s32.totalorder %s21, 1
      %p284 = scmp.ne.s32.totalorder %s279, %s281
      %p285 = scmp.eq.s32.totalorder %s21, 0
      %p286 = por %p284, %p285
      %p287 = scmp.ne.s32.totalorder %s279, %s281
      %p288 = scmp.eq.s32.totalorder %s26, 1
      %p289 = por %p287, %p288
      %p290 = scmp.ne.s32.totalorder %s281, %s282
      %p291 = scmp.eq.s32.totalorder %s26, 0
      %p292 = por %p290, %p291
      %p293 = scmp.ne.s32.totalorder %s281, %s282
      %p294 = scmp.eq.s32.totalorder %s27, 1
      %p295 = por %p293, %p294
      %p297 = scmp.ne.s32.totalorder %s282, %s296
      %p298 = scmp.eq.s32.totalorder %s27, 0
      %p299 = por %p297, %p298
      %s300 = ssub.s32 %s28, %s40
      %s301 = ssub.s32 %s29, %s36
      %s302 = sor.u32 %s300, %s301
      %p303 = scmp.eq.s32.totalorder %s302, 0
      %s305 = sadd.s32 %s304, 1
      %s306 = scalar_select %p303, %s304, %s305
      %p309 = pneg %p303
      %p310 = scmp.eq.s32.totalorder %s21, 1
      %p311 = por %p309, %p310
      %p312 = scmp.ne.s32.totalorder %s304, %s307
      %p313 = scmp.eq.s32.totalorder %s21, 0
      %p314 = por %p312, %p313
      %p315 = scmp.ne.s32.totalorder %s304, %s307
      %p316 = scmp.eq.s32.totalorder %s26, 1
      %p317 = por %p315, %p316
      %p318 = scmp.ne.s32.totalorder %s307, %s308
      %p319 = scmp.eq.s32.totalorder %s26, 0
      %p320 = por %p318, %p319
      %p321 = scmp.ne.s32.totalorder %s307, %s308
      %p322 = scmp.eq.s32.totalorder %s27, 1
      %p323 = por %p321, %p322
      %p325 = scmp.ne.s32.totalorder %s308, %s324
      %p326 = scmp.eq.s32.totalorder %s27, 0
      %p327 = por %p325, %p326
      %p328 = scmp.le.s32.totalorder 1, %s21
      %p329 = scmp.lt.s32.totalorder %s21, 3
      %p330 = pnand %p328, %p329
      %p331 = pneg %p330
      // Predicated region
      $region9: #{model_forward.1} parent=5 // pred_check
        _
      $region10: #{model_forward.1} parent=5 // pred_check_branch
        %333 = sbr.rel (%p330) target = $region12
      $region11: #{model_forward.1} parent=5 // pred_region
        %s334 = ssub.s32 %s21, 1
        // Predicated region
        $region13: #{model_forward.1} parent=11 // pred_check
          %p335 = pneg %p82
        $region14: #{model_forward.1} parent=11 // pred_check_branch
          %337 = sbr.rel (%p335) target = $region16
        $region15: #{model_forward.1} parent=11 // pred_region
          _
        $region16: #{model_forward.1} parent=11 // pred_fallthru
          _
        // Predicated region
        $region17: #{model_forward.1} parent=11 // pred_check
          %p338 = pneg %p103
        $region18: #{model_forward.1} parent=11 // pred_check_branch
          %340 = sbr.rel (%p338) target = $region20
        $region19: #{model_forward.1} parent=11 // pred_region
          _
        $region20: #{model_forward.1} parent=11 // pred_fallthru
          _
        // Predicated region
        $region21: #{model_forward.1} parent=11 // pred_check
          %p341 = pneg %p124
        $region22: #{model_forward.1} parent=11 // pred_check_branch
          %343 = sbr.rel (%p341) target = $region24
        $region23: #{model_forward.1} parent=11 // pred_region
          _
        $region24: #{model_forward.1} parent=11 // pred_fallthru
          _
        // Predicated region
        $region25: #{model_forward.1} parent=11 // pred_check
          %p344 = pneg %p145
        $region26: #{model_forward.1} parent=11 // pred_check_branch
          %346 = sbr.rel (%p344) target = $region28
        $region27: #{model_forward.1} parent=11 // pred_region
          _
        $region28: #{model_forward.1} parent=11 // pred_fallthru
          _
        // Predicated region
        $region29: #{model_forward.1} parent=11 // pred_check
          %p347 = pneg %p166
        $region30: #{model_forward.1} parent=11 // pred_check_branch
          %349 = sbr.rel (%p347) target = $region32
        $region31: #{model_forward.1} parent=11 // pred_region
          _
        $region32: #{model_forward.1} parent=11 // pred_fallthru
          _
        // Predicated region
        $region33: #{model_forward.1} parent=11 // pred_check
          %p350 = pneg %p187
        $region34: #{model_forward.1} parent=11 // pred_check_branch
          %352 = sbr.rel (%p350) target = $region36
        $region35: #{model_forward.1} parent=11 // pred_region
          _
        $region36: #{model_forward.1} parent=11 // pred_fallthru
          _
        // Predicated region
        $region37: #{model_forward.1} parent=11 // pred_check
          %p353 = pneg %p208
        $region38: #{model_forward.1} parent=11 // pred_check_branch
          %355 = sbr.rel (%p353) target = $region40
        $region39: #{model_forward.1} parent=11 // pred_region
          _
        $region40: #{model_forward.1} parent=11 // pred_fallthru
          _
        // Predicated region
        $region41: #{model_forward.1} parent=11 // pred_check
          %p356 = pneg %p229
        $region42: #{model_forward.1} parent=11 // pred_check_branch
          %358 = sbr.rel (%p356) target = $region44
        $region43: #{model_forward.1} parent=11 // pred_region
          _
        $region44: #{model_forward.1} parent=11 // pred_fallthru
          _
        // Predicated region
        $region45: #{model_forward.1} parent=11 // pred_check
          %p359 = pneg %p250
        $region46: #{model_forward.1} parent=11 // pred_check_branch
          %361 = sbr.rel (%p359) target = $region48
        $region47: #{model_forward.1} parent=11 // pred_region
          _
        $region48: #{model_forward.1} parent=11 // pred_fallthru
          _
        // Predicated region
        $region49: #{model_forward.1} parent=11 // pred_check
          %p362 = pneg %p271
        $region50: #{model_forward.1} parent=11 // pred_check_branch
          %364 = sbr.rel (%p362) target = $region52
        $region51: #{model_forward.1} parent=11 // pred_region
          _
        $region52: #{model_forward.1} parent=11 // pred_fallthru
          _
        // Predicated region
        $region53: #{model_forward.1} parent=11 // pred_check
          %p365 = pneg %p292
        $region54: #{model_forward.1} parent=11 // pred_check_branch
          %367 = sbr.rel (%p365) target = $region56
        $region55: #{model_forward.1} parent=11 // pred_region
          _
        $region56: #{model_forward.1} parent=11 // pred_fallthru
          _
      $region12: #{model_forward.1} parent=5 // pred_fallthru
        _
      %p368 = scmp.lt.s32.totalorder %s21, 2
      // Predicated region
      $region57: #{model_forward.1} parent=5 // pred_check
        %p369 = pneg %p368
      $region58: #{model_forward.1} parent=5 // pred_check_branch
        %371 = sbr.rel (%p369) target = $region60
      $region59: #{model_forward.1} parent=5 // pred_region
        // Predicated region
        $region61: #{model_forward.1} parent=59 // pred_check
          %p372 = pneg %p55
        $region62: #{model_forward.1} parent=59 // pred_check_branch
          %374 = sbr.rel (%p372) target = $region64
        $region63: #{model_forward.1} parent=59 // pred_region
          %p375 = scmp.lt.s32.totalorder %s28, 1
          %s376 = scalar_select %p375, %s28, 1
          %p377 = scmp.lt.s32.totalorder %s29, 0
          %s378 = scalar_select %p377, %s29, 0
          %s379 = smul.addr %s378, 34
          %s380 = smul.addr %s376, 34
          %s381 = sadd.s32 %s379, %s380
          %s382 = smul.addr %s381, 8
          %s383 = scalar_lea.vmem %s0, %s382
        $region64: #{model_forward.1} parent=59 // pred_fallthru
          _
      $region60: #{model_forward.1} parent=5 // pred_fallthru
        _
      %p384 = scmp.le.s32.totalorder 1, %s21
      %p385 = scmp.lt.s32.totalorder %s21, 3
      %p386 = pnand %p384, %p385
      %p387 = pneg %p386
      // Predicated region
      $region65: #{model_forward.1} parent=5 // pred_check
        _
      $region66: #{model_forward.1} parent=5 // pred_check_branch
        %389 = sbr.rel (%p386) target = $region68
      $region67: #{model_forward.1} parent=5 // pred_region
        %s390 = ssub.s32 %s21, 1
        %p391 = scmp.lt.s32.totalorder %s30, 1
        %s392 = scalar_select %p391, %s30, 1
        %p393 = scmp.lt.s32.totalorder %s31, 0
        %s394 = scalar_select %p393, %s31, 0
        %s395 = smul.addr %s394, 34
        %s396 = smul.addr %s392, 34
        %s397 = sadd.s32 %s395, %s396
        %s398 = smul.addr %s397, 8
        %s399 = scalar_lea.vmem %s0, %s398
        %p400 = pneg %p61
        %p401 = pneg %p58
        %p402 = pneg %p82
        %p403 = pneg %p79
        %p404 = pneg %p103
        %p405 = pneg %p100
        %p406 = pneg %p124
        %p407 = pneg %p121
        %p408 = pneg %p145
        %p409 = pneg %p142
        %p410 = pneg %p166
        %p411 = pneg %p163
        %p412 = pneg %p187
        %p413 = pneg %p184
        %p414 = pneg %p208
        %p415 = pneg %p205
        %p416 = pneg %p229
        %p417 = pneg %p226
        %p418 = pneg %p250
        %p419 = pneg %p247
        %p420 = pneg %p271
        %p421 = pneg %p268
        %p422 = pneg %p292
        %p423 = pneg %p289
        %p424 = pneg %p320
        %p425 = pneg %p317
        %s426 = sand.u32 %s307, 1
        %s427 = scalar_lea.sflag [#allocation3], %s426
        %s428 = sand.u32 %s307, 1
        %s429 = smul.addr %s428, 64
        %s430 = scalar_lea.vmem [#allocation2], %s429
        %p431 = scmp.lt.s32.totalorder %s30, 1
        %s432 = scalar_select %p431, %s30, 1
        %p433 = scmp.lt.s32.totalorder %s31, 0
        %s434 = scalar_select %p433, %s31, 0
        %s435 = smul.addr %s434, 34
        %s436 = smul.addr %s432, 34
        %s437 = sadd.s32 %s435, %s436
        %s438 = smul.addr %s437, 8
        %s439 = scalar_lea.vmem %s0, %s438
        %v441 = vld [vmem:[%s439] sm:$0xff]
        %v442 = vld [vmem:[%s439 + $0x8] sm:$0xff]
        %v443 = vld [vmem:[%s439 + $0x10] sm:$0xff]
        %v444 = vld [vmem:[%s439 + $0x18] sm:$0xff]
        %v445 = vld [vmem:[%s439 + $0x20] sm:$0xff]
        %v446 = vld [vmem:[%s439 + $0x28] sm:$0xff]
        %v447 = vld [vmem:[%s439 + $0x30] sm:$0xff]
        %v448 = vld [vmem:[%s439 + $0x38] sm:$0xff]
        %v449 = vld [vmem:[%s439 + $0x40] sm:$0xff]
        %v450 = vld [vmem:[%s439 + $0x48] sm:$0xff]
        %v451 = vld [vmem:[%s439 + $0x50] sm:$0xff]
        %v452 = vld [vmem:[%s439 + $0x58] sm:$0xff]
        %v453 = vld [vmem:[%s439 + $0x60] sm:$0xff]
        %v454 = vld [vmem:[%s439 + $0x68] sm:$0xff]
        %v455 = vld [vmem:[%s439 + $0x70] sm:$0xff]
        %v456 = vld [vmem:[%s439 + $0x78] sm:$0xff]
        %v457 = vld [vmem:[%s439 + $0x80] sm:$0xff]
        %v458 = vld [vmem:[%s439 + $0x88] sm:$0xff]
        %v459 = vld [vmem:[%s439 + $0x90] sm:$0xff]
        %v460 = vld [vmem:[%s439 + $0x98] sm:$0xff]
        %v461 = vld [vmem:[%s439 + $0xa0] sm:$0xff]
        %v462 = vld [vmem:[%s439 + $0xa8] sm:$0xff]
        %v463 = vld [vmem:[%s439 + $0xb0] sm:$0xff]
        %v464 = vld [vmem:[%s439 + $0xb8] sm:$0xff]
        %v465 = vld [vmem:[%s439 + $0xc0] sm:$0xff]
        %v466 = vld [vmem:[%s439 + $0xc8] sm:$0xff]
        %v467 = vld [vmem:[%s439 + $0xd0] sm:$0xff]
        %v468 = vld [vmem:[%s439 + $0xd8] sm:$0xff]
        %v469 = vld [vmem:[%s439 + $0xe0] sm:$0xff]
        %v470 = vld [vmem:[%s439 + $0xe8] sm:$0xff]
        %v471 = vld [vmem:[%s439 + $0xf0] sm:$0xff]
        %v472 = vld [vmem:[%s439 + $0xf8] sm:$0xff]
        %v473 = vld [vmem:[%s439 + $0x100] sm:$0xff]
        %v474 = vld [vmem:[%s439 + $0x108] sm:$0xff]
        %v475 = vmax.f32 %v441, 0.0
        %v476 = vmax.f32 %v442, 0.0
        %v477 = vmax.f32 %v443, 0.0
        %v478 = vmax.f32 %v444, 0.0
        %v479 = vmax.f32 %v445, 0.0
        %v480 = vmax.f32 %v446, 0.0
        %v481 = vmax.f32 %v447, 0.0
        %v482 = vmax.f32 %v448, 0.0
        %v483 = vmax.f32 %v449, 0.0
        %v484 = vmax.f32 %v450, 0.0
        %v485 = vmax.f32 %v451, 0.0
        %v486 = vmax.f32 %v452, 0.0
        %v487 = vmax.f32 %v453, 0.0
        %v488 = vmax.f32 %v454, 0.0
        %v489 = vmax.f32 %v455, 0.0
        %v490 = vmax.f32 %v456, 0.0
        %v491 = vmax.f32 %v457, 0.0
        %v492 = vmax.f32 %v458, 0.0
        %v493 = vmax.f32 %v459, 0.0
        %v494 = vmax.f32 %v460, 0.0
        %v495 = vmax.f32 %v461, 0.0
        %v496 = vmax.f32 %v462, 0.0
        %v497 = vmax.f32 %v463, 0.0
        %v498 = vmax.f32 %v464, 0.0
        %v499 = vmax.f32 %v465, 0.0
        %v500 = vmax.f32 %v466, 0.0
        %v501 = vmax.f32 %v467, 0.0
        %v502 = vmax.f32 %v468, 0.0
        %v503 = vmax.f32 %v469, 0.0
        %v504 = vmax.f32 %v470, 0.0
        %v505 = vmax.f32 %v471, 0.0
        %v506 = vmax.f32 %v472, 0.0
        %v507 = vmax.f32 %v473, 0.0
        %v508 = vmax.f32 %v474, 0.0
        %v509 = vmin.f32 %v475, 6.0
        %v510 = vmin.f32 %v476, 6.0
        %v511 = vmin.f32 %v477, 6.0
        %v512 = vmin.f32 %v478, 6.0
        %v513 = vmin.f32 %v479, 6.0
        %v514 = vmin.f32 %v480, 6.0
        %v515 = vmin.f32 %v481, 6.0
        %v516 = vmin.f32 %v482, 6.0
        %v517 = vmin.f32 %v483, 6.0
        %v518 = vmin.f32 %v484, 6.0
        %v519 = vmin.f32 %v485, 6.0
        %v520 = vmin.f32 %v486, 6.0
        %v521 = vmin.f32 %v487, 6.0
        %v522 = vmin.f32 %v488, 6.0
        %v523 = vmin.f32 %v489, 6.0
        %v524 = vmin.f32 %v490, 6.0
        %v525 = vmin.f32 %v491, 6.0
        %v526 = vmin.f32 %v492, 6.0
        %v527 = vmin.f32 %v493, 6.0
        %v528 = vmin.f32 %v494, 6.0
        %v529 = vmin.f32 %v495, 6.0
        %v530 = vmin.f32 %v496, 6.0
        %v531 = vmin.f32 %v497, 6.0
        %v532 = vmin.f32 %v498, 6.0
        %v533 = vmin.f32 %v499, 6.0
        %v534 = vmin.f32 %v500, 6.0
        %v535 = vmin.f32 %v501, 6.0
        %v536 = vmin.f32 %v502, 6.0
        %v537 = vmin.f32 %v503, 6.0
        %v538 = vmin.f32 %v504, 6.0
        %v539 = vmin.f32 %v505, 6.0
        %v540 = vmin.f32 %v506, 6.0
        %v541 = vmin.f32 %v507, 6.0
        %v542 = vmin.f32 %v508, 6.0
        %v543 = vpack.c.bf16 %v510, %v509
        %v544 = vpack.c.bf16 %v512, %v511
        %v545 = vpack.c.bf16 %v514, %v513
        %v546 = vpack.c.bf16 %v516, %v515
        %v547 = vpack.c.bf16 %v518, %v517
        %v548 = vpack.c.bf16 %v520, %v519
        %v549 = vpack.c.bf16 %v522, %v521
        %v550 = vpack.c.bf16 %v524, %v523
        %v551 = vpack.c.bf16 %v526, %v525
        %v552 = vpack.c.bf16 %v528, %v527
        %v553 = vpack.c.bf16 %v530, %v529
        %v554 = vpack.c.bf16 %v532, %v531
        %v555 = vpack.c.bf16 %v534, %v533
        %v556 = vpack.c.bf16 %v536, %v535
        %v557 = vpack.c.bf16 %v538, %v537
        %v558 = vpack.c.bf16 %v540, %v539
        %v559 = vpack.c.bf16 %v542, %v541
        %v560 = vld [vmem:[%s1] sm:$0xff]
        %v561 = vld [vmem:[%s1 + $0x8] sm:$0xff]
        %v562 = vld [vmem:[%s1 + $0x10] sm:$0xff]
        %v563 = vld [vmem:[%s1 + $0x18] sm:$0xff]
        %v564 = vld [vmem:[%s1 + $0x20] sm:$0xff]
        %v565 = vld [vmem:[%s1 + $0x28] sm:$0xff]
        %v566 = vld [vmem:[%s1 + $0x30] sm:$0xff]
        %v567 = vld [vmem:[%s1 + $0x38] sm:$0xff]
        %v568 = vld [vmem:[%s2] sm:$0x3]
        %v570 = vlaneseq
        %v571 = vshrl.u32 %v570, 7
        %v572 = vsub.s32 0, %v571
        %v573 = vrot.slane %v568, %v572
        %v574 = vlaneseq
        %v575 = vshrl.u32 %v574, 7
        %v576 = vsub.s32 1, %v575
        %v577 = vrot.slane %v568, %v576
        %v588 = vunpack.c.l.b16 %v560
        %v589 = vunpack.c.h.b16 %v560
        %v590 = vunpack.c.l.b16 %v561
        %v591 = vunpack.c.h.b16 %v561
        %v592 = vunpack.c.l.b16 %v562
        %v593 = vunpack.c.h.b16 %v562
        %v594 = vunpack.c.l.b16 %v563
        %v595 = vunpack.c.h.b16 %v563
        %v596 = vunpack.c.l.b16 %v564
        %v597 = vunpack.c.h.b16 %v564
        %v598 = vunpack.c.l.b16 %v565
        %v599 = vunpack.c.h.b16 %v565
        %v600 = vunpack.c.l.b16 %v566
        %v601 = vunpack.c.h.b16 %v566
        %v602 = vunpack.c.l.b16 %v567
        %v603 = vunpack.c.h.b16 %v567
        %v604 = vpack.c.b16 %v590, %v588
        %v605 = vpack.c.b16 %v591, %v589
        %v606 = vpack.c.b16 %v594, %v592
        %v607 = vpack.c.b16 %v595, %v593
        %v608 = vpack.c.b16 %v598, %v596
        %v609 = vpack.c.b16 %v599, %v597
        %v610 = vpack.c.b16 %v602, %v600
        %v611 = vpack.c.b16 %v603, %v601
        %vm620 = vcmask 523264
        %v622 = vsel %vm620, %v543, 0
        %v625 = vsel %vm620, %v544, 0
        %v628 = vsel %vm620, %v545, 0
        %v631 = vsel %vm620, %v546, 0
        %v634 = vsel %vm620, %v547, 0
        %v637 = vsel %vm620, %v548, 0
        %v640 = vsel %vm620, %v549, 0
        %v643 = vsel %vm620, %v550, 0
        %v646 = vsel %vm620, %v551, 0
        %v649 = vsel %vm620, %v552, 0
        %v652 = vsel %vm620, %v553, 0
        %v655 = vsel %vm620, %v554, 0
        %v658 = vsel %vm620, %v555, 0
        %v661 = vsel %vm620, %v556, 0
        %v664 = vsel %vm620, %v557, 0
        %v667 = vsel %vm620, %v558, 0
        %v670 = vsel %vm620, %v559, 0
        %672 = vmatprep.subr.bf16.mxu0 0
        %673 = vmatpush1.bf16.msra.mxu0 0
        %674 = vmatprep.subr.bf16.mxu0 0
        %675 = vmatpush1.bf16.msra.mxu0 0
        %676 = vmatprep.subr.bf16.mxu0 0
        %677 = vmatpush1.bf16.msra.mxu0 0
        %678 = vmatprep.subr.bf16.mxu0 0
        %679 = vmatpush1.bf16.msra.mxu0 0
        %680 = vmatprep.subr.bf16.mxu0 %v611
        %681 = vmatpush1.bf16.msra.mxu0 %v610
        %682 = vmatprep.subr.bf16.mxu0 %v609
        %683 = vmatpush1.bf16.msra.mxu0 %v608
        %684 = vmatprep.subr.bf16.mxu0 %v607
        %685 = vmatpush1.bf16.msra.mxu0 %v606
        %686 = vmatprep.subr.bf16.mxu0 %v605
        %687 = vmatpush1.bf16.msra.mxu0 %v604
        %688 = vmatprep.subr.bf16.mxu0 0
        %689 = vmatpush2.bf16.msra.mxu0 0
        %690 = vmatprep.subr.bf16.mxu0 0
        %691 = vmatpush2.bf16.msra.mxu0 0
        %692 = vmatprep.subr.bf16.mxu0 0
        %693 = vmatpush2.bf16.msra.mxu0 0
        %694 = vmatprep.subr.bf16.mxu0 0
        %695 = vmatpush2.bf16.msra.mxu0 0
        %696 = vmatprep.subr.bf16.mxu0 0
        %697 = vmatpush2.bf16.msra.mxu0 0
        %698 = vmatprep.subr.bf16.mxu0 0
        %699 = vmatpush2.bf16.msra.mxu0 0
        %700 = vmatprep.subr.bf16.mxu0 0
        %701 = vmatpush2.bf16.msra.mxu0 0
        %702 = vmatprep.subr.bf16.mxu0 0
        %703 = vmatpush2.bf16.msra.mxu0 0
        %704 = vmatprep.mubr.bf16.mxu0 0
        %705 = vmatmul.mubr.bf16.gmra.mxu0 %v622
        %v706 = vpop.f32.mrf.mxu0
        %v707 = vadd.f32 %v573, %v706
        %v708 = vpop.f32.mrf.mxu0
        %v709 = vadd.f32 %v577, %v708
        %v710 = vpop.f32.mrf.mxu0
        %v711 = vadd.f32 %v573, %v710
        %v712 = vpop.f32.mrf.mxu0
        %v713 = vadd.f32 %v577, %v712
        %714 = vmatprep.mubr.bf16.mxu0 0
        %715 = vmatmul.mubr.bf16.gmra.mxu0 %v625
        %v716 = vpop.f32.mrf.mxu0
        %v717 = vadd.f32 %v573, %v716
        %v718 = vpop.f32.mrf.mxu0
        %v719 = vadd.f32 %v577, %v718
        %v720 = vpop.f32.mrf.mxu0
        %v721 = vadd.f32 %v573, %v720
        %v722 = vpop.f32.mrf.mxu0
        %v723 = vadd.f32 %v577, %v722
        %724 = vmatprep.mubr.bf16.mxu0 0
        %725 = vmatmul.mubr.bf16.gmra.mxu0 %v628
        %v726 = vpop.f32.mrf.mxu0
        %v727 = vadd.f32 %v573, %v726
        %v728 = vpop.f32.mrf.mxu0
        %v729 = vadd.f32 %v577, %v728
        %v730 = vpop.f32.mrf.mxu0
        %v731 = vadd.f32 %v573, %v730
        %v732 = vpop.f32.mrf.mxu0
        %v733 = vadd.f32 %v577, %v732
        %734 = vmatprep.mubr.bf16.mxu0 0
        %735 = vmatmul.mubr.bf16.gmra.mxu0 %v631
        %v736 = vpop.f32.mrf.mxu0
        %v737 = vadd.f32 %v573, %v736
        %v738 = vpop.f32.mrf.mxu0
        %v739 = vadd.f32 %v577, %v738
        %v740 = vpop.f32.mrf.mxu0
        %v741 = vadd.f32 %v573, %v740
        %v742 = vpop.f32.mrf.mxu0
        %v743 = vadd.f32 %v577, %v742
        %744 = vmatprep.mubr.bf16.mxu0 0
        %745 = vmatmul.mubr.bf16.gmra.mxu0 %v634
        %v746 = vpop.f32.mrf.mxu0
        %v747 = vadd.f32 %v573, %v746
        %v748 = vpop.f32.mrf.mxu0
        %v749 = vadd.f32 %v577, %v748
        %v750 = vpop.f32.mrf.mxu0
        %v751 = vadd.f32 %v573, %v750
        %v752 = vpop.f32.mrf.mxu0
        %v753 = vadd.f32 %v577, %v752
        %754 = vmatprep.mubr.bf16.mxu0 0
        %755 = vmatmul.mubr.bf16.gmra.mxu0 %v637
        %v756 = vpop.f32.mrf.mxu0
        %v757 = vadd.f32 %v573, %v756
        %v758 = vpop.f32.mrf.mxu0
        %v759 = vadd.f32 %v577, %v758
        %v760 = vpop.f32.mrf.mxu0
        %v761 = vadd.f32 %v573, %v760
        %v762 = vpop.f32.mrf.mxu0
        %v763 = vadd.f32 %v577, %v762
        %764 = vmatprep.mubr.bf16.mxu0 0
        %765 = vmatmul.mubr.bf16.gmra.mxu0 %v640
        %v766 = vpop.f32.mrf.mxu0
        %v767 = vadd.f32 %v573, %v766
        %v768 = vpop.f32.mrf.mxu0
        %v769 = vadd.f32 %v577, %v768
        %v770 = vpop.f32.mrf.mxu0
        %v771 = vadd.f32 %v573, %v770
        %v772 = vpop.f32.mrf.mxu0
        %v773 = vadd.f32 %v577, %v772
        %774 = vmatprep.mubr.bf16.mxu0 0
        %775 = vmatmul.mubr.bf16.gmra.mxu0 %v643
        %v776 = vpop.f32.mrf.mxu0
        %v777 = vadd.f32 %v573, %v776
        %v778 = vpop.f32.mrf.mxu0
        %v779 = vadd.f32 %v577, %v778
        %v780 = vpop.f32.mrf.mxu0
        %v781 = vadd.f32 %v573, %v780
        %v782 = vpop.f32.mrf.mxu0
        %v783 = vadd.f32 %v577, %v782
        %784 = vmatprep.mubr.bf16.mxu0 0
        %785 = vmatmul.mubr.bf16.gmra.mxu0 %v646
        %v786 = vpop.f32.mrf.mxu0
        %v787 = vadd.f32 %v573, %v786
        %v788 = vpop.f32.mrf.mxu0
        %v789 = vadd.f32 %v577, %v788
        %v790 = vpop.f32.mrf.mxu0
        %v791 = vadd.f32 %v573, %v790
        %v792 = vpop.f32.mrf.mxu0
        %v793 = vadd.f32 %v577, %v792
        %794 = vmatprep.mubr.bf16.mxu0 0
        %795 = vmatmul.mubr.bf16.gmra.mxu0 %v649
        %v796 = vpop.f32.mrf.mxu0
        %v797 = vadd.f32 %v573, %v796
        %v798 = vpop.f32.mrf.mxu0
        %v799 = vadd.f32 %v577, %v798
        %v800 = vpop.f32.mrf.mxu0
        %v801 = vadd.f32 %v573, %v800
        %v802 = vpop.f32.mrf.mxu0
        %v803 = vadd.f32 %v577, %v802
        %804 = vmatprep.mubr.bf16.mxu0 0
        %805 = vmatmul.mubr.bf16.gmra.mxu0 %v652
        %v806 = vpop.f32.mrf.mxu0
        %v807 = vadd.f32 %v573, %v806
        %v808 = vpop.f32.mrf.mxu0
        %v809 = vadd.f32 %v577, %v808
        %v810 = vpop.f32.mrf.mxu0
        %v811 = vadd.f32 %v573, %v810
        %v812 = vpop.f32.mrf.mxu0
        %v813 = vadd.f32 %v577, %v812
        %814 = vmatprep.mubr.bf16.mxu0 0
        %815 = vmatmul.mubr.bf16.gmra.mxu0 %v655
        %v816 = vpop.f32.mrf.mxu0
        %v817 = vadd.f32 %v573, %v816
        %v818 = vpop.f32.mrf.mxu0
        %v819 = vadd.f32 %v577, %v818
        %v820 = vpop.f32.mrf.mxu0
        %v821 = vadd.f32 %v573, %v820
        %v822 = vpop.f32.mrf.mxu0
        %v823 = vadd.f32 %v577, %v822
        %824 = vmatprep.mubr.bf16.mxu0 0
        %825 = vmatmul.mubr.bf16.gmra.mxu0 %v658
        %v826 = vpop.f32.mrf.mxu0
        %v827 = vadd.f32 %v573, %v826
        %v828 = vpop.f32.mrf.mxu0
        %v829 = vadd.f32 %v577, %v828
        %v830 = vpop.f32.mrf.mxu0
        %v831 = vadd.f32 %v573, %v830
        %v832 = vpop.f32.mrf.mxu0
        %v833 = vadd.f32 %v577, %v832
        %834 = vmatprep.mubr.bf16.mxu0 0
        %835 = vmatmul.mubr.bf16.gmra.mxu0 %v661
        %v836 = vpop.f32.mrf.mxu0
        %v837 = vadd.f32 %v573, %v836
        %v838 = vpop.f32.mrf.mxu0
        %v839 = vadd.f32 %v577, %v838
        %v840 = vpop.f32.mrf.mxu0
        %v841 = vadd.f32 %v573, %v840
        %v842 = vpop.f32.mrf.mxu0
        %v843 = vadd.f32 %v577, %v842
        %844 = vmatprep.mubr.bf16.mxu0 0
        %845 = vmatmul.mubr.bf16.gmra.mxu0 %v664
        %v846 = vpop.f32.mrf.mxu0
        %v847 = vadd.f32 %v573, %v846
        %v848 = vpop.f32.mrf.mxu0
        %v849 = vadd.f32 %v577, %v848
        %v850 = vpop.f32.mrf.mxu0
        %v851 = vadd.f32 %v573, %v850
        %v852 = vpop.f32.mrf.mxu0
        %v853 = vadd.f32 %v577, %v852
        %854 = vmatprep.mubr.bf16.mxu0 0
        %855 = vmatmul.mubr.bf16.gmra.mxu0 %v667
        %v856 = vpop.f32.mrf.mxu0
        %v857 = vadd.f32 %v573, %v856
        %v858 = vpop.f32.mrf.mxu0
        %v859 = vadd.f32 %v577, %v858
        %v860 = vpop.f32.mrf.mxu0
        %v861 = vadd.f32 %v573, %v860
        %v862 = vpop.f32.mrf.mxu0
        %v863 = vadd.f32 %v577, %v862
        %864 = vmatprep.mubr.bf16.mxu0 0
        %865 = vmatmul.mubr.bf16.gmra.mxu0 %v670
        %v866 = vpop.f32.mrf.mxu0
        %v867 = vadd.f32 %v573, %v866
        %v868 = vpop.f32.mrf.mxu0
        %v869 = vadd.f32 %v577, %v868
        %v870 = vpop.f32.mrf.mxu0
        %v871 = vadd.f32 %v573, %v870
        %v872 = vpop.f32.mrf.mxu0
        %v873 = vadd.f32 %v577, %v872
        %874 = vdwg.mxu0
        %v875 = vmax.f32 %v707, 0.0
        %v876 = vmax.f32 %v709, 0.0
        %v877 = vmax.f32 %v711, 0.0
        %v878 = vmax.f32 %v713, 0.0
        %v879 = vmax.f32 %v717, 0.0
        %v880 = vmax.f32 %v719, 0.0
        %v881 = vmax.f32 %v721, 0.0
        %v882 = vmax.f32 %v723, 0.0
        %v883 = vmax.f32 %v727, 0.0
        %v884 = vmax.f32 %v729, 0.0
        %v885 = vmax.f32 %v731, 0.0
        %v886 = vmax.f32 %v733, 0.0
        %v887 = vmax.f32 %v737, 0.0
        %v888 = vmax.f32 %v739, 0.0
        %v889 = vmax.f32 %v741, 0.0
        %v890 = vmax.f32 %v743, 0.0
        %v891 = vmax.f32 %v747, 0.0
        %v892 = vmax.f32 %v749, 0.0
        %v893 = vmax.f32 %v751, 0.0
        %v894 = vmax.f32 %v753, 0.0
        %v895 = vmax.f32 %v757, 0.0
        %v896 = vmax.f32 %v759, 0.0
        %v897 = vmax.f32 %v761, 0.0
        %v898 = vmax.f32 %v763, 0.0
        %v899 = vmax.f32 %v767, 0.0
        %v900 = vmax.f32 %v769, 0.0
        %v901 = vmax.f32 %v771, 0.0
        %v902 = vmax.f32 %v773, 0.0
        %v903 = vmax.f32 %v777, 0.0
        %v904 = vmax.f32 %v779, 0.0
        %v905 = vmax.f32 %v781, 0.0
        %v906 = vmax.f32 %v783, 0.0
        %v907 = vmax.f32 %v787, 0.0
        %v908 = vmax.f32 %v789, 0.0
        %v909 = vmax.f32 %v791, 0.0
        %v910 = vmax.f32 %v793, 0.0
        %v911 = vmax.f32 %v797, 0.0
        %v912 = vmax.f32 %v799, 0.0
        %v913 = vmax.f32 %v801, 0.0
        %v914 = vmax.f32 %v803, 0.0
        %v915 = vmax.f32 %v807, 0.0
        %v916 = vmax.f32 %v809, 0.0
        %v917 = vmax.f32 %v811, 0.0
        %v918 = vmax.f32 %v813, 0.0
        %v919 = vmax.f32 %v817, 0.0
        %v920 = vmax.f32 %v819, 0.0
        %v921 = vmax.f32 %v821, 0.0
        %v922 = vmax.f32 %v823, 0.0
        %v923 = vmax.f32 %v827, 0.0
        %v924 = vmax.f32 %v829, 0.0
        %v925 = vmax.f32 %v831, 0.0
        %v926 = vmax.f32 %v833, 0.0
        %v927 = vmax.f32 %v837, 0.0
        %v928 = vmax.f32 %v839, 0.0
        %v929 = vmax.f32 %v841, 0.0
        %v930 = vmax.f32 %v843, 0.0
        %v931 = vmax.f32 %v847, 0.0
        %v932 = vmax.f32 %v849, 0.0
        %v933 = vmax.f32 %v851, 0.0
        %v934 = vmax.f32 %v853, 0.0
        %v935 = vmax.f32 %v857, 0.0
        %v936 = vmax.f32 %v859, 0.0
        %v937 = vmax.f32 %v861, 0.0
        %v938 = vmax.f32 %v863, 0.0
        %v939 = vmax.f32 %v867, 0.0
        %v940 = vmax.f32 %v869, 0.0
        %v941 = vmax.f32 %v871, 0.0
        %v942 = vmax.f32 %v873, 0.0
        %v943 = vmin.f32 %v875, 6.0
        %v944 = vmin.f32 %v876, 6.0
        %v945 = vmin.f32 %v877, 6.0
        %v946 = vmin.f32 %v878, 6.0
        %v947 = vmin.f32 %v879, 6.0
        %v948 = vmin.f32 %v880, 6.0
        %v949 = vmin.f32 %v881, 6.0
        %v950 = vmin.f32 %v882, 6.0
        %v951 = vmin.f32 %v883, 6.0
        %v952 = vmin.f32 %v884, 6.0
        %v953 = vmin.f32 %v885, 6.0
        %v954 = vmin.f32 %v886, 6.0
        %v955 = vmin.f32 %v887, 6.0
        %v956 = vmin.f32 %v888, 6.0
        %v957 = vmin.f32 %v889, 6.0
        %v958 = vmin.f32 %v890, 6.0
        %v959 = vmin.f32 %v891, 6.0
        %v960 = vmin.f32 %v892, 6.0
        %v961 = vmin.f32 %v893, 6.0
        %v962 = vmin.f32 %v894, 6.0
        %v963 = vmin.f32 %v895, 6.0
        %v964 = vmin.f32 %v896, 6.0
        %v965 = vmin.f32 %v897, 6.0
        %v966 = vmin.f32 %v898, 6.0
        %v967 = vmin.f32 %v899, 6.0
        %v968 = vmin.f32 %v900, 6.0
        %v969 = vmin.f32 %v901, 6.0
        %v970 = vmin.f32 %v902, 6.0
        %v971 = vmin.f32 %v903, 6.0
        %v972 = vmin.f32 %v904, 6.0
        %v973 = vmin.f32 %v905, 6.0
        %v974 = vmin.f32 %v906, 6.0
        %v975 = vmin.f32 %v907, 6.0
        %v976 = vmin.f32 %v908, 6.0
        %v977 = vmin.f32 %v909, 6.0
        %v978 = vmin.f32 %v910, 6.0
        %v979 = vmin.f32 %v911, 6.0
        %v980 = vmin.f32 %v912, 6.0
        %v981 = vmin.f32 %v913, 6.0
        %v982 = vmin.f32 %v914, 6.0
        %v983 = vmin.f32 %v915, 6.0
        %v984 = vmin.f32 %v916, 6.0
        %v985 = vmin.f32 %v917, 6.0
        %v986 = vmin.f32 %v918, 6.0
        %v987 = vmin.f32 %v919, 6.0
        %v988 = vmin.f32 %v920, 6.0
        %v989 = vmin.f32 %v921, 6.0
        %v990 = vmin.f32 %v922, 6.0
        %v991 = vmin.f32 %v923, 6.0
        %v992 = vmin.f32 %v924, 6.0
        %v993 = vmin.f32 %v925, 6.0
        %v994 = vmin.f32 %v926, 6.0
        %v995 = vmin.f32 %v927, 6.0
        %v996 = vmin.f32 %v928, 6.0
        %v997 = vmin.f32 %v929, 6.0
        %v998 = vmin.f32 %v930, 6.0
        %v999 = vmin.f32 %v931, 6.0
        %v1000 = vmin.f32 %v932, 6.0
        %v1001 = vmin.f32 %v933, 6.0
        %v1002 = vmin.f32 %v934, 6.0
        %v1003 = vmin.f32 %v935, 6.0
        %v1004 = vmin.f32 %v936, 6.0
        %v1005 = vmin.f32 %v937, 6.0
        %v1006 = vmin.f32 %v938, 6.0
        %v1007 = vmin.f32 %v939, 6.0
        %v1008 = vmin.f32 %v940, 6.0
        %v1009 = vmin.f32 %v941, 6.0
        %v1010 = vmin.f32 %v942, 6.0
        %v1011 = vpack.c.bf16 %v945, %v943
        %v1012 = vpack.c.bf16 %v946, %v944
        %v1013 = vpack.c.bf16 %v949, %v947
        %v1014 = vpack.c.bf16 %v950, %v948
        %v1015 = vpack.c.bf16 %v953, %v951
        %v1016 = vpack.c.bf16 %v954, %v952
        %v1017 = vpack.c.bf16 %v957, %v955
        %v1018 = vpack.c.bf16 %v958, %v956
        %v1019 = vpack.c.bf16 %v961, %v959
        %v1020 = vpack.c.bf16 %v962, %v960
        %v1021 = vpack.c.bf16 %v965, %v963
        %v1022 = vpack.c.bf16 %v966, %v964
        %v1023 = vpack.c.bf16 %v969, %v967
        %v1024 = vpack.c.bf16 %v970, %v968
        %v1025 = vpack.c.bf16 %v973, %v971
        %v1026 = vpack.c.bf16 %v974, %v972
        %v1027 = vpack.c.bf16 %v977, %v975
        %v1028 = vpack.c.bf16 %v978, %v976
        %v1029 = vpack.c.bf16 %v981, %v979
        %v1030 = vpack.c.bf16 %v982, %v980
        %v1031 = vpack.c.bf16 %v985, %v983
        %v1032 = vpack.c.bf16 %v986, %v984
        %v1033 = vpack.c.bf16 %v989, %v987
        %v1034 = vpack.c.bf16 %v990, %v988
        %v1035 = vpack.c.bf16 %v993, %v991
        %v1036 = vpack.c.bf16 %v994, %v992
        %v1037 = vpack.c.bf16 %v997, %v995
        %v1038 = vpack.c.bf16 %v998, %v996
        %v1039 = vpack.c.bf16 %v1001, %v999
        %v1040 = vpack.c.bf16 %v1002, %v1000
        %v1041 = vpack.c.bf16 %v1005, %v1003
        %v1042 = vpack.c.bf16 %v1006, %v1004
        %v1043 = vpack.c.bf16 %v1009, %v1007
        %v1044 = vpack.c.bf16 %v1010, %v1008
        %v1045 = vld [vmem:[%s3] sm:$0xf]
        %v1046 = vld [vmem:[%s3 + $0x4] sm:$0xf]
        %v1047 = vld [vmem:[%s3 + $0x8] sm:$0xf]
        %v1048 = vld [vmem:[%s3 + $0xc] sm:$0xf]
        %v1049 = vld [vmem:[%s3 + $0x10] sm:$0xf]
        %v1050 = vld [vmem:[%s3 + $0x14] sm:$0xf]
        %v1051 = vld [vmem:[%s3 + $0x18] sm:$0xf]
        %v1052 = vld [vmem:[%s3 + $0x1c] sm:$0xf]
        %v1053 = vld [vmem:[%s3 + $0x20] sm:$0xf]
        %v1054 = vld [vmem:[%s3 + $0x24] sm:$0xf]
        %v1055 = vld [vmem:[%s3 + $0x28] sm:$0xf]
        %v1056 = vld [vmem:[%s3 + $0x2c] sm:$0xf]
        %v1057 = vld [vmem:[%s3 + $0x30] sm:$0xf]
        %v1058 = vld [vmem:[%s3 + $0x34] sm:$0xf]
        %v1059 = vld [vmem:[%s3 + $0x38] sm:$0xf]
        %v1060 = vld [vmem:[%s3 + $0x3c] sm:$0xf]
        %v1061 = vld [vmem:[%s3 + $0x40] sm:$0xf]
        %v1062 = vld [vmem:[%s3 + $0x44] sm:$0xf]
        %v1063 = vld [vmem:[%s3 + $0x48] sm:$0xf]
        %v1064 = vld [vmem:[%s3 + $0x4c] sm:$0xf]
        %v1065 = vld [vmem:[%s3 + $0x50] sm:$0xf]
        %v1066 = vld [vmem:[%s3 + $0x54] sm:$0xf]
        %v1067 = vld [vmem:[%s3 + $0x58] sm:$0xf]
        %v1068 = vld [vmem:[%s3 + $0x5c] sm:$0xf]
        %v1069 = vld [vmem:[%s3 + $0x60] sm:$0xf]
        %v1070 = vld [vmem:[%s3 + $0x64] sm:$0xf]
        %v1071 = vld [vmem:[%s3 + $0x68] sm:$0xf]
        %v1072 = vld [vmem:[%s3 + $0x6c] sm:$0xf]
        %v1073 = vld [vmem:[%s3 + $0x70] sm:$0xf]
        %v1074 = vld [vmem:[%s3 + $0x74] sm:$0xf]
        %v1075 = vld [vmem:[%s3 + $0x78] sm:$0xf]
        %v1076 = vld [vmem:[%s3 + $0x7c] sm:$0xf]
        %v1077 = vld [vmem:[%s4] sm:$0x1]
        %v1079 = vlaneseq
        %v1080 = vshrl.u32 %v1079, 7
        %v1081 = vsub.s32 0, %v1080
        %v1082 = vrot.slane %v1077, %v1081
        %v1116 = vunpack.c.l.b16 %v1045
        %v1117 = vunpack.c.l.b16 %v1046
        %v1118 = vunpack.c.l.b16 %v1047
        %v1119 = vunpack.c.l.b16 %v1048
        %v1120 = vunpack.c.l.b16 %v1049
        %v1121 = vunpack.c.l.b16 %v1050
        %v1122 = vunpack.c.l.b16 %v1051
        %v1123 = vunpack.c.l.b16 %v1052
        %v1124 = vunpack.c.l.b16 %v1053
        %v1125 = vunpack.c.l.b16 %v1054
        %v1126 = vunpack.c.l.b16 %v1055
        %v1127 = vunpack.c.l.b16 %v1056
        %v1128 = vunpack.c.l.b16 %v1057
        %v1129 = vunpack.c.l.b16 %v1058
        %v1130 = vunpack.c.l.b16 %v1059
        %v1131 = vunpack.c.l.b16 %v1060
        %v1132 = vunpack.c.l.b16 %v1061
        %v1133 = vunpack.c.l.b16 %v1062
        %v1134 = vunpack.c.l.b16 %v1063
        %v1135 = vunpack.c.l.b16 %v1064
        %v1136 = vunpack.c.l.b16 %v1065
        %v1137 = vunpack.c.l.b16 %v1066
        %v1138 = vunpack.c.l.b16 %v1067
        %v1139 = vunpack.c.l.b16 %v1068
        %v1140 = vunpack.c.l.b16 %v1069
        %v1141 = vunpack.c.l.b16 %v1070
        %v1142 = vunpack.c.l.b16 %v1071
        %v1143 = vunpack.c.l.b16 %v1072
        %v1144 = vunpack.c.l.b16 %v1073
        %v1145 = vunpack.c.l.b16 %v1074
        %v1146 = vunpack.c.l.b16 %v1075
        %v1147 = vunpack.c.l.b16 %v1076
        %v1148 = vpack.c.b16 %v1117, %v1116
        %v1149 = vpack.c.b16 %v1119, %v1118
        %v1150 = vpack.c.b16 %v1121, %v1120
        %v1151 = vpack.c.b16 %v1123, %v1122
        %v1152 = vpack.c.b16 %v1125, %v1124
        %v1153 = vpack.c.b16 %v1127, %v1126
        %v1154 = vpack.c.b16 %v1129, %v1128
        %v1155 = vpack.c.b16 %v1131, %v1130
        %v1156 = vpack.c.b16 %v1133, %v1132
        %v1157 = vpack.c.b16 %v1135, %v1134
        %v1158 = vpack.c.b16 %v1137, %v1136
        %v1159 = vpack.c.b16 %v1139, %v1138
        %v1160 = vpack.c.b16 %v1141, %v1140
        %v1161 = vpack.c.b16 %v1143, %v1142
        %v1162 = vpack.c.b16 %v1145, %v1144
        %v1163 = vpack.c.b16 %v1147, %v1146
        %1180 = vmatprep.subr.bf16.mxu0 0
        %1181 = vmatpush1.bf16.msra.mxu0 %v1155
        %1182 = vmatprep.subr.bf16.mxu0 0
        %1183 = vmatpush1.bf16.msra.mxu0 %v1154
        %1184 = vmatprep.subr.bf16.mxu0 0
        %1185 = vmatpush1.bf16.msra.mxu0 %v1153
        %1186 = vmatprep.subr.bf16.mxu0 0
        %1187 = vmatpush1.bf16.msra.mxu0 %v1152
        %1188 = vmatprep.subr.bf16.mxu0 0
        %1189 = vmatpush1.bf16.msra.mxu0 %v1151
        %1190 = vmatprep.subr.bf16.mxu0 0
        %1191 = vmatpush1.bf16.msra.mxu0 %v1150
        %1192 = vmatprep.subr.bf16.mxu0 0
        %1193 = vmatpush1.bf16.msra.mxu0 %v1149
        %1194 = vmatprep.subr.bf16.mxu0 0
        %1195 = vmatpush1.bf16.msra.mxu0 %v1148
        %1196 = vmatprep.subr.bf16.mxu0 0
        %1197 = vmatpush2.bf16.msra.mxu0 %v1163
        %1198 = vmatprep.subr.bf16.mxu0 0
        %1199 = vmatpush2.bf16.msra.mxu0 %v1162
        %1200 = vmatprep.subr.bf16.mxu0 0
        %1201 = vmatpush2.bf16.msra.mxu0 %v1161
        %1202 = vmatprep.subr.bf16.mxu0 0
        %1203 = vmatpush2.bf16.msra.mxu0 %v1160
        %1204 = vmatprep.subr.bf16.mxu0 0
        %1205 = vmatpush2.bf16.msra.mxu0 %v1159
        %1206 = vmatprep.subr.bf16.mxu0 0
        %1207 = vmatpush2.bf16.msra.mxu0 %v1158
        %1208 = vmatprep.subr.bf16.mxu0 0
        %1209 = vmatpush2.bf16.msra.mxu0 %v1157
        %1210 = vmatprep.subr.bf16.mxu0 0
        %1211 = vmatpush2.bf16.msra.mxu0 %v1156
        %1212 = vmatprep.mubr.bf16.mxu0 %v1012
        %1213 = vmatmul.mubr.bf16.gmra.mxu0 %v1011
        %v1214 = vpop.f32.mrf.mxu0
        %v1215 = vadd.f32 %v1082, %v1214
        %v1216 = vpop.f32.mrf.mxu0
        %v1217 = vpop.f32.mrf.mxu0
        %v1218 = vadd.f32 %v1082, %v1217
        %v1219 = vpop.f32.mrf.mxu0
        %1220 = vmatprep.mubr.bf16.mxu0 %v1014
        %1221 = vmatmul.mubr.bf16.gmra.mxu0 %v1013
        %v1222 = vpop.f32.mrf.mxu0
        %v1223 = vadd.f32 %v1082, %v1222
        %v1224 = vpop.f32.mrf.mxu0
        %v1225 = vpop.f32.mrf.mxu0
        %v1226 = vadd.f32 %v1082, %v1225
        %v1227 = vpop.f32.mrf.mxu0
        %1228 = vmatprep.mubr.bf16.mxu0 %v1016
        %1229 = vmatmul.mubr.bf16.gmra.mxu0 %v1015
        %v1230 = vpop.f32.mrf.mxu0
        %v1231 = vadd.f32 %v1082, %v1230
        %v1232 = vpop.f32.mrf.mxu0
        %v1233 = vpop.f32.mrf.mxu0
        %v1234 = vadd.f32 %v1082, %v1233
        %v1235 = vpop.f32.mrf.mxu0
        %1236 = vmatprep.mubr.bf16.mxu0 %v1018
        %1237 = vmatmul.mubr.bf16.gmra.mxu0 %v1017
        %v1238 = vpop.f32.mrf.mxu0
        %v1239 = vadd.f32 %v1082, %v1238
        %v1240 = vpop.f32.mrf.mxu0
        %v1241 = vpop.f32.mrf.mxu0
        %v1242 = vadd.f32 %v1082, %v1241
        %v1243 = vpop.f32.mrf.mxu0
        %1244 = vmatprep.mubr.bf16.mxu0 %v1020
        %1245 = vmatmul.mubr.bf16.gmra.mxu0 %v1019
        %v1246 = vpop.f32.mrf.mxu0
        %v1247 = vadd.f32 %v1082, %v1246
        %v1248 = vpop.f32.mrf.mxu0
        %v1249 = vpop.f32.mrf.mxu0
        %v1250 = vadd.f32 %v1082, %v1249
        %v1251 = vpop.f32.mrf.mxu0
        %1252 = vmatprep.mubr.bf16.mxu0 %v1022
        %1253 = vmatmul.mubr.bf16.gmra.mxu0 %v1021
        %v1254 = vpop.f32.mrf.mxu0
        %v1255 = vadd.f32 %v1082, %v1254
        %v1256 = vpop.f32.mrf.mxu0
        %v1257 = vpop.f32.mrf.mxu0
        %v1258 = vadd.f32 %v1082, %v1257
        %v1259 = vpop.f32.mrf.mxu0
        %1260 = vmatprep.mubr.bf16.mxu0 %v1024
        %1261 = vmatmul.mubr.bf16.gmra.mxu0 %v1023
        %v1262 = vpop.f32.mrf.mxu0
        %v1263 = vadd.f32 %v1082, %v1262
        %v1264 = vpop.f32.mrf.mxu0
        %v1265 = vpop.f32.mrf.mxu0
        %v1266 = vadd.f32 %v1082, %v1265
        %v1267 = vpop.f32.mrf.mxu0
        %1268 = vmatprep.mubr.bf16.mxu0 %v1026
        %1269 = vmatmul.mubr.bf16.gmra.mxu0 %v1025
        %v1270 = vpop.f32.mrf.mxu0
        %v1271 = vadd.f32 %v1082, %v1270
        %v1272 = vpop.f32.mrf.mxu0
        %v1273 = vpop.f32.mrf.mxu0
        %v1274 = vadd.f32 %v1082, %v1273
        %v1275 = vpop.f32.mrf.mxu0
        %1276 = vmatprep.mubr.bf16.mxu0 %v1028
        %1277 = vmatmul.mubr.bf16.gmra.mxu0 %v1027
        %v1278 = vpop.f32.mrf.mxu0
        %v1279 = vadd.f32 %v1082, %v1278
        %v1280 = vpop.f32.mrf.mxu0
        %v1281 = vpop.f32.mrf.mxu0
        %v1282 = vadd.f32 %v1082, %v1281
        %v1283 = vpop.f32.mrf.mxu0
        %1284 = vmatprep.mubr.bf16.mxu0 %v1030
        %1285 = vmatmul.mubr.bf16.gmra.mxu0 %v1029
        %v1286 = vpop.f32.mrf.mxu0
        %v1287 = vadd.f32 %v1082, %v1286
        %v1288 = vpop.f32.mrf.mxu0
        %v1289 = vpop.f32.mrf.mxu0
        %v1290 = vadd.f32 %v1082, %v1289
        %v1291 = vpop.f32.mrf.mxu0
        %1292 = vmatprep.mubr.bf16.mxu0 %v1032
        %1293 = vmatmul.mubr.bf16.gmra.mxu0 %v1031
        %v1294 = vpop.f32.mrf.mxu0
        %v1295 = vadd.f32 %v1082, %v1294
        %v1296 = vpop.f32.mrf.mxu0
        %v1297 = vpop.f32.mrf.mxu0
        %v1298 = vadd.f32 %v1082, %v1297
        %v1299 = vpop.f32.mrf.mxu0
        %1300 = vmatprep.mubr.bf16.mxu0 %v1034
        %1301 = vmatmul.mubr.bf16.gmra.mxu0 %v1033
        %v1302 = vpop.f32.mrf.mxu0
        %v1303 = vadd.f32 %v1082, %v1302
        %v1304 = vpop.f32.mrf.mxu0
        %v1305 = vpop.f32.mrf.mxu0
        %v1306 = vadd.f32 %v1082, %v1305
        %v1307 = vpop.f32.mrf.mxu0
        %1308 = vmatprep.mubr.bf16.mxu0 %v1036
        %1309 = vmatmul.mubr.bf16.gmra.mxu0 %v1035
        %v1310 = vpop.f32.mrf.mxu0
        %v1311 = vadd.f32 %v1082, %v1310
        %v1312 = vpop.f32.mrf.mxu0
        %v1313 = vpop.f32.mrf.mxu0
        %v1314 = vadd.f32 %v1082, %v1313
        %v1315 = vpop.f32.mrf.mxu0
        %1316 = vmatprep.mubr.bf16.mxu0 %v1038
        %1317 = vmatmul.mubr.bf16.gmra.mxu0 %v1037
        %v1318 = vpop.f32.mrf.mxu0
        %v1319 = vadd.f32 %v1082, %v1318
        %v1320 = vpop.f32.mrf.mxu0
        %v1321 = vpop.f32.mrf.mxu0
        %v1322 = vadd.f32 %v1082, %v1321
        %v1323 = vpop.f32.mrf.mxu0
        %1324 = vmatprep.mubr.bf16.mxu0 %v1040
        %1325 = vmatmul.mubr.bf16.gmra.mxu0 %v1039
        %v1326 = vpop.f32.mrf.mxu0
        %v1327 = vadd.f32 %v1082, %v1326
        %v1328 = vpop.f32.mrf.mxu0
        %v1329 = vpop.f32.mrf.mxu0
        %v1330 = vadd.f32 %v1082, %v1329
        %v1331 = vpop.f32.mrf.mxu0
        %1332 = vmatprep.mubr.bf16.mxu0 %v1042
        %1333 = vmatmul.mubr.bf16.gmra.mxu0 %v1041
        %v1334 = vpop.f32.mrf.mxu0
        %v1335 = vadd.f32 %v1082, %v1334
        %v1336 = vpop.f32.mrf.mxu0
        %v1337 = vpop.f32.mrf.mxu0
        %v1338 = vadd.f32 %v1082, %v1337
        %v1339 = vpop.f32.mrf.mxu0
        %1340 = vmatprep.mubr.bf16.mxu0 %v1044
        %1341 = vmatmul.mubr.bf16.gmra.mxu0 %v1043
        %v1342 = vpop.f32.mrf.mxu0
        %v1343 = vadd.f32 %v1082, %v1342
        %v1344 = vpop.f32.mrf.mxu0
        %v1345 = vpop.f32.mrf.mxu0
        %v1346 = vadd.f32 %v1082, %v1345
        %v1347 = vpop.f32.mrf.mxu0
        %1348 = vdwg.mxu0
        %v1349 = vmax.f32 %v1215, 0.0
        %v1350 = vmax.f32 %v1218, 0.0
        %v1351 = vmax.f32 %v1223, 0.0
        %v1352 = vmax.f32 %v1226, 0.0
        %v1353 = vmax.f32 %v1231, 0.0
        %v1354 = vmax.f32 %v1234, 0.0
        %v1355 = vmax.f32 %v1239, 0.0
        %v1356 = vmax.f32 %v1242, 0.0
        %v1357 = vmax.f32 %v1247, 0.0
        %v1358 = vmax.f32 %v1250, 0.0
        %v1359 = vmax.f32 %v1255, 0.0
        %v1360 = vmax.f32 %v1258, 0.0
        %v1361 = vmax.f32 %v1263, 0.0
        %v1362 = vmax.f32 %v1266, 0.0
        %v1363 = vmax.f32 %v1271, 0.0
        %v1364 = vmax.f32 %v1274, 0.0
        %v1365 = vmax.f32 %v1279, 0.0
        %v1366 = vmax.f32 %v1282, 0.0
        %v1367 = vmax.f32 %v1287, 0.0
        %v1368 = vmax.f32 %v1290, 0.0
        %v1369 = vmax.f32 %v1295, 0.0
        %v1370 = vmax.f32 %v1298, 0.0
        %v1371 = vmax.f32 %v1303, 0.0
        %v1372 = vmax.f32 %v1306, 0.0
        %v1373 = vmax.f32 %v1311, 0.0
        %v1374 = vmax.f32 %v1314, 0.0
        %v1375 = vmax.f32 %v1319, 0.0
        %v1376 = vmax.f32 %v1322, 0.0
        %v1377 = vmax.f32 %v1327, 0.0
        %v1378 = vmax.f32 %v1330, 0.0
        %v1379 = vmax.f32 %v1335, 0.0
        %v1380 = vmax.f32 %v1338, 0.0
        %v1381 = vmax.f32 %v1343, 0.0
        %v1382 = vmax.f32 %v1346, 0.0
        %v1383 = vmin.f32 %v1349, 6.0
        %v1384 = vmin.f32 %v1350, 6.0
        %v1385 = vmin.f32 %v1351, 6.0
        %v1386 = vmin.f32 %v1352, 6.0
        %v1387 = vmin.f32 %v1353, 6.0
        %v1388 = vmin.f32 %v1354, 6.0
        %v1389 = vmin.f32 %v1355, 6.0
        %v1390 = vmin.f32 %v1356, 6.0
        %v1391 = vmin.f32 %v1357, 6.0
        %v1392 = vmin.f32 %v1358, 6.0
        %v1393 = vmin.f32 %v1359, 6.0
        %v1394 = vmin.f32 %v1360, 6.0
        %v1395 = vmin.f32 %v1361, 6.0
        %v1396 = vmin.f32 %v1362, 6.0
        %v1397 = vmin.f32 %v1363, 6.0
        %v1398 = vmin.f32 %v1364, 6.0
        %v1399 = vmin.f32 %v1365, 6.0
        %v1400 = vmin.f32 %v1366, 6.0
        %v1401 = vmin.f32 %v1367, 6.0
        %v1402 = vmin.f32 %v1368, 6.0
        %v1403 = vmin.f32 %v1369, 6.0
        %v1404 = vmin.f32 %v1370, 6.0
        %v1405 = vmin.f32 %v1371, 6.0
        %v1406 = vmin.f32 %v1372, 6.0
        %v1407 = vmin.f32 %v1373, 6.0
        %v1408 = vmin.f32 %v1374, 6.0
        %v1409 = vmin.f32 %v1375, 6.0
        %v1410 = vmin.f32 %v1376, 6.0
        %v1411 = vmin.f32 %v1377, 6.0
        %v1412 = vmin.f32 %v1378, 6.0
        %v1413 = vmin.f32 %v1379, 6.0
        %v1414 = vmin.f32 %v1380, 6.0
        %v1415 = vmin.f32 %v1381, 6.0
        %v1416 = vmin.f32 %v1382, 6.0
        %v1417 = vpack.c.bf16 %v1384, %v1383
        %v1418 = vpack.c.bf16 %v1386, %v1385
        %v1419 = vpack.c.bf16 %v1388, %v1387
        %v1420 = vpack.c.bf16 %v1390, %v1389
        %v1421 = vpack.c.bf16 %v1392, %v1391
        %v1422 = vpack.c.bf16 %v1394, %v1393
        %v1423 = vpack.c.bf16 %v1396, %v1395
        %v1424 = vpack.c.bf16 %v1398, %v1397
        %v1425 = vpack.c.bf16 %v1400, %v1399
        %v1426 = vpack.c.bf16 %v1402, %v1401
        %v1427 = vpack.c.bf16 %v1404, %v1403
        %v1428 = vpack.c.bf16 %v1406, %v1405
        %v1429 = vpack.c.bf16 %v1408, %v1407
        %v1430 = vpack.c.bf16 %v1410, %v1409
        %v1431 = vpack.c.bf16 %v1412, %v1411
        %v1432 = vpack.c.bf16 %v1414, %v1413
        %v1433 = vpack.c.bf16 %v1416, %v1415
        %v1438 = vunpack.c.l.b16 %v1421
        %v1439 = vunpack.c.h.b16 %v1421
        %v1440 = vunpack.c.l.b16 %v1422
        %v1441 = vunpack.c.h.b16 %v1422
        %v1442 = vunpack.c.l.b16 %v1423
        %v1443 = vunpack.c.h.b16 %v1423
        %v1444 = vunpack.c.l.b16 %v1424
        %v1445 = vunpack.c.h.b16 %v1424
        %v1451 = vunpack.c.l.b16 %v1425
        %v1452 = vunpack.c.h.b16 %v1425
        %v1453 = vunpack.c.l.b16 %v1426
        %v1454 = vunpack.c.h.b16 %v1426
        %v1455 = vunpack.c.l.b16 %v1427
        %v1456 = vunpack.c.h.b16 %v1427
        %v1457 = vunpack.c.l.b16 %v1428
        %v1458 = vunpack.c.h.b16 %v1428
        %v1459 = vunpack.c.l.b16 %v1429
        %v1460 = vpack.c.b16 %v1451, %v1451
        %v1461 = vpack.c.b16 %v1452, %v1452
        %v1462 = vpack.c.b16 %v1453, %v1453
        %v1463 = vpack.c.b16 %v1454, %v1454
        %v1464 = vpack.c.b16 %v1455, %v1455
        %v1465 = vpack.c.b16 %v1456, %v1456
        %v1466 = vpack.c.b16 %v1457, %v1457
        %v1467 = vpack.c.b16 %v1458, %v1458
        %v1468 = vpack.c.b16 %v1459, %v1459
        %v1482 = vunpack.c.h.b16 %v1429
        %v1483 = vunpack.c.l.b16 %v1430
        %v1484 = vunpack.c.h.b16 %v1430
        %v1485 = vunpack.c.l.b16 %v1431
        %v1486 = vunpack.c.h.b16 %v1431
        %v1487 = vunpack.c.l.b16 %v1432
        %v1488 = vunpack.c.h.b16 %v1432
        %v1489 = vunpack.c.l.b16 %v1433
        %v1490 = vunpack.c.h.b16 %v1433
        %v1491 = vpack.c.b16 %v1482, %v1482
        %v1492 = vpack.c.b16 %v1483, %v1483
        %v1493 = vpack.c.b16 %v1484, %v1484
        %v1494 = vpack.c.b16 %v1485, %v1485
        %v1495 = vpack.c.b16 %v1486, %v1486
        %v1496 = vpack.c.b16 %v1487, %v1487
        %v1497 = vpack.c.b16 %v1488, %v1488
        %v1498 = vpack.c.b16 %v1489, %v1489
        %v1499 = vpack.c.b16 %v1490, %v1490
        %p1509 = scmp.gt.s32.totalorder %s31, 0
        %s1510 = scalar_select %p1509, 1, 0
        %v1511 = vstv %s1510
        %vm1512 = vcmp.eq.s32.totalorder %v1511, 1
        %v1513 = vsel %vm1512, %v1460, 0
        %v1514 = vsel 1, %v1461, 0
        %v1515 = vsel 1, %v1462, 0
        %v1516 = vsel 1, %v1463, 0
        %v1517 = vsel 1, %v1464, 0
        %v1518 = vsel 1, %v1465, 0
        %v1519 = vsel 1, %v1466, 0
        %v1520 = vsel 1, %v1467, 0
        %v1521 = vsel 1, %v1468, 0
        %v1522 = vsel %vm1512, %v1491, 0
        %v1523 = vsel 1, %v1492, 0
        %v1524 = vsel 1, %v1493, 0
        %v1525 = vsel 1, %v1494, 0
        %v1526 = vsel 1, %v1495, 0
        %v1527 = vsel 1, %v1496, 0
        %v1528 = vsel 1, %v1497, 0
        %v1529 = vsel 1, %v1498, 0
        %v1530 = vsel 1, %v1499, 0
        %v1531 = vpack.c.b16 %v1438, %v1438
        %v1532 = vpack.c.b16 %v1439, %v1439
        %v1533 = vpack.c.b16 %v1440, %v1440
        %v1534 = vpack.c.b16 %v1441, %v1441
        %v1535 = vpack.c.b16 %v1442, %v1442
        %v1536 = vpack.c.b16 %v1443, %v1443
        %v1537 = vpack.c.b16 %v1444, %v1444
        %v1538 = vpack.c.b16 %v1445, %v1445
        %v1540 = vshrl.u32 %v1531, 16
        %v1542 = vrot.slane %v1540, 7
        %v1543 = vshll.u32 %v1531, 16
        %v1545 = vor.u32 %v1542, %v1543
        %v1547 = vshrl.u32 %v1532, 16
        %v1549 = vrot.slane %v1547, 7
        %v1550 = vshll.u32 %v1532, 16
        %v1552 = vor.u32 %v1549, %v1550
        %v1554 = vshrl.u32 %v1533, 16
        %v1556 = vrot.slane %v1554, 7
        %v1557 = vshll.u32 %v1533, 16
        %v1559 = vor.u32 %v1556, %v1557
        %v1561 = vshrl.u32 %v1534, 16
        %v1563 = vrot.slane %v1561, 7
        %v1564 = vshll.u32 %v1534, 16
        %v1566 = vor.u32 %v1563, %v1564
        %v1568 = vshrl.u32 %v1535, 16
        %v1570 = vrot.slane %v1568, 7
        %v1571 = vshll.u32 %v1535, 16
        %v1573 = vor.u32 %v1570, %v1571
        %v1575 = vshrl.u32 %v1536, 16
        %v1577 = vrot.slane %v1575, 7
        %v1578 = vshll.u32 %v1536, 16
        %v1580 = vor.u32 %v1577, %v1578
        %v1582 = vshrl.u32 %v1537, 16
        %v1584 = vrot.slane %v1582, 7
        %v1585 = vshll.u32 %v1537, 16
        %v1587 = vor.u32 %v1584, %v1585
        %v1589 = vshrl.u32 %v1538, 16
        %v1591 = vrot.slane %v1589, 7
        %v1592 = vshll.u32 %v1538, 16
        %v1594 = vor.u32 %v1591, %v1592
        %vm1603 = vcmask 1040384
        %vm1604 = vsmask.f32 256
        %vm1605 = vmand %vm1603, %vm1604
        %v1606 = vsel %vm1605, 0, %v1545
        %v1607 = vsel %vm1605, 0, %v1552
        %v1608 = vsel %vm1605, 0, %v1559
        %v1609 = vsel %vm1605, 0, %v1566
        %v1610 = vsel %vm1605, 0, %v1573
        %v1611 = vsel %vm1605, 0, %v1580
        %v1612 = vsel %vm1605, 0, %v1587
        %v1613 = vsel %vm1605, 0, %v1594
        %v1623 = vunpack.c.l.b16 %v1522
        %v1624 = vunpack.c.l.b16 %v1523
        %v1625 = vunpack.c.l.b16 %v1524
        %v1626 = vunpack.c.l.b16 %v1525
        %v1627 = vunpack.c.l.b16 %v1526
        %v1628 = vunpack.c.l.b16 %v1527
        %v1629 = vunpack.c.l.b16 %v1528
        %v1630 = vunpack.c.l.b16 %v1529
        %v1631 = vunpack.c.l.b16 %v1530
        %v1632 = vpack.c.b16 %v1623, %v1623
        %v1633 = vpack.c.b16 %v1624, %v1624
        %v1634 = vpack.c.b16 %v1625, %v1625
        %v1635 = vpack.c.b16 %v1626, %v1626
        %v1636 = vpack.c.b16 %v1627, %v1627
        %v1637 = vpack.c.b16 %v1628, %v1628
        %v1638 = vpack.c.b16 %v1629, %v1629
        %v1639 = vpack.c.b16 %v1630, %v1630
        %v1640 = vpack.c.b16 %v1631, %v1631
        %v1642 = vshrl.u32 %v1632, 16
        %v1644 = vrot.slane %v1642, 7
        %v1645 = vshll.u32 %v1632, 16
        %v1647 = vor.u32 %v1644, %v1645
        %v1649 = vshrl.u32 %v1633, 16
        %v1651 = vrot.slane %v1649, 7
        %v1652 = vshll.u32 %v1633, 16
        %v1654 = vor.u32 %v1651, %v1652
        %v1656 = vshrl.u32 %v1634, 16
        %v1658 = vrot.slane %v1656, 7
        %v1659 = vshll.u32 %v1634, 16
        %v1661 = vor.u32 %v1658, %v1659
        %v1663 = vshrl.u32 %v1635, 16
        %v1665 = vrot.slane %v1663, 7
        %v1666 = vshll.u32 %v1635, 16
        %v1668 = vor.u32 %v1665, %v1666
        %v1670 = vshrl.u32 %v1636, 16
        %v1672 = vrot.slane %v1670, 7
        %v1673 = vshll.u32 %v1636, 16
        %v1675 = vor.u32 %v1672, %v1673
        %v1677 = vshrl.u32 %v1637, 16
        %v1679 = vrot.slane %v1677, 7
        %v1680 = vshll.u32 %v1637, 16
        %v1682 = vor.u32 %v1679, %v1680
        %v1684 = vshrl.u32 %v1638, 16
        %v1686 = vrot.slane %v1684, 7
        %v1687 = vshll.u32 %v1638, 16
        %v1689 = vor.u32 %v1686, %v1687
        %v1691 = vshrl.u32 %v1639, 16
        %v1693 = vrot.slane %v1691, 7
        %v1694 = vshll.u32 %v1639, 16
        %v1696 = vor.u32 %v1693, %v1694
        %v1698 = vshrl.u32 %v1640, 16
        %v1700 = vrot.slane %v1698, 7
        %v1701 = vshll.u32 %v1640, 16
        %v1703 = vor.u32 %v1700, %v1701
        %v1713 = vsel %vm1605, 0, %v1647
        %v1714 = vsel %vm1605, 0, %v1654
        %v1715 = vsel %vm1605, 0, %v1661
        %v1716 = vsel %vm1605, 0, %v1668
        %v1717 = vsel %vm1605, 0, %v1675
        %v1718 = vsel %vm1605, 0, %v1682
        %v1719 = vsel %vm1605, 0, %v1689
        %v1720 = vsel %vm1605, 0, %v1696
        %v1721 = vsel %vm1605, 0, %v1703
        %v1723 = vshrl.u32 %v1606, 16
        %v1725 = vshll.u32 %v1606, 16
        %v1727 = vrot.slane %v1725, 1
        %v1728 = vor.u32 %v1723, %v1727
        %v1730 = vshrl.u32 %v1607, 16
        %v1732 = vshll.u32 %v1607, 16
        %v1734 = vrot.slane %v1732, 1
        %v1735 = vor.u32 %v1730, %v1734
        %v1737 = vshrl.u32 %v1608, 16
        %v1739 = vshll.u32 %v1608, 16
        %v1741 = vrot.slane %v1739, 1
        %v1742 = vor.u32 %v1737, %v1741
        %v1744 = vshrl.u32 %v1609, 16
        %v1746 = vshll.u32 %v1609, 16
        %v1748 = vrot.slane %v1746, 1
        %v1749 = vor.u32 %v1744, %v1748
        %v1751 = vshrl.u32 %v1610, 16
        %v1753 = vshll.u32 %v1610, 16
        %v1755 = vrot.slane %v1753, 1
        %v1756 = vor.u32 %v1751, %v1755
        %v1758 = vshrl.u32 %v1611, 16
        %v1760 = vshll.u32 %v1611, 16
        %v1762 = vrot.slane %v1760, 1
        %v1763 = vor.u32 %v1758, %v1762
        %v1765 = vshrl.u32 %v1612, 16
        %v1767 = vshll.u32 %v1612, 16
        %v1769 = vrot.slane %v1767, 1
        %v1770 = vor.u32 %v1765, %v1769
        %v1772 = vshrl.u32 %v1613, 16
        %v1774 = vshll.u32 %v1613, 16
        %v1776 = vrot.slane %v1774, 1
        %v1777 = vor.u32 %v1772, %v1776
        %v1779 = vshrl.u32 %v1713, 16
        %v1781 = vshll.u32 %v1713, 16
        %v1783 = vrot.slane %v1781, 1
        %v1784 = vor.u32 %v1779, %v1783
        %v1786 = vshrl.u32 %v1714, 16
        %v1788 = vshll.u32 %v1714, 16
        %v1790 = vrot.slane %v1788, 1
        %v1791 = vor.u32 %v1786, %v1790
        %v1793 = vshrl.u32 %v1715, 16
        %v1795 = vshll.u32 %v1715, 16
        %v1797 = vrot.slane %v1795, 1
        %v1798 = vor.u32 %v1793, %v1797
        %v1800 = vshrl.u32 %v1716, 16
        %v1802 = vshll.u32 %v1716, 16
        %v1804 = vrot.slane %v1802, 1
        %v1805 = vor.u32 %v1800, %v1804
        %v1807 = vshrl.u32 %v1717, 16
        %v1809 = vshll.u32 %v1717, 16
        %v1811 = vrot.slane %v1809, 1
        %v1812 = vor.u32 %v1807, %v1811
        %v1814 = vshrl.u32 %v1718, 16
        %v1816 = vshll.u32 %v1718, 16
        %v1818 = vrot.slane %v1816, 1
        %v1819 = vor.u32 %v1814, %v1818
        %v1821 = vshrl.u32 %v1719, 16
        %v1823 = vshll.u32 %v1719, 16
        %v1825 = vrot.slane %v1823, 1
        %v1826 = vor.u32 %v1821, %v1825
        %v1828 = vshrl.u32 %v1720, 16
        %v1830 = vshll.u32 %v1720, 16
        %v1832 = vrot.slane %v1830, 1
        %v1833 = vor.u32 %v1828, %v1832
        %v1835 = vshrl.u32 %v1721, 16
        %v1837 = vshll.u32 %v1721, 16
        %v1839 = vrot.slane %v1837, 1
        %v1840 = vor.u32 %v1835, %v1839
        %v1841 = vld [vmem:[%s5] sm:$0xf]
        %v1842 = vld [vmem:[%s5 + $0x4] sm:$0xf]
        %v1843 = vld [vmem:[%s5 + $0x8] sm:$0xf]
        %v1844 = vld [vmem:[%s5 + $0xc] sm:$0xf]
        %v1845 = vld [vmem:[%s5 + $0x10] sm:$0xf]
        %v1846 = vld [vmem:[%s5 + $0x14] sm:$0xf]
        %v1847 = vld [vmem:[%s5 + $0x18] sm:$0xf]
        %v1848 = vld [vmem:[%s5 + $0x1c] sm:$0xf]
        %v1849 = vld [vmem:[%s5 + $0x20] sm:$0xf]
        %v1850 = vld [vmem:[%s5 + $0x24] sm:$0xf]
        %v1851 = vld [vmem:[%s5 + $0x28] sm:$0xf]
        %v1852 = vld [vmem:[%s5 + $0x2c] sm:$0xf]
        %v1853 = vld [vmem:[%s5 + $0x30] sm:$0xf]
        %v1854 = vld [vmem:[%s5 + $0x34] sm:$0xf]
        %v1855 = vld [vmem:[%s5 + $0x38] sm:$0xf]
        %v1856 = vld [vmem:[%s5 + $0x3c] sm:$0xf]
        %v1865 = vunpack.c.l.b16 %v1606
        %v1866 = vunpack.c.l.b16 %v1728
        %v1867 = vunpack.c.l.b16 %v1607
        %v1868 = vunpack.c.l.b16 %v1735
        %v1869 = vunpack.c.l.b16 %v1608
        %v1870 = vunpack.c.l.b16 %v1742
        %v1871 = vunpack.c.l.b16 %v1609
        %v1872 = vunpack.c.l.b16 %v1749
        %v1873 = vunpack.c.l.b16 %v1610
        %v1874 = vunpack.c.l.b16 %v1756
        %v1875 = vunpack.c.l.b16 %v1611
        %v1876 = vunpack.c.l.b16 %v1763
        %v1877 = vunpack.c.l.b16 %v1612
        %v1878 = vunpack.c.l.b16 %v1770
        %v1879 = vunpack.c.l.b16 %v1613
        %v1880 = vunpack.c.l.b16 %v1777
        %v1881 = vld [vmem:[%s6] sm:$0xf]
        %v1882 = vld [vmem:[%s6 + $0x4] sm:$0xf]
        %v1883 = vld [vmem:[%s6 + $0x8] sm:$0xf]
        %v1884 = vld [vmem:[%s6 + $0xc] sm:$0xf]
        %v1885 = vld [vmem:[%s6 + $0x10] sm:$0xf]
        %v1886 = vld [vmem:[%s6 + $0x14] sm:$0xf]
        %v1887 = vld [vmem:[%s6 + $0x18] sm:$0xf]
        %v1888 = vld [vmem:[%s6 + $0x1c] sm:$0xf]
        %v1889 = vld [vmem:[%s6 + $0x20] sm:$0xf]
        %v1890 = vld [vmem:[%s6 + $0x24] sm:$0xf]
        %v1891 = vld [vmem:[%s6 + $0x28] sm:$0xf]
        %v1892 = vld [vmem:[%s6 + $0x2c] sm:$0xf]
        %v1893 = vld [vmem:[%s6 + $0x30] sm:$0xf]
        %v1894 = vld [vmem:[%s6 + $0x34] sm:$0xf]
        %v1895 = vld [vmem:[%s6 + $0x38] sm:$0xf]
        %v1896 = vld [vmem:[%s6 + $0x3c] sm:$0xf]
        %v1897 = vld [vmem:[%s6 + $0x40] sm:$0xf]
        %v1898 = vld [vmem:[%s6 + $0x44] sm:$0xf]
        %v1899 = vld [vmem:[%s6 + $0x48] sm:$0xf]
        %v1900 = vld [vmem:[%s6 + $0x4c] sm:$0xf]
        %v1901 = vld [vmem:[%s6 + $0x50] sm:$0xf]
        %v1902 = vld [vmem:[%s6 + $0x54] sm:$0xf]
        %v1903 = vld [vmem:[%s6 + $0x58] sm:$0xf]
        %v1904 = vld [vmem:[%s6 + $0x5c] sm:$0xf]
        %v1905 = vld [vmem:[%s6 + $0x60] sm:$0xf]
        %v1906 = vld [vmem:[%s6 + $0x64] sm:$0xf]
        %v1907 = vld [vmem:[%s6 + $0x68] sm:$0xf]
        %v1908 = vld [vmem:[%s6 + $0x6c] sm:$0xf]
        %v1909 = vld [vmem:[%s6 + $0x70] sm:$0xf]
        %v1910 = vld [vmem:[%s6 + $0x74] sm:$0xf]
        %v1911 = vld [vmem:[%s6 + $0x78] sm:$0xf]
        %v1912 = vld [vmem:[%s6 + $0x7c] sm:$0xf]
        %v1913 = vpack.c.b16 %v1867, %v1865
        %v1914 = vpack.c.b16 %v1868, %v1866
        %v1915 = vpack.c.b16 %v1871, %v1869
        %v1916 = vpack.c.b16 %v1872, %v1870
        %v1917 = vpack.c.b16 %v1875, %v1873
        %v1918 = vpack.c.b16 %v1876, %v1874
        %v1919 = vpack.c.b16 %v1879, %v1877
        %v1920 = vpack.c.b16 %v1880, %v1878
        %v1961 = vunpack.c.l.b16 %v1881
        %v1962 = vunpack.c.l.b16 %v1882
        %v1963 = vunpack.c.l.b16 %v1883
        %v1964 = vunpack.c.l.b16 %v1884
        %v1965 = vunpack.c.l.b16 %v1885
        %v1966 = vunpack.c.l.b16 %v1886
        %v1967 = vunpack.c.l.b16 %v1887
        %v1968 = vunpack.c.l.b16 %v1888
        %v1969 = vunpack.c.l.b16 %v1889
        %v1970 = vunpack.c.l.b16 %v1890
        %v1971 = vunpack.c.l.b16 %v1891
        %v1972 = vunpack.c.l.b16 %v1892
        %v1973 = vunpack.c.l.b16 %v1893
        %v1974 = vunpack.c.l.b16 %v1894
        %v1975 = vunpack.c.l.b16 %v1895
        %v1976 = vunpack.c.l.b16 %v1896
        %v1977 = vunpack.c.l.b16 %v1897
        %v1978 = vunpack.c.l.b16 %v1898
        %v1979 = vunpack.c.l.b16 %v1899
        %v1980 = vunpack.c.l.b16 %v1900
        %v1981 = vunpack.c.l.b16 %v1901
        %v1982 = vunpack.c.l.b16 %v1902
        %v1983 = vunpack.c.l.b16 %v1903
        %v1984 = vunpack.c.l.b16 %v1904
        %v1985 = vunpack.c.l.b16 %v1905
        %v1986 = vunpack.c.l.b16 %v1906
        %v1987 = vunpack.c.l.b16 %v1907
        %v1988 = vunpack.c.l.b16 %v1908
        %v1989 = vunpack.c.l.b16 %v1909
        %v1990 = vunpack.c.l.b16 %v1910
        %v1991 = vunpack.c.l.b16 %v1911
        %v1992 = vunpack.c.l.b16 %v1912
        %v1993 = vpack.c.b16 %v1962, %v1961
        %v1994 = vpack.c.b16 %v1964, %v1963
        %v1995 = vpack.c.b16 %v1966, %v1965
        %v1996 = vpack.c.b16 %v1968, %v1967
        %v1997 = vpack.c.b16 %v1970, %v1969
        %v1998 = vpack.c.b16 %v1972, %v1971
        %v1999 = vpack.c.b16 %v1974, %v1973
        %v2000 = vpack.c.b16 %v1976, %v1975
        %v2001 = vpack.c.b16 %v1978, %v1977
        %v2002 = vpack.c.b16 %v1980, %v1979
        %v2003 = vpack.c.b16 %v1982, %v1981
        %v2004 = vpack.c.b16 %v1984, %v1983
        %v2005 = vpack.c.b16 %v1986, %v1985
        %v2006 = vpack.c.b16 %v1988, %v1987
        %v2007 = vpack.c.b16 %v1990, %v1989
        %v2008 = vpack.c.b16 %v1992, %v1991
        %2025 = vmatprep.subr.bf16.mxu0 0
        %2026 = vmatpush1.bf16.msra.mxu0 %v2000
        %2027 = vmatprep.subr.bf16.mxu0 0
        %2028 = vmatpush1.bf16.msra.mxu0 %v1999
        %2029 = vmatprep.subr.bf16.mxu0 0
        %2030 = vmatpush1.bf16.msra.mxu0 %v1998
        %2031 = vmatprep.subr.bf16.mxu0 0
        %2032 = vmatpush1.bf16.msra.mxu0 %v1997
        %2033 = vmatprep.subr.bf16.mxu0 0
        %2034 = vmatpush1.bf16.msra.mxu0 %v1996
        %2035 = vmatprep.subr.bf16.mxu0 0
        %2036 = vmatpush1.bf16.msra.mxu0 %v1995
        %2037 = vmatprep.subr.bf16.mxu0 0
        %2038 = vmatpush1.bf16.msra.mxu0 %v1994
        %2039 = vmatprep.subr.bf16.mxu0 0
        %2040 = vmatpush1.bf16.msra.mxu0 %v1993
        %2041 = vmatprep.subr.bf16.mxu0 0
        %2042 = vmatpush2.bf16.msra.mxu0 %v2008
        %2043 = vmatprep.subr.bf16.mxu0 0
        %2044 = vmatpush2.bf16.msra.mxu0 %v2007
        %2045 = vmatprep.subr.bf16.mxu0 0
        %2046 = vmatpush2.bf16.msra.mxu0 %v2006
        %2047 = vmatprep.subr.bf16.mxu0 0
        %2048 = vmatpush2.bf16.msra.mxu0 %v2005
        %2049 = vmatprep.subr.bf16.mxu0 0
        %2050 = vmatpush2.bf16.msra.mxu0 %v2004
        %2051 = vmatprep.subr.bf16.mxu0 0
        %2052 = vmatpush2.bf16.msra.mxu0 %v2003
        %2053 = vmatprep.subr.bf16.mxu0 0
        %2054 = vmatpush2.bf16.msra.mxu0 %v2002
        %2055 = vmatprep.subr.bf16.mxu0 0
        %2056 = vmatpush2.bf16.msra.mxu0 %v2001
        %2057 = vmatprep.mubr.bf16.mxu0 %v1914
        %2058 = vmatmul.mubr.bf16.gmra.mxu0 %v1913
        %v2059 = vpop.f32.mrf.mxu0
        %v2060 = vadd.f32 0.0, %v2059
        %v2061 = vpop.f32.mrf.mxu0
        %v2062 = vpop.f32.mrf.mxu0
        %v2063 = vadd.f32 0.0, %v2062
        %v2064 = vpop.f32.mrf.mxu0
        %2065 = vmatprep.mubr.bf16.mxu0 %v1916
        %2066 = vmatmul.mubr.bf16.gmra.mxu0 %v1915
        %v2067 = vpop.f32.mrf.mxu0
        %v2068 = vadd.f32 0.0, %v2067
        %v2069 = vpop.f32.mrf.mxu0
        %v2070 = vpop.f32.mrf.mxu0
        %v2071 = vadd.f32 0.0, %v2070
        %v2072 = vpop.f32.mrf.mxu0
        %2073 = vmatprep.mubr.bf16.mxu0 %v1918
        %2074 = vmatmul.mubr.bf16.gmra.mxu0 %v1917
        %v2075 = vpop.f32.mrf.mxu0
        %v2076 = vadd.f32 0.0, %v2075
        %v2077 = vpop.f32.mrf.mxu0
        %v2078 = vpop.f32.mrf.mxu0
        %v2079 = vadd.f32 0.0, %v2078
        %v2080 = vpop.f32.mrf.mxu0
        %2081 = vmatprep.mubr.bf16.mxu0 %v1920
        %2082 = vmatmul.mubr.bf16.gmra.mxu0 %v1919
        %v2083 = vpop.f32.mrf.mxu0
        %v2084 = vadd.f32 0.0, %v2083
        %v2085 = vpop.f32.mrf.mxu0
        %v2086 = vpop.f32.mrf.mxu0
        %v2087 = vadd.f32 0.0, %v2086
        %v2088 = vpop.f32.mrf.mxu0
        %2089 = vdwg.mxu0
        %v2106 = vunpack.c.l.b16 %v1841
        %v2107 = vunpack.c.l.b16 %v1842
        %v2108 = vunpack.c.l.b16 %v1843
        %v2109 = vunpack.c.l.b16 %v1844
        %v2110 = vunpack.c.l.b16 %v1845
        %v2111 = vunpack.c.l.b16 %v1846
        %v2112 = vunpack.c.l.b16 %v1847
        %v2113 = vunpack.c.l.b16 %v1848
        %v2114 = vunpack.c.l.b16 %v1849
        %v2115 = vunpack.c.l.b16 %v1850
        %v2116 = vunpack.c.l.b16 %v1851
        %v2117 = vunpack.c.l.b16 %v1852
        %v2118 = vunpack.c.l.b16 %v1853
        %v2119 = vunpack.c.l.b16 %v1854
        %v2120 = vunpack.c.l.b16 %v1855
        %v2121 = vunpack.c.l.b16 %v1856
        %v2122 = vpack.c.b16 %v2107, %v2106
        %v2123 = vpack.c.b16 %v2109, %v2108
        %v2124 = vpack.c.b16 %v2111, %v2110
        %v2125 = vpack.c.b16 %v2113, %v2112
        %v2126 = vpack.c.b16 %v2115, %v2114
        %v2127 = vpack.c.b16 %v2117, %v2116
        %v2128 = vpack.c.b16 %v2119, %v2118
        %v2129 = vpack.c.b16 %v2121, %v2120
        %2138 = vmatprep.subr.bf16.mxu0 0
        %2139 = vmatpush1.bf16.msra.mxu0 %v2129
        %2140 = vmatprep.subr.bf16.mxu0 0
        %2141 = vmatpush1.bf16.msra.mxu0 %v2128
        %2142 = vmatprep.subr.bf16.mxu0 0
        %2143 = vmatpush1.bf16.msra.mxu0 %v2127
        %2144 = vmatprep.subr.bf16.mxu0 0
        %2145 = vmatpush1.bf16.msra.mxu0 %v2126
        %2146 = vmatprep.subr.bf16.mxu0 0
        %2147 = vmatpush1.bf16.msra.mxu0 %v2125
        %2148 = vmatprep.subr.bf16.mxu0 0
        %2149 = vmatpush1.bf16.msra.mxu0 %v2124
        %2150 = vmatprep.subr.bf16.mxu0 0
        %2151 = vmatpush1.bf16.msra.mxu0 %v2123
        %2152 = vmatprep.subr.bf16.mxu0 0
        %2153 = vmatpush1.bf16.msra.mxu0 %v2122
        %2154 = vmatprep.subr.bf16.mxu0 0
        %2155 = vmatpush2.bf16.msra.mxu0 0
        %2156 = vmatprep.subr.bf16.mxu0 0
        %2157 = vmatpush2.bf16.msra.mxu0 0
        %2158 = vmatprep.subr.bf16.mxu0 0
        %2159 = vmatpush2.bf16.msra.mxu0 0
        %2160 = vmatprep.subr.bf16.mxu0 0
        %2161 = vmatpush2.bf16.msra.mxu0 0
        %2162 = vmatprep.subr.bf16.mxu0 0
        %2163 = vmatpush2.bf16.msra.mxu0 0
        %2164 = vmatprep.subr.bf16.mxu0 0
        %2165 = vmatpush2.bf16.msra.mxu0 0
        %2166 = vmatprep.subr.bf16.mxu0 0
        %2167 = vmatpush2.bf16.msra.mxu0 0
        %2168 = vmatprep.subr.bf16.mxu0 0
        %2169 = vmatpush2.bf16.msra.mxu0 0
        %2170 = vmatprep.mubr.bf16.mxu0 0
        %2171 = vmatmul.mubr.bf16.gmra.mxu0 %v1417
        %v2172 = vpop.f32.mrf.mxu0
        %v2173 = vadd.f32 %v2060, %v2172
        %v2174 = vpop.f32.mrf.mxu0
        %v2175 = vpop.f32.mrf.mxu0
        %v2176 = vadd.f32 %v2063, %v2175
        %v2177 = vpop.f32.mrf.mxu0
        %2178 = vmatprep.mubr.bf16.mxu0 0
        %2179 = vmatmul.mubr.bf16.gmra.mxu0 %v1418
        %v2180 = vpop.f32.mrf.mxu0
        %v2181 = vadd.f32 %v2068, %v2180
        %v2182 = vpop.f32.mrf.mxu0
        %v2183 = vpop.f32.mrf.mxu0
        %v2184 = vadd.f32 %v2071, %v2183
        %v2185 = vpop.f32.mrf.mxu0
        %2186 = vmatprep.mubr.bf16.mxu0 0
        %2187 = vmatmul.mubr.bf16.gmra.mxu0 %v1419
        %v2188 = vpop.f32.mrf.mxu0
        %v2189 = vadd.f32 %v2076, %v2188
        %v2190 = vpop.f32.mrf.mxu0
        %v2191 = vpop.f32.mrf.mxu0
        %v2192 = vadd.f32 %v2079, %v2191
        %v2193 = vpop.f32.mrf.mxu0
        %2194 = vmatprep.mubr.bf16.mxu0 0
        %2195 = vmatmul.mubr.bf16.gmra.mxu0 %v1420
        %v2196 = vpop.f32.mrf.mxu0
        %v2197 = vadd.f32 %v2084, %v2196
        %v2198 = vpop.f32.mrf.mxu0
        %v2199 = vpop.f32.mrf.mxu0
        %v2200 = vadd.f32 %v2087, %v2199
        %v2201 = vpop.f32.mrf.mxu0
        %2202 = vdwg.mxu0
        %v2212 = vunpack.c.l.b16 %v1513
        %v2213 = vunpack.c.l.b16 %v1514
        %v2214 = vunpack.c.l.b16 %v1515
        %v2215 = vunpack.c.l.b16 %v1516
        %v2216 = vunpack.c.l.b16 %v1517
        %v2217 = vunpack.c.l.b16 %v1518
        %v2218 = vunpack.c.l.b16 %v1519
        %v2219 = vunpack.c.l.b16 %v1520
        %v2220 = vunpack.c.l.b16 %v1521
        %v2221 = vld [vmem:[%s7] sm:$0xf]
        %v2222 = vld [vmem:[%s7 + $0x4] sm:$0xf]
        %v2223 = vld [vmem:[%s7 + $0x8] sm:$0xf]
        %v2224 = vld [vmem:[%s7 + $0xc] sm:$0xf]
        %v2225 = vld [vmem:[%s7 + $0x10] sm:$0xf]
        %v2226 = vld [vmem:[%s7 + $0x14] sm:$0xf]
        %v2227 = vld [vmem:[%s7 + $0x18] sm:$0xf]
        %v2228 = vld [vmem:[%s7 + $0x1c] sm:$0xf]
        %v2229 = vld [vmem:[%s7 + $0x20] sm:$0xf]
        %v2230 = vld [vmem:[%s7 + $0x24] sm:$0xf]
        %v2231 = vld [vmem:[%s7 + $0x28] sm:$0xf]
        %v2232 = vld [vmem:[%s7 + $0x2c] sm:$0xf]
        %v2233 = vld [vmem:[%s7 + $0x30] sm:$0xf]
        %v2234 = vld [vmem:[%s7 + $0x34] sm:$0xf]
        %v2235 = vld [vmem:[%s7 + $0x38] sm:$0xf]
        %v2236 = vld [vmem:[%s7 + $0x3c] sm:$0xf]
        %v2237 = vld [vmem:[%s7 + $0x40] sm:$0xf]
        %v2238 = vld [vmem:[%s7 + $0x44] sm:$0xf]
        %v2239 = vld [vmem:[%s7 + $0x48] sm:$0xf]
        %v2240 = vld [vmem:[%s7 + $0x4c] sm:$0xf]
        %v2241 = vld [vmem:[%s7 + $0x50] sm:$0xf]
        %v2242 = vld [vmem:[%s7 + $0x54] sm:$0xf]
        %v2243 = vld [vmem:[%s7 + $0x58] sm:$0xf]
        %v2244 = vld [vmem:[%s7 + $0x5c] sm:$0xf]
        %v2245 = vld [vmem:[%s7 + $0x60] sm:$0xf]
        %v2246 = vld [vmem:[%s7 + $0x64] sm:$0xf]
        %v2247 = vld [vmem:[%s7 + $0x68] sm:$0xf]
        %v2248 = vld [vmem:[%s7 + $0x6c] sm:$0xf]
        %v2249 = vld [vmem:[%s7 + $0x70] sm:$0xf]
        %v2250 = vld [vmem:[%s7 + $0x74] sm:$0xf]
        %v2251 = vld [vmem:[%s7 + $0x78] sm:$0xf]
        %v2252 = vld [vmem:[%s7 + $0x7c] sm:$0xf]
        %v2253 = vpack.c.b16 %v2213, %v2212
        %v2254 = vpack.c.b16 %v2214, %v2213
        %v2255 = vpack.c.b16 %v2215, %v2214
        %v2256 = vpack.c.b16 %v2216, %v2215
        %v2257 = vpack.c.b16 %v2217, %v2216
        %v2258 = vpack.c.b16 %v2218, %v2217
        %v2259 = vpack.c.b16 %v2219, %v2218
        %v2260 = vpack.c.b16 %v2220, %v2219
        %v2301 = vunpack.c.l.b16 %v2221
        %v2302 = vunpack.c.l.b16 %v2222
        %v2303 = vunpack.c.l.b16 %v2223
        %v2304 = vunpack.c.l.b16 %v2224
        %v2305 = vunpack.c.l.b16 %v2225
        %v2306 = vunpack.c.l.b16 %v2226
        %v2307 = vunpack.c.l.b16 %v2227
        %v2308 = vunpack.c.l.b16 %v2228
        %v2309 = vunpack.c.l.b16 %v2229
        %v2310 = vunpack.c.l.b16 %v2230
        %v2311 = vunpack.c.l.b16 %v2231
        %v2312 = vunpack.c.l.b16 %v2232
        %v2313 = vunpack.c.l.b16 %v2233
        %v2314 = vunpack.c.l.b16 %v2234
        %v2315 = vunpack.c.l.b16 %v2235
        %v2316 = vunpack.c.l.b16 %v2236
        %v2317 = vunpack.c.l.b16 %v2237
        %v2318 = vunpack.c.l.b16 %v2238
        %v2319 = vunpack.c.l.b16 %v2239
        %v2320 = vunpack.c.l.b16 %v2240
        %v2321 = vunpack.c.l.b16 %v2241
        %v2322 = vunpack.c.l.b16 %v2242
        %v2323 = vunpack.c.l.b16 %v2243
        %v2324 = vunpack.c.l.b16 %v2244
        %v2325 = vunpack.c.l.b16 %v2245
        %v2326 = vunpack.c.l.b16 %v2246
        %v2327 = vunpack.c.l.b16 %v2247
        %v2328 = vunpack.c.l.b16 %v2248
        %v2329 = vunpack.c.l.b16 %v2249
        %v2330 = vunpack.c.l.b16 %v2250
        %v2331 = vunpack.c.l.b16 %v2251
        %v2332 = vunpack.c.l.b16 %v2252
        %v2333 = vpack.c.b16 %v2302, %v2301
        %v2334 = vpack.c.b16 %v2304, %v2303
        %v2335 = vpack.c.b16 %v2306, %v2305
        %v2336 = vpack.c.b16 %v2308, %v2307
        %v2337 = vpack.c.b16 %v2310, %v2309
        %v2338 = vpack.c.b16 %v2312, %v2311
        %v2339 = vpack.c.b16 %v2314, %v2313
        %v2340 = vpack.c.b16 %v2316, %v2315
        %v2341 = vpack.c.b16 %v2318, %v2317
        %v2342 = vpack.c.b16 %v2320, %v2319
        %v2343 = vpack.c.b16 %v2322, %v2321
        %v2344 = vpack.c.b16 %v2324, %v2323
        %v2345 = vpack.c.b16 %v2326, %v2325
        %v2346 = vpack.c.b16 %v2328, %v2327
        %v2347 = vpack.c.b16 %v2330, %v2329
        %v2348 = vpack.c.b16 %v2332, %v2331
        %2365 = vmatprep.subr.bf16.mxu0 0
        %2366 = vmatpush1.bf16.msra.mxu0 %v2340
        %2367 = vmatprep.subr.bf16.mxu0 0
        %2368 = vmatpush1.bf16.msra.mxu0 %v2339
        %2369 = vmatprep.subr.bf16.mxu0 0
        %2370 = vmatpush1.bf16.msra.mxu0 %v2338
        %2371 = vmatprep.subr.bf16.mxu0 0
        %2372 = vmatpush1.bf16.msra.mxu0 %v2337
        %2373 = vmatprep.subr.bf16.mxu0 0
        %2374 = vmatpush1.bf16.msra.mxu0 %v2336
        %2375 = vmatprep.subr.bf16.mxu0 0
        %2376 = vmatpush1.bf16.msra.mxu0 %v2335
        %2377 = vmatprep.subr.bf16.mxu0 0
        %2378 = vmatpush1.bf16.msra.mxu0 %v2334
        %2379 = vmatprep.subr.bf16.mxu0 0
        %2380 = vmatpush1.bf16.msra.mxu0 %v2333
        %2381 = vmatprep.subr.bf16.mxu0 0
        %2382 = vmatpush2.bf16.msra.mxu0 %v2348
        %2383 = vmatprep.subr.bf16.mxu0 0
        %2384 = vmatpush2.bf16.msra.mxu0 %v2347
        %2385 = vmatprep.subr.bf16.mxu0 0
        %2386 = vmatpush2.bf16.msra.mxu0 %v2346
        %2387 = vmatprep.subr.bf16.mxu0 0
        %2388 = vmatpush2.bf16.msra.mxu0 %v2345
        %2389 = vmatprep.subr.bf16.mxu0 0
        %2390 = vmatpush2.bf16.msra.mxu0 %v2344
        %2391 = vmatprep.subr.bf16.mxu0 0
        %2392 = vmatpush2.bf16.msra.mxu0 %v2343
        %2393 = vmatprep.subr.bf16.mxu0 0
        %2394 = vmatpush2.bf16.msra.mxu0 %v2342
        %2395 = vmatprep.subr.bf16.mxu0 0
        %2396 = vmatpush2.bf16.msra.mxu0 %v2341
        %2397 = vmatprep.mubr.bf16.mxu0 %v2254
        %2398 = vmatmul.mubr.bf16.gmra.mxu0 %v2253
        %v2399 = vpop.f32.mrf.mxu0
        %v2400 = vadd.f32 0.0, %v2399
        %v2401 = vpop.f32.mrf.mxu0
        %v2402 = vpop.f32.mrf.mxu0
        %v2403 = vadd.f32 0.0, %v2402
        %v2404 = vpop.f32.mrf.mxu0
        %2405 = vmatprep.mubr.bf16.mxu0 %v2256
        %2406 = vmatmul.mubr.bf16.gmra.mxu0 %v2255
        %v2407 = vpop.f32.mrf.mxu0
        %v2408 = vadd.f32 0.0, %v2407
        %v2409 = vpop.f32.mrf.mxu0
        %v2410 = vpop.f32.mrf.mxu0
        %v2411 = vadd.f32 0.0, %v2410
        %v2412 = vpop.f32.mrf.mxu0
        %2413 = vmatprep.mubr.bf16.mxu0 %v2258
        %2414 = vmatmul.mubr.bf16.gmra.mxu0 %v2257
        %v2415 = vpop.f32.mrf.mxu0
        %v2416 = vadd.f32 0.0, %v2415
        %v2417 = vpop.f32.mrf.mxu0
        %v2418 = vpop.f32.mrf.mxu0
        %v2419 = vadd.f32 0.0, %v2418
        %v2420 = vpop.f32.mrf.mxu0
        %2421 = vmatprep.mubr.bf16.mxu0 %v2260
        %2422 = vmatmul.mubr.bf16.gmra.mxu0 %v2259
        %v2423 = vpop.f32.mrf.mxu0
        %v2424 = vadd.f32 0.0, %v2423
        %v2425 = vpop.f32.mrf.mxu0
        %v2426 = vpop.f32.mrf.mxu0
        %v2427 = vadd.f32 0.0, %v2426
        %v2428 = vpop.f32.mrf.mxu0
        %2429 = vdwg.mxu0
        %v2430 = vadd.f32 %v2173, %v2400
        %v2431 = vadd.f32 %v2176, %v2403
        %v2432 = vadd.f32 %v2181, %v2408
        %v2433 = vadd.f32 %v2184, %v2411
        %v2434 = vadd.f32 %v2189, %v2416
        %v2435 = vadd.f32 %v2192, %v2419
        %v2436 = vadd.f32 %v2197, %v2424
        %v2437 = vadd.f32 %v2200, %v2427
        %v2447 = vunpack.c.l.b16 %v1713
        %v2448 = vunpack.c.l.b16 %v1784
        %v2449 = vunpack.c.l.b16 %v1714
        %v2450 = vunpack.c.l.b16 %v1791
        %v2451 = vunpack.c.l.b16 %v1715
        %v2452 = vunpack.c.l.b16 %v1798
        %v2453 = vunpack.c.l.b16 %v1716
        %v2454 = vunpack.c.l.b16 %v1805
        %v2455 = vunpack.c.l.b16 %v1717
        %v2456 = vunpack.c.l.b16 %v1812
        %v2457 = vunpack.c.l.b16 %v1718
        %v2458 = vunpack.c.l.b16 %v1819
        %v2459 = vunpack.c.l.b16 %v1719
        %v2460 = vunpack.c.l.b16 %v1826
        %v2461 = vunpack.c.l.b16 %v1720
        %v2462 = vunpack.c.l.b16 %v1833
        %v2463 = vunpack.c.l.b16 %v1721
        %v2464 = vunpack.c.l.b16 %v1840
        %v2465 = vld [vmem:[%s8] sm:$0xf]
        %v2466 = vld [vmem:[%s8 + $0x4] sm:$0xf]
        %v2467 = vld [vmem:[%s8 + $0x8] sm:$0xf]
        %v2468 = vld [vmem:[%s8 + $0xc] sm:$0xf]
        %v2469 = vld [vmem:[%s8 + $0x10] sm:$0xf]
        %v2470 = vld [vmem:[%s8 + $0x14] sm:$0xf]
        %v2471 = vld [vmem:[%s8 + $0x18] sm:$0xf]
        %v2472 = vld [vmem:[%s8 + $0x1c] sm:$0xf]
        %v2473 = vld [vmem:[%s8 + $0x20] sm:$0xf]
        %v2474 = vld [vmem:[%s8 + $0x24] sm:$0xf]
        %v2475 = vld [vmem:[%s8 + $0x28] sm:$0xf]
        %v2476 = vld [vmem:[%s8 + $0x2c] sm:$0xf]
        %v2477 = vld [vmem:[%s8 + $0x30] sm:$0xf]
        %v2478 = vld [vmem:[%s8 + $0x34] sm:$0xf]
        %v2479 = vld [vmem:[%s8 + $0x38] sm:$0xf]
        %v2480 = vld [vmem:[%s8 + $0x3c] sm:$0xf]
        %v2481 = vld [vmem:[%s8 + $0x40] sm:$0xf]
        %v2482 = vld [vmem:[%s8 + $0x44] sm:$0xf]
        %v2483 = vld [vmem:[%s8 + $0x48] sm:$0xf]
        %v2484 = vld [vmem:[%s8 + $0x4c] sm:$0xf]
        %v2485 = vld [vmem:[%s8 + $0x50] sm:$0xf]
        %v2486 = vld [vmem:[%s8 + $0x54] sm:$0xf]
        %v2487 = vld [vmem:[%s8 + $0x58] sm:$0xf]
        %v2488 = vld [vmem:[%s8 + $0x5c] sm:$0xf]
        %v2489 = vld [vmem:[%s8 + $0x60] sm:$0xf]
        %v2490 = vld [vmem:[%s8 + $0x64] sm:$0xf]
        %v2491 = vld [vmem:[%s8 + $0x68] sm:$0xf]
        %v2492 = vld [vmem:[%s8 + $0x6c] sm:$0xf]
        %v2493 = vld [vmem:[%s8 + $0x70] sm:$0xf]
        %v2494 = vld [vmem:[%s8 + $0x74] sm:$0xf]
        %v2495 = vld [vmem:[%s8 + $0x78] sm:$0xf]
        %v2496 = vld [vmem:[%s8 + $0x7c] sm:$0xf]
        %v2497 = vld [vmem:[%s8 + $0x80] sm:$0xf]
        %v2498 = vld [vmem:[%s8 + $0x84] sm:$0xf]
        %v2499 = vld [vmem:[%s8 + $0x88] sm:$0xf]
        %v2500 = vld [vmem:[%s8 + $0x8c] sm:$0xf]
        %v2501 = vld [vmem:[%s8 + $0x90] sm:$0xf]
        %v2502 = vld [vmem:[%s8 + $0x94] sm:$0xf]
        %v2503 = vld [vmem:[%s8 + $0x98] sm:$0xf]
        %v2504 = vld [vmem:[%s8 + $0x9c] sm:$0xf]
        %v2505 = vld [vmem:[%s8 + $0xa0] sm:$0xf]
        %v2506 = vld [vmem:[%s8 + $0xa4] sm:$0xf]
        %v2507 = vld [vmem:[%s8 + $0xa8] sm:$0xf]
        %v2508 = vld [vmem:[%s8 + $0xac] sm:$0xf]
        %v2509 = vld [vmem:[%s8 + $0xb0] sm:$0xf]
        %v2510 = vld [vmem:[%s8 + $0xb4] sm:$0xf]
        %v2511 = vld [vmem:[%s8 + $0xb8] sm:$0xf]
        %v2512 = vld [vmem:[%s8 + $0xbc] sm:$0xf]
        %v2513 = vld [vmem:[%s8 + $0xc0] sm:$0xf]
        %v2514 = vld [vmem:[%s8 + $0xc4] sm:$0xf]
        %v2515 = vld [vmem:[%s8 + $0xc8] sm:$0xf]
        %v2516 = vld [vmem:[%s8 + $0xcc] sm:$0xf]
        %v2517 = vld [vmem:[%s8 + $0xd0] sm:$0xf]
        %v2518 = vld [vmem:[%s8 + $0xd4] sm:$0xf]
        %v2519 = vld [vmem:[%s8 + $0xd8] sm:$0xf]
        %v2520 = vld [vmem:[%s8 + $0xdc] sm:$0xf]
        %v2521 = vld [vmem:[%s8 + $0xe0] sm:$0xf]
        %v2522 = vld [vmem:[%s8 + $0xe4] sm:$0xf]
        %v2523 = vld [vmem:[%s8 + $0xe8] sm:$0xf]
        %v2524 = vld [vmem:[%s8 + $0xec] sm:$0xf]
        %v2525 = vld [vmem:[%s8 + $0xf0] sm:$0xf]
        %v2526 = vld [vmem:[%s8 + $0xf4] sm:$0xf]
        %v2527 = vld [vmem:[%s8 + $0xf8] sm:$0xf]
        %v2528 = vld [vmem:[%s8 + $0xfc] sm:$0xf]
        %v2529 = vpack.c.b16 %v2449, %v2447
        %v2530 = vpack.c.b16 %v2450, %v2448
        %v2531 = vpack.c.b16 %v2451, %v2449
        %v2532 = vpack.c.b16 %v2452, %v2450
        %v2533 = vpack.c.b16 %v2453, %v2451
        %v2534 = vpack.c.b16 %v2454, %v2452
        %v2535 = vpack.c.b16 %v2455, %v2453
        %v2536 = vpack.c.b16 %v2456, %v2454
        %v2537 = vpack.c.b16 %v2457, %v2455
        %v2538 = vpack.c.b16 %v2458, %v2456
        %v2539 = vpack.c.b16 %v2459, %v2457
        %v2540 = vpack.c.b16 %v2460, %v2458
        %v2541 = vpack.c.b16 %v2461, %v2459
        %v2542 = vpack.c.b16 %v2462, %v2460
        %v2543 = vpack.c.b16 %v2463, %v2461
        %v2544 = vpack.c.b16 %v2464, %v2462
        %v2625 = vunpack.c.l.b16 %v2465
        %v2626 = vunpack.c.l.b16 %v2466
        %v2627 = vunpack.c.l.b16 %v2467
        %v2628 = vunpack.c.l.b16 %v2468
        %v2629 = vunpack.c.l.b16 %v2469
        %v2630 = vunpack.c.l.b16 %v2470
        %v2631 = vunpack.c.l.b16 %v2471
        %v2632 = vunpack.c.l.b16 %v2472
        %v2633 = vunpack.c.l.b16 %v2473
        %v2634 = vunpack.c.l.b16 %v2474
        %v2635 = vunpack.c.l.b16 %v2475
        %v2636 = vunpack.c.l.b16 %v2476
        %v2637 = vunpack.c.l.b16 %v2477
        %v2638 = vunpack.c.l.b16 %v2478
        %v2639 = vunpack.c.l.b16 %v2479
        %v2640 = vunpack.c.l.b16 %v2480
        %v2641 = vunpack.c.l.b16 %v2481
        %v2642 = vunpack.c.l.b16 %v2482
        %v2643 = vunpack.c.l.b16 %v2483
        %v2644 = vunpack.c.l.b16 %v2484
        %v2645 = vunpack.c.l.b16 %v2485
        %v2646 = vunpack.c.l.b16 %v2486
        %v2647 = vunpack.c.l.b16 %v2487
        %v2648 = vunpack.c.l.b16 %v2488
        %v2649 = vunpack.c.l.b16 %v2489
        %v2650 = vunpack.c.l.b16 %v2490
        %v2651 = vunpack.c.l.b16 %v2491
        %v2652 = vunpack.c.l.b16 %v2492
        %v2653 = vunpack.c.l.b16 %v2493
        %v2654 = vunpack.c.l.b16 %v2494
        %v2655 = vunpack.c.l.b16 %v2495
        %v2656 = vunpack.c.l.b16 %v2496
        %v2657 = vunpack.c.l.b16 %v2497
        %v2658 = vunpack.c.l.b16 %v2498
        %v2659 = vunpack.c.l.b16 %v2499
        %v2660 = vunpack.c.l.b16 %v2500
        %v2661 = vunpack.c.l.b16 %v2501
        %v2662 = vunpack.c.l.b16 %v2502
        %v2663 = vunpack.c.l.b16 %v2503
        %v2664 = vunpack.c.l.b16 %v2504
        %v2665 = vunpack.c.l.b16 %v2505
        %v2666 = vunpack.c.l.b16 %v2506
        %v2667 = vunpack.c.l.b16 %v2507
        %v2668 = vunpack.c.l.b16 %v2508
        %v2669 = vunpack.c.l.b16 %v2509
        %v2670 = vunpack.c.l.b16 %v2510
        %v2671 = vunpack.c.l.b16 %v2511
        %v2672 = vunpack.c.l.b16 %v2512
        %v2673 = vunpack.c.l.b16 %v2513
        %v2674 = vunpack.c.l.b16 %v2514
        %v2675 = vunpack.c.l.b16 %v2515
        %v2676 = vunpack.c.l.b16 %v2516
        %v2677 = vunpack.c.l.b16 %v2517
        %v2678 = vunpack.c.l.b16 %v2518
        %v2679 = vunpack.c.l.b16 %v2519
        %v2680 = vunpack.c.l.b16 %v2520
        %v2681 = vunpack.c.l.b16 %v2521
        %v2682 = vunpack.c.l.b16 %v2522
        %v2683 = vunpack.c.l.b16 %v2523
        %v2684 = vunpack.c.l.b16 %v2524
        %v2685 = vunpack.c.l.b16 %v2525
        %v2686 = vunpack.c.l.b16 %v2526
        %v2687 = vunpack.c.l.b16 %v2527
        %v2688 = vunpack.c.l.b16 %v2528
        %v2689 = vpack.c.b16 %v2626, %v2625
        %v2690 = vpack.c.b16 %v2628, %v2627
        %v2691 = vpack.c.b16 %v2630, %v2629
        %v2692 = vpack.c.b16 %v2632, %v2631
        %v2693 = vpack.c.b16 %v2634, %v2633
        %v2694 = vpack.c.b16 %v2636, %v2635
        %v2695 = vpack.c.b16 %v2638, %v2637
        %v2696 = vpack.c.b16 %v2640, %v2639
        %v2697 = vpack.c.b16 %v2642, %v2641
        %v2698 = vpack.c.b16 %v2644, %v2643
        %v2699 = vpack.c.b16 %v2646, %v2645
        %v2700 = vpack.c.b16 %v2648, %v2647
        %v2701 = vpack.c.b16 %v2650, %v2649
        %v2702 = vpack.c.b16 %v2652, %v2651
        %v2703 = vpack.c.b16 %v2654, %v2653
        %v2704 = vpack.c.b16 %v2656, %v2655
        %v2705 = vpack.c.b16 %v2658, %v2657
        %v2706 = vpack.c.b16 %v2660, %v2659
        %v2707 = vpack.c.b16 %v2662, %v2661
        %v2708 = vpack.c.b16 %v2664, %v2663
        %v2709 = vpack.c.b16 %v2666, %v2665
        %v2710 = vpack.c.b16 %v2668, %v2667
        %v2711 = vpack.c.b16 %v2670, %v2669
        %v2712 = vpack.c.b16 %v2672, %v2671
        %v2713 = vpack.c.b16 %v2674, %v2673
        %v2714 = vpack.c.b16 %v2676, %v2675
        %v2715 = vpack.c.b16 %v2678, %v2677
        %v2716 = vpack.c.b16 %v2680, %v2679
        %v2717 = vpack.c.b16 %v2682, %v2681
        %v2718 = vpack.c.b16 %v2684, %v2683
        %v2719 = vpack.c.b16 %v2686, %v2685
        %v2720 = vpack.c.b16 %v2688, %v2687
        %2753 = vmatprep.subr.bf16.mxu0 0
        %2754 = vmatpush1.bf16.msra.mxu0 %v2696
        %2755 = vmatprep.subr.bf16.mxu0 0
        %2756 = vmatpush1.bf16.msra.mxu0 %v2695
        %2757 = vmatprep.subr.bf16.mxu0 0
        %2758 = vmatpush1.bf16.msra.mxu0 %v2694
        %2759 = vmatprep.subr.bf16.mxu0 0
        %2760 = vmatpush1.bf16.msra.mxu0 %v2693
        %2761 = vmatprep.subr.bf16.mxu0 0
        %2762 = vmatpush1.bf16.msra.mxu0 %v2692
        %2763 = vmatprep.subr.bf16.mxu0 0
        %2764 = vmatpush1.bf16.msra.mxu0 %v2691
        %2765 = vmatprep.subr.bf16.mxu0 0
        %2766 = vmatpush1.bf16.msra.mxu0 %v2690
        %2767 = vmatprep.subr.bf16.mxu0 0
        %2768 = vmatpush1.bf16.msra.mxu0 %v2689
        %2769 = vmatprep.subr.bf16.mxu0 0
        %2770 = vmatpush2.bf16.msra.mxu0 %v2704
        %2771 = vmatprep.subr.bf16.mxu0 0
        %2772 = vmatpush2.bf16.msra.mxu0 %v2703
        %2773 = vmatprep.subr.bf16.mxu0 0
        %2774 = vmatpush2.bf16.msra.mxu0 %v2702
        %2775 = vmatprep.subr.bf16.mxu0 0
        %2776 = vmatpush2.bf16.msra.mxu0 %v2701
        %2777 = vmatprep.subr.bf16.mxu0 0
        %2778 = vmatpush2.bf16.msra.mxu0 %v2700
        %2779 = vmatprep.subr.bf16.mxu0 0
        %2780 = vmatpush2.bf16.msra.mxu0 %v2699
        %2781 = vmatprep.subr.bf16.mxu0 0
        %2782 = vmatpush2.bf16.msra.mxu0 %v2698
        %2783 = vmatprep.subr.bf16.mxu0 0
        %2784 = vmatpush2.bf16.msra.mxu0 %v2697
        %2785 = vmatprep.mubr.bf16.mxu0 %v2530
        %2786 = vmatmul.mubr.bf16.gmra.mxu0 %v2529
        %v2787 = vpop.f32.mrf.mxu0
        %v2788 = vadd.f32 0.0, %v2787
        %v2789 = vpop.f32.mrf.mxu0
        %v2790 = vpop.f32.mrf.mxu0
        %v2791 = vadd.f32 0.0, %v2790
        %v2792 = vpop.f32.mrf.mxu0
        %2793 = vmatprep.mubr.bf16.mxu0 %v2534
        %2794 = vmatmul.mubr.bf16.gmra.mxu0 %v2533
        %v2795 = vpop.f32.mrf.mxu0
        %v2796 = vadd.f32 0.0, %v2795
        %v2797 = vpop.f32.mrf.mxu0
        %v2798 = vpop.f32.mrf.mxu0
        %v2799 = vadd.f32 0.0, %v2798
        %v2800 = vpop.f32.mrf.mxu0
        %2801 = vmatprep.mubr.bf16.mxu0 %v2538
        %2802 = vmatmul.mubr.bf16.gmra.mxu0 %v2537
        %v2803 = vpop.f32.mrf.mxu0
        %v2804 = vadd.f32 0.0, %v2803
        %v2805 = vpop.f32.mrf.mxu0
        %v2806 = vpop.f32.mrf.mxu0
        %v2807 = vadd.f32 0.0, %v2806
        %v2808 = vpop.f32.mrf.mxu0
        %2809 = vmatprep.mubr.bf16.mxu0 %v2542
        %2810 = vmatmul.mubr.bf16.gmra.mxu0 %v2541
        %v2811 = vpop.f32.mrf.mxu0
        %v2812 = vadd.f32 0.0, %v2811
        %v2813 = vpop.f32.mrf.mxu0
        %v2814 = vpop.f32.mrf.mxu0
        %v2815 = vadd.f32 0.0, %v2814
        %v2816 = vpop.f32.mrf.mxu0
        %2817 = vdwg.mxu0
        %2818 = vmatprep.subr.bf16.mxu0 0
        %2819 = vmatpush1.bf16.msra.mxu0 %v2712
        %2820 = vmatprep.subr.bf16.mxu0 0
        %2821 = vmatpush1.bf16.msra.mxu0 %v2711
        %2822 = vmatprep.subr.bf16.mxu0 0
        %2823 = vmatpush1.bf16.msra.mxu0 %v2710
        %2824 = vmatprep.subr.bf16.mxu0 0
        %2825 = vmatpush1.bf16.msra.mxu0 %v2709
        %2826 = vmatprep.subr.bf16.mxu0 0
        %2827 = vmatpush1.bf16.msra.mxu0 %v2708
        %2828 = vmatprep.subr.bf16.mxu0 0
        %2829 = vmatpush1.bf16.msra.mxu0 %v2707
        %2830 = vmatprep.subr.bf16.mxu0 0
        %2831 = vmatpush1.bf16.msra.mxu0 %v2706
        %2832 = vmatprep.subr.bf16.mxu0 0
        %2833 = vmatpush1.bf16.msra.mxu0 %v2705
        %2834 = vmatprep.subr.bf16.mxu0 0
        %2835 = vmatpush2.bf16.msra.mxu0 %v2720
        %2836 = vmatprep.subr.bf16.mxu0 0
        %2837 = vmatpush2.bf16.msra.mxu0 %v2719
        %2838 = vmatprep.subr.bf16.mxu0 0
        %2839 = vmatpush2.bf16.msra.mxu0 %v2718
        %2840 = vmatprep.subr.bf16.mxu0 0
        %2841 = vmatpush2.bf16.msra.mxu0 %v2717
        %2842 = vmatprep.subr.bf16.mxu0 0
        %2843 = vmatpush2.bf16.msra.mxu0 %v2716
        %2844 = vmatprep.subr.bf16.mxu0 0
        %2845 = vmatpush2.bf16.msra.mxu0 %v2715
        %2846 = vmatprep.subr.bf16.mxu0 0
        %2847 = vmatpush2.bf16.msra.mxu0 %v2714
        %2848 = vmatprep.subr.bf16.mxu0 0
        %2849 = vmatpush2.bf16.msra.mxu0 %v2713
        %2850 = vmatprep.mubr.bf16.mxu0 %v2532
        %2851 = vmatmul.mubr.bf16.gmra.mxu0 %v2531
        %v2852 = vpop.f32.mrf.mxu0
        %v2853 = vadd.f32 %v2788, %v2852
        %v2854 = vpop.f32.mrf.mxu0
        %v2855 = vpop.f32.mrf.mxu0
        %v2856 = vadd.f32 %v2791, %v2855
        %v2857 = vpop.f32.mrf.mxu0
        %2858 = vmatprep.mubr.bf16.mxu0 %v2536
        %2859 = vmatmul.mubr.bf16.gmra.mxu0 %v2535
        %v2860 = vpop.f32.mrf.mxu0
        %v2861 = vadd.f32 %v2796, %v2860
        %v2862 = vpop.f32.mrf.mxu0
        %v2863 = vpop.f32.mrf.mxu0
        %v2864 = vadd.f32 %v2799, %v2863
        %v2865 = vpop.f32.mrf.mxu0
        %2866 = vmatprep.mubr.bf16.mxu0 %v2540
        %2867 = vmatmul.mubr.bf16.gmra.mxu0 %v2539
        %v2868 = vpop.f32.mrf.mxu0
        %v2869 = vadd.f32 %v2804, %v2868
        %v2870 = vpop.f32.mrf.mxu0
        %v2871 = vpop.f32.mrf.mxu0
        %v2872 = vadd.f32 %v2807, %v2871
        %v2873 = vpop.f32.mrf.mxu0
        %2874 = vmatprep.mubr.bf16.mxu0 %v2544
        %2875 = vmatmul.mubr.bf16.gmra.mxu0 %v2543
        %v2876 = vpop.f32.mrf.mxu0
        %v2877 = vadd.f32 %v2812, %v2876
        %v2878 = vpop.f32.mrf.mxu0
        %v2879 = vpop.f32.mrf.mxu0
        %v2880 = vadd.f32 %v2815, %v2879
        %v2881 = vpop.f32.mrf.mxu0
        %2882 = vdwg.mxu0
        %v2883 = vadd.f32 %v2430, %v2853
        %v2884 = vadd.f32 %v2431, %v2856
        %v2885 = vadd.f32 %v2432, %v2861
        %v2886 = vadd.f32 %v2433, %v2864
        %v2887 = vadd.f32 %v2434, %v2869
        %v2888 = vadd.f32 %v2435, %v2872
        %v2889 = vadd.f32 %v2436, %v2877
        %v2890 = vadd.f32 %v2437, %v2880
        %v2891 = vld [vmem:[%s9] sm:$0x1]
        %v2893 = vlaneseq
        %v2894 = vshrl.u32 %v2893, 7
        %v2895 = vsub.s32 0, %v2894
        %v2896 = vrot.slane %v2891, %v2895
        %v2898 = vadd.f32 %v2883, %v2896
        %v2899 = vadd.f32 %v2884, %v2896
        %v2900 = vadd.f32 %v2885, %v2896
        %v2901 = vadd.f32 %v2886, %v2896
        %v2902 = vadd.f32 %v2887, %v2896
        %v2903 = vadd.f32 %v2888, %v2896
        %v2904 = vadd.f32 %v2889, %v2896
        %v2905 = vadd.f32 %v2890, %v2896
        %v2906 = vmax.f32 %v2898, 0.0
        %v2907 = vmax.f32 %v2899, 0.0
        %v2908 = vmax.f32 %v2900, 0.0
        %v2909 = vmax.f32 %v2901, 0.0
        %v2910 = vmax.f32 %v2902, 0.0
        %v2911 = vmax.f32 %v2903, 0.0
        %v2912 = vmax.f32 %v2904, 0.0
        %v2913 = vmax.f32 %v2905, 0.0
        %v2914 = vmin.f32 %v2906, 6.0
        %v2915 = vmin.f32 %v2907, 6.0
        %v2916 = vmin.f32 %v2908, 6.0
        %v2917 = vmin.f32 %v2909, 6.0
        %v2918 = vmin.f32 %v2910, 6.0
        %v2919 = vmin.f32 %v2911, 6.0
        %v2920 = vmin.f32 %v2912, 6.0
        %v2921 = vmin.f32 %v2913, 6.0
        %v2922 = vpack.c.bf16 %v2915, %v2914
        %v2923 = vpack.c.bf16 %v2917, %v2916
        %v2924 = vpack.c.bf16 %v2919, %v2918
        %v2925 = vpack.c.bf16 %v2921, %v2920
        %v2926 = vld [vmem:[%s10] sm:$0xff]
        %v2927 = vld [vmem:[%s10 + $0x8] sm:$0xff]
        %v2928 = vld [vmem:[%s10 + $0x10] sm:$0xff]
        %v2929 = vld [vmem:[%s10 + $0x18] sm:$0xff]
        %v2930 = vld [vmem:[%s10 + $0x20] sm:$0xff]
        %v2931 = vld [vmem:[%s10 + $0x28] sm:$0xff]
        %v2932 = vld [vmem:[%s10 + $0x30] sm:$0xff]
        %v2933 = vld [vmem:[%s10 + $0x38] sm:$0xff]
        %v2934 = vld [vmem:[%s10 + $0x40] sm:$0xff]
        %v2935 = vld [vmem:[%s10 + $0x48] sm:$0xff]
        %v2936 = vld [vmem:[%s10 + $0x50] sm:$0xff]
        %v2937 = vld [vmem:[%s10 + $0x58] sm:$0xff]
        %v2938 = vld [vmem:[%s10 + $0x60] sm:$0xff]
        %v2939 = vld [vmem:[%s10 + $0x68] sm:$0xff]
        %v2940 = vld [vmem:[%s10 + $0x70] sm:$0xff]
        %v2941 = vld [vmem:[%s10 + $0x78] sm:$0xff]
        %v2942 = vld [vmem:[%s11] sm:$0x3]
        %v2944 = vlaneseq
        %v2945 = vshrl.u32 %v2944, 7
        %v2946 = vsub.s32 0, %v2945
        %v2947 = vrot.slane %v2942, %v2946
        %v2948 = vlaneseq
        %v2949 = vshrl.u32 %v2948, 7
        %v2950 = vsub.s32 1, %v2949
        %v2951 = vrot.slane %v2942, %v2950
        %v2970 = vunpack.c.l.b16 %v2926
        %v2971 = vunpack.c.h.b16 %v2926
        %v2972 = vunpack.c.l.b16 %v2927
        %v2973 = vunpack.c.h.b16 %v2927
        %v2974 = vunpack.c.l.b16 %v2928
        %v2975 = vunpack.c.h.b16 %v2928
        %v2976 = vunpack.c.l.b16 %v2929
        %v2977 = vunpack.c.h.b16 %v2929
        %v2978 = vunpack.c.l.b16 %v2930
        %v2979 = vunpack.c.h.b16 %v2930
        %v2980 = vunpack.c.l.b16 %v2931
        %v2981 = vunpack.c.h.b16 %v2931
        %v2982 = vunpack.c.l.b16 %v2932
        %v2983 = vunpack.c.h.b16 %v2932
        %v2984 = vunpack.c.l.b16 %v2933
        %v2985 = vunpack.c.h.b16 %v2933
        %v2986 = vunpack.c.l.b16 %v2934
        %v2987 = vunpack.c.h.b16 %v2934
        %v2988 = vunpack.c.l.b16 %v2935
        %v2989 = vunpack.c.h.b16 %v2935
        %v2990 = vunpack.c.l.b16 %v2936
        %v2991 = vunpack.c.h.b16 %v2936
        %v2992 = vunpack.c.l.b16 %v2937
        %v2993 = vunpack.c.h.b16 %v2937
        %v2994 = vunpack.c.l.b16 %v2938
        %v2995 = vunpack.c.h.b16 %v2938
        %v2996 = vunpack.c.l.b16 %v2939
        %v2997 = vunpack.c.h.b16 %v2939
        %v2998 = vunpack.c.l.b16 %v2940
        %v2999 = vunpack.c.h.b16 %v2940
        %v3000 = vunpack.c.l.b16 %v2941
        %v3001 = vunpack.c.h.b16 %v2941
        %v3002 = vpack.c.b16 %v2972, %v2970
        %v3003 = vpack.c.b16 %v2973, %v2971
        %v3004 = vpack.c.b16 %v2976, %v2974
        %v3005 = vpack.c.b16 %v2977, %v2975
        %v3006 = vpack.c.b16 %v2980, %v2978
        %v3007 = vpack.c.b16 %v2981, %v2979
        %v3008 = vpack.c.b16 %v2984, %v2982
        %v3009 = vpack.c.b16 %v2985, %v2983
        %v3010 = vpack.c.b16 %v2988, %v2986
        %v3011 = vpack.c.b16 %v2989, %v2987
        %v3012 = vpack.c.b16 %v2992, %v2990
        %v3013 = vpack.c.b16 %v2993, %v2991
        %v3014 = vpack.c.b16 %v2996, %v2994
        %v3015 = vpack.c.b16 %v2997, %v2995
        %v3016 = vpack.c.b16 %v3000, %v2998
        %v3017 = vpack.c.b16 %v3001, %v2999
        %3034 = vmatprep.subr.bf16.mxu0 %v3017
        %3035 = vmatpush1.bf16.msra.mxu0 %v3016
        %3036 = vmatprep.subr.bf16.mxu0 %v3015
        %3037 = vmatpush1.bf16.msra.mxu0 %v3014
        %3038 = vmatprep.subr.bf16.mxu0 %v3013
        %3039 = vmatpush1.bf16.msra.mxu0 %v3012
        %3040 = vmatprep.subr.bf16.mxu0 %v3011
        %3041 = vmatpush1.bf16.msra.mxu0 %v3010
        %3042 = vmatprep.subr.bf16.mxu0 %v3009
        %3043 = vmatpush1.bf16.msra.mxu0 %v3008
        %3044 = vmatprep.subr.bf16.mxu0 %v3007
        %3045 = vmatpush1.bf16.msra.mxu0 %v3006
        %3046 = vmatprep.subr.bf16.mxu0 %v3005
        %3047 = vmatpush1.bf16.msra.mxu0 %v3004
        %3048 = vmatprep.subr.bf16.mxu0 %v3003
        %3049 = vmatpush1.bf16.msra.mxu0 %v3002
        %3050 = vmatprep.subr.bf16.mxu0 0
        %3051 = vmatpush2.bf16.msra.mxu0 0
        %3052 = vmatprep.subr.bf16.mxu0 0
        %3053 = vmatpush2.bf16.msra.mxu0 0
        %3054 = vmatprep.subr.bf16.mxu0 0
        %3055 = vmatpush2.bf16.msra.mxu0 0
        %3056 = vmatprep.subr.bf16.mxu0 0
        %3057 = vmatpush2.bf16.msra.mxu0 0
        %3058 = vmatprep.subr.bf16.mxu0 0
        %3059 = vmatpush2.bf16.msra.mxu0 0
        %3060 = vmatprep.subr.bf16.mxu0 0
        %3061 = vmatpush2.bf16.msra.mxu0 0
        %3062 = vmatprep.subr.bf16.mxu0 0
        %3063 = vmatpush2.bf16.msra.mxu0 0
        %3064 = vmatprep.subr.bf16.mxu0 0
        %3065 = vmatpush2.bf16.msra.mxu0 0
        %3066 = vmatprep.mubr.bf16.mxu0 0
        %3067 = vmatmul.mubr.bf16.gmra.mxu0 %v2922
        %v3068 = vpop.f32.mrf.mxu0
        %v3069 = vadd.f32 %v2947, %v3068
        %v3070 = vpop.f32.mrf.mxu0
        %v3071 = vadd.f32 %v2951, %v3070
        %v3072 = vpop.f32.mrf.mxu0
        %v3073 = vadd.f32 %v2947, %v3072
        %v3074 = vpop.f32.mrf.mxu0
        %v3075 = vadd.f32 %v2951, %v3074
        %3076 = vmatprep.mubr.bf16.mxu0 0
        %3077 = vmatmul.mubr.bf16.gmra.mxu0 %v2923
        %v3078 = vpop.f32.mrf.mxu0
        %v3079 = vadd.f32 %v2947, %v3078
        %v3080 = vpop.f32.mrf.mxu0
        %v3081 = vadd.f32 %v2951, %v3080
        %v3082 = vpop.f32.mrf.mxu0
        %v3083 = vadd.f32 %v2947, %v3082
        %v3084 = vpop.f32.mrf.mxu0
        %v3085 = vadd.f32 %v2951, %v3084
        %3086 = vmatprep.mubr.bf16.mxu0 0
        %3087 = vmatmul.mubr.bf16.gmra.mxu0 %v2924
        %v3088 = vpop.f32.mrf.mxu0
        %v3089 = vadd.f32 %v2947, %v3088
        %v3090 = vpop.f32.mrf.mxu0
        %v3091 = vadd.f32 %v2951, %v3090
        %v3092 = vpop.f32.mrf.mxu0
        %v3093 = vadd.f32 %v2947, %v3092
        %v3094 = vpop.f32.mrf.mxu0
        %v3095 = vadd.f32 %v2951, %v3094
        %3096 = vmatprep.mubr.bf16.mxu0 0
        %3097 = vmatmul.mubr.bf16.gmra.mxu0 %v2925
        %v3098 = vpop.f32.mrf.mxu0
        %v3099 = vadd.f32 %v2947, %v3098
        %v3100 = vpop.f32.mrf.mxu0
        %v3101 = vadd.f32 %v2951, %v3100
        %v3102 = vpop.f32.mrf.mxu0
        %v3103 = vadd.f32 %v2947, %v3102
        %v3104 = vpop.f32.mrf.mxu0
        %v3105 = vadd.f32 %v2951, %v3104
        %3106 = vdwg.mxu0
        %v3107 = vmax.f32 %v3069, 0.0
        %v3108 = vmax.f32 %v3071, 0.0
        %v3109 = vmax.f32 %v3073, 0.0
        %v3110 = vmax.f32 %v3075, 0.0
        %v3111 = vmax.f32 %v3079, 0.0
        %v3112 = vmax.f32 %v3081, 0.0
        %v3113 = vmax.f32 %v3083, 0.0
        %v3114 = vmax.f32 %v3085, 0.0
        %v3115 = vmax.f32 %v3089, 0.0
        %v3116 = vmax.f32 %v3091, 0.0
        %v3117 = vmax.f32 %v3093, 0.0
        %v3118 = vmax.f32 %v3095, 0.0
        %v3119 = vmax.f32 %v3099, 0.0
        %v3120 = vmax.f32 %v3101, 0.0
        %v3121 = vmax.f32 %v3103, 0.0
        %v3122 = vmax.f32 %v3105, 0.0
        %v3123 = vmin.f32 %v3107, 6.0
        %v3124 = vmin.f32 %v3108, 6.0
        %v3125 = vmin.f32 %v3109, 6.0
        %v3126 = vmin.f32 %v3110, 6.0
        %v3127 = vmin.f32 %v3111, 6.0
        %v3128 = vmin.f32 %v3112, 6.0
        %v3129 = vmin.f32 %v3113, 6.0
        %v3130 = vmin.f32 %v3114, 6.0
        %v3131 = vmin.f32 %v3115, 6.0
        %v3132 = vmin.f32 %v3116, 6.0
        %v3133 = vmin.f32 %v3117, 6.0
        %v3134 = vmin.f32 %v3118, 6.0
        %v3135 = vmin.f32 %v3119, 6.0
        %v3136 = vmin.f32 %v3120, 6.0
        %v3137 = vmin.f32 %v3121, 6.0
        %v3138 = vmin.f32 %v3122, 6.0
        %v3139 = vadd.f32 %v3123, %v3123
        %v3140 = vadd.f32 %v3124, %v3124
        %v3141 = vadd.f32 %v3125, %v3125
        %v3142 = vadd.f32 %v3126, %v3126
        %v3143 = vadd.f32 %v3127, %v3127
        %v3144 = vadd.f32 %v3128, %v3128
        %v3145 = vadd.f32 %v3129, %v3129
        %v3146 = vadd.f32 %v3130, %v3130
        %v3147 = vadd.f32 %v3131, %v3131
        %v3148 = vadd.f32 %v3132, %v3132
        %v3149 = vadd.f32 %v3133, %v3133
        %v3150 = vadd.f32 %v3134, %v3134
        %v3151 = vadd.f32 %v3135, %v3135
        %v3152 = vadd.f32 %v3136, %v3136
        %v3153 = vadd.f32 %v3137, %v3137
        %v3154 = vadd.f32 %v3138, %v3138
        %v3155 = vpack.c.bf16 %v3141, %v3139
        %v3156 = vpack.c.bf16 %v3142, %v3140
        %v3157 = vpack.c.bf16 %v3145, %v3143
        %v3158 = vpack.c.bf16 %v3146, %v3144
        %v3159 = vpack.c.bf16 %v3149, %v3147
        %v3160 = vpack.c.bf16 %v3150, %v3148
        %v3161 = vpack.c.bf16 %v3153, %v3151
        %v3162 = vpack.c.bf16 %v3154, %v3152
        %3163 = vmatprep.subr.bf16.mxu0 0
        %3164 = vmatpush1.bf16.msra.mxu0 %v1155
        %3165 = vmatprep.subr.bf16.mxu0 0
        %3166 = vmatpush1.bf16.msra.mxu0 %v1154
        %3167 = vmatprep.subr.bf16.mxu0 0
        %3168 = vmatpush1.bf16.msra.mxu0 %v1153
        %3169 = vmatprep.subr.bf16.mxu0 0
        %3170 = vmatpush1.bf16.msra.mxu0 %v1152
        %3171 = vmatprep.subr.bf16.mxu0 0
        %3172 = vmatpush1.bf16.msra.mxu0 %v1151
        %3173 = vmatprep.subr.bf16.mxu0 0
        %3174 = vmatpush1.bf16.msra.mxu0 %v1150
        %3175 = vmatprep.subr.bf16.mxu0 0
        %3176 = vmatpush1.bf16.msra.mxu0 %v1149
        %3177 = vmatprep.subr.bf16.mxu0 0
        %3178 = vmatpush1.bf16.msra.mxu0 %v1148
        %3179 = vmatprep.subr.bf16.mxu0 0
        %3180 = vmatpush2.bf16.msra.mxu0 %v1163
        %3181 = vmatprep.subr.bf16.mxu0 0
        %3182 = vmatpush2.bf16.msra.mxu0 %v1162
        %3183 = vmatprep.subr.bf16.mxu0 0
        %3184 = vmatpush2.bf16.msra.mxu0 %v1161
        %3185 = vmatprep.subr.bf16.mxu0 0
        %3186 = vmatpush2.bf16.msra.mxu0 %v1160
        %3187 = vmatprep.subr.bf16.mxu0 0
        %3188 = vmatpush2.bf16.msra.mxu0 %v1159
        %3189 = vmatprep.subr.bf16.mxu0 0
        %3190 = vmatpush2.bf16.msra.mxu0 %v1158
        %3191 = vmatprep.subr.bf16.mxu0 0
        %3192 = vmatpush2.bf16.msra.mxu0 %v1157
        %3193 = vmatprep.subr.bf16.mxu0 0
        %3194 = vmatpush2.bf16.msra.mxu0 %v1156
        %3195 = vmatprep.mubr.bf16.mxu0 %v3156
        %3196 = vmatmul.mubr.bf16.gmra.mxu0 %v3155
        %v3197 = vpop.f32.mrf.mxu0
        %v3198 = vadd.f32 %v1082, %v3197
        %v3199 = vpop.f32.mrf.mxu0
        %v3200 = vpop.f32.mrf.mxu0
        %v3201 = vadd.f32 %v1082, %v3200
        %v3202 = vpop.f32.mrf.mxu0
        %3203 = vmatprep.mubr.bf16.mxu0 %v3158
        %3204 = vmatmul.mubr.bf16.gmra.mxu0 %v3157
        %v3205 = vpop.f32.mrf.mxu0
        %v3206 = vadd.f32 %v1082, %v3205
        %v3207 = vpop.f32.mrf.mxu0
        %v3208 = vpop.f32.mrf.mxu0
        %v3209 = vadd.f32 %v1082, %v3208
        %v3210 = vpop.f32.mrf.mxu0
        %3211 = vmatprep.mubr.bf16.mxu0 %v3160
        %3212 = vmatmul.mubr.bf16.gmra.mxu0 %v3159
        %v3213 = vpop.f32.mrf.mxu0
        %v3214 = vadd.f32 %v1082, %v3213
        %v3215 = vpop.f32.mrf.mxu0
        %v3216 = vpop.f32.mrf.mxu0
        %v3217 = vadd.f32 %v1082, %v3216
        %v3218 = vpop.f32.mrf.mxu0
        %3219 = vmatprep.mubr.bf16.mxu0 %v3162
        %3220 = vmatmul.mubr.bf16.gmra.mxu0 %v3161
        %v3221 = vpop.f32.mrf.mxu0
        %v3222 = vadd.f32 %v1082, %v3221
        %v3223 = vpop.f32.mrf.mxu0
        %v3224 = vpop.f32.mrf.mxu0
        %v3225 = vadd.f32 %v1082, %v3224
        %v3226 = vpop.f32.mrf.mxu0
        %3227 = vdwg.mxu0
        %v3228 = vmax.f32 %v3198, 0.0
        %v3229 = vmax.f32 %v3201, 0.0
        %v3230 = vmax.f32 %v3206, 0.0
        %v3231 = vmax.f32 %v3209, 0.0
        %v3232 = vmax.f32 %v3214, 0.0
        %v3233 = vmax.f32 %v3217, 0.0
        %v3234 = vmax.f32 %v3222, 0.0
        %v3235 = vmax.f32 %v3225, 0.0
        %v3236 = vmin.f32 %v3228, 6.0
        %v3237 = vmin.f32 %v3229, 6.0
        %v3238 = vmin.f32 %v3230, 6.0
        %v3239 = vmin.f32 %v3231, 6.0
        %v3240 = vmin.f32 %v3232, 6.0
        %v3241 = vmin.f32 %v3233, 6.0
        %v3242 = vmin.f32 %v3234, 6.0
        %v3243 = vmin.f32 %v3235, 6.0
        %3244 = vst [vmem:[%s430] sm:$0xff] %v3236
        %3245 = vst [vmem:[%s430 + $0x8] sm:$0xff] %v3237
        %3246 = vst [vmem:[%s430 + $0x10] sm:$0xff] %v3238
        %3247 = vst [vmem:[%s430 + $0x18] sm:$0xff] %v3239
        %3248 = vst [vmem:[%s430 + $0x20] sm:$0xff] %v3240
        %3249 = vst [vmem:[%s430 + $0x28] sm:$0xff] %v3241
        %3250 = vst [vmem:[%s430 + $0x30] sm:$0xff] %v3242
        %3251 = vst [vmem:[%s430 + $0x38] sm:$0xff] %v3243
        %s3252 = sand.u32 %s307, 1
        %s3253 = scalar_lea.sflag [#allocation3], %s3252
        %s3254 = sand.u32 %s307, 1
        %s3255 = smul.addr %s3254, 64
        %s3256 = scalar_lea.vmem [#allocation2], %s3255
        // Predicated region
        $region69: #{model_forward.1} parent=67 // pred_check
          %p3257 = pneg %p317
        $region70: #{model_forward.1} parent=67 // pred_check_branch
          %3259 = sbr.rel (%p3257) target = $region72
        $region71: #{model_forward.1} parent=67 // pred_region
          %s3261 = ssub.s32 1024, 1024
          %3262 = vsyncadd %s3253, %s3261
          %s3263 = smul.addr %s31, 8
          %s3264 = smul.addr %s30, 8
          %s3265 = sadd.s32 %s3263, %s3264
          %s3266 = smul.addr %s3265, 128
          %s3267 = scalar_lea.hbm %s12, %s3266
          %s3268 = sshll.u32 %s3256, 4
          %s3269 = int_to_ptr.vmem [resolvable:$true] %s3268
          %3274 = dma.vmem_to_hbm [thread:$0]  %s3269, 1024, %s3267, %s3253, 128, 128, 8
        $region72: #{model_forward.1} parent=67 // pred_fallthru
          _
      $region68: #{model_forward.1} parent=5 // pred_fallthru
        _
      %p3275 = scmp.le.s32.totalorder 2, %s21
      // Predicated region
      $region73: #{model_forward.1} parent=5 // pred_check
        %p3276 = pneg %p3275
      $region74: #{model_forward.1} parent=5 // pred_check_branch
        %3278 = sbr.rel (%p3276) target = $region76
      $region75: #{model_forward.1} parent=5 // pred_region
        %s3279 = ssub.s32 %s21, 2
        // Predicated region
        $region77: #{model_forward.1} parent=75 // pred_check
          %p3280 = pneg %p323
        $region78: #{model_forward.1} parent=75 // pred_check_branch
          %3282 = sbr.rel (%p3280) target = $region80
        $region79: #{model_forward.1} parent=75 // pred_region
          %s3283 = sand.u32 %s308, 1
          %s3284 = scalar_lea.sflag [#allocation3], %s3283
          %s3285 = sand.u32 %s308, 1
          %s3286 = smul.addr %s3285, 64
          %s3287 = scalar_lea.vmem [#allocation2], %s3286
          %3288 = dma.done %s3284, 1024
        $region80: #{model_forward.1} parent=75 // pred_fallthru
          _
      $region76: #{model_forward.1} parent=5 // pred_fallthru
        _
    $region6: #{model_forward.1} parent=1 // loop_footer
      %s25 = sadd.s32 1, %s21
    $region7: #{model_forward.1} parent=1 // loop_footer_branch
      %20 = sbr.rel target = $region3
    $region8: #{model_forward.1} parent=1 // loop_exit
      _
    %3289 = vsyncpa [#allocation3], 1
    %s3290 = scalar_lea.sflag [#allocation3], 1
    %3291 = vsyncpa %s3290, 1

</llo_original>
